<compile_context>
chip_gen: v7x
topology: tpu7x:2x2x1
jax: 0.10.0
libtpu: 0.0.40
codegen_flags: <defaults>
</compile_context>

<pallas_src>
import functools

import jax
import jax.numpy as jnp
from jax.experimental import pallas as pl
from jax.experimental.pallas import tpu as pltpu

KH, KW = 3, 3
CIN, COUT = 3, 5


def conv2d_kernel(x_ref, w_ref, b_ref, o_ref, xs_ref, *, img_w, kh, kw):
    # x_ref : (B, cin, hw)       VMEM  -- flattened images (unpadded)
    # w_ref : (cout*cin*kh*kw,)  SMEM  -- torch (Cout, Cin, KH, KW) layout, flat
    # b_ref : (cout,)            SMEM
    # o_ref : (B, cout, hw)      VMEM  -- lane-dense output slab
    # xs_ref: (B, cin, hw_pad)   VMEM scratch -- zero-tailed staging buffer
    bb, cin, hw = x_ref.shape
    cout = o_ref.shape[1]
    hw_pad = xs_ref.shape[2]

    # In-kernel "pad": stage images into the zero-tailed scratch.  hw and the
    # tail width are multiples of 128 here, so both writes are lane-aligned.
    xs_ref[:, :, :hw] = x_ref[...]
    if hw_pad > hw:
        xs_ref[:, :, hw:] = jnp.zeros((bb, cin, hw_pad - hw), xs_ref.dtype)

    # im2col-by-lane-shift: tap (r, s) of the conv is the flattened image
    # sliced at offset r*W + s; the zero tail keeps every slice in bounds.
    # Junk columns (x >= wout) / rows (y >= hout) are cropped by the wrapper.
    # co outermost: one live accumulator, stored as soon as the channel is
    # done; bias is the accumulator's initial value.
    for co in range(cout):
        acc = jnp.full((bb, 1, hw), b_ref[co], jnp.float32)
        for c in range(cin):
            for r in range(kh):
                for s in range(kw):
                    d = r * img_w + s
                    widx = ((co * cin + c) * kh + r) * kw + s
                    acc = acc + w_ref[widx] * xs_ref[:, c:c + 1, d:d + hw]
        o_ref[:, co:co + 1, :] = acc.astype(o_ref.dtype)


def _conv2d_pallas(x_nchw, weight_oihw, bias):
    """x_nchw: (N, Cin, H, W); weight_oihw: (Cout, Cin, KH, KW); bias: (Cout,)."""
    n, cin, h, w = x_nchw.shape
    cout, _, kh, kw = weight_oihw.shape
    hout, wout = h - kh + 1, w - kw + 1
    hw = h * w

    # Scratch width: room for the largest flat-index tap shift, rounded up to
    # a lane-tile multiple so the tail zero-write is aligned.
    max_shift = (kh - 1) * w + (kw - 1)
    hw_pad = ((hw + max_shift + 127) // 128) * 128

    # Whole batch per grid step (N=2 -> a single step).  For very large N,
    # split into the largest divisor <= 128 so the batch axis becomes a
    # "parallel" grid (both TensorCores on v7x) with fat per-step work.
    if n <= 128:
        block_b = n
    else:
        block_b = max(d for d in range(1, 129) if n % d == 0)
    grid = (n // block_b,)

    # Layout plumbing only (fuses under the enclosing jit): flatten spatial,
    # flatten params.
    x_flat = x_nchw.reshape(n, cin, hw)
    w_flat = weight_oihw.reshape(-1)
    b_flat = bias.reshape(-1)

    kernel = functools.partial(conv2d_kernel, img_w=w, kh=kh, kw=kw)

    out_flat = pl.pallas_call(
        kernel,
        out_shape=jax.ShapeDtypeStruct((n, cout, hw), x_nchw.dtype),
        grid_spec=pltpu.PrefetchScalarGridSpec(
            num_scalar_prefetch=0,
            grid=grid,
            in_specs=[
                pl.BlockSpec((block_b, cin, hw), lambda b: (b, 0, 0)),
                pl.BlockSpec(memory_space=pltpu.MemorySpace.SMEM),
                pl.BlockSpec(memory_space=pltpu.MemorySpace.SMEM),
            ],
            out_specs=pl.BlockSpec((block_b, cout, hw), lambda b: (b, 0, 0)),
            scratch_shapes=[pltpu.VMEM((block_b, cin, hw_pad), x_nchw.dtype)],
        ),
        compiler_params=pltpu.CompilerParams(
            dimension_semantics=("parallel",)),
    )(x_flat, w_flat, b_flat)

    # Crop the valid region; the slab is already NCHW-ordered -> no transpose.
    # Fuses under jit with the surrounding graph.
    return out_flat.reshape(n, cout, h, w)[:, :, :hout, :wout]


# Always call through jit so the reshape/crop fuse instead of being
# standalone HBM round trips.
conv2d_pallas = jax.jit(_conv2d_pallas)


if __name__ == "__main__":
    key = jax.random.PRNGKey(0)
    kx, kw_key, kb_key = jax.random.split(key, 3)

    # Deterministic synthetic parameters (matches nn.Conv2d(3, 5, (3, 3)) shapes).
    n, h, w = 2, 16, 16
    x = jax.random.normal(kx, (n, CIN, h, w), dtype=jnp.float32)
    fan_in = CIN * KH * KW
    bound = 1.0 / (fan_in ** 0.5)
    weight = jax.random.uniform(kw_key, (COUT, CIN, KH, KW),
                                minval=-bound, maxval=bound, dtype=jnp.float32)
    bias = jax.random.uniform(kb_key, (COUT,), minval=-bound, maxval=bound,
                              dtype=jnp.float32)

    out = conv2d_pallas(x, weight, bias)
    out = jax.block_until_ready(out)

    # Reference check against XLA's conv (same semantics as torch Conv2d, valid padding).
    ref = jax.lax.conv_general_dilated(
        x, weight, window_strides=(1, 1), padding="VALID",
        dimension_numbers=("NCHW", "OIHW", "NCHW")) + bias[None, :, None, None]
    assert out.shape == (n, COUT, h - KH + 1, w - KW + 1)
    assert jnp.allclose(out, ref, atol=1e-4, rtol=1e-4)

    print("KERNEL_OK")
</pallas_src>

<mosaic_0001>
module attributes {stable_mosaic.version = 11 : i64} {
  func.func @conv2d_kernel(%arg0: i32, %arg1: memref<2x3x256xf32, #tpu.memory_space<vmem>>, %arg2: memref<135xf32, #tpu.memory_space<smem>>, %arg3: memref<5xf32, #tpu.memory_space<smem>>, %arg4: memref<2x5x256xf32, #tpu.memory_space<vmem>>, %arg5: memref<2x3x384xf32, #tpu.memory_space<vmem>>) attributes {dimension_semantics = [#tpu.dimension_semantics<parallel>], iteration_bounds = array<i64: 1>, scalar_prefetch = 0 : i64, scratch_operands = 1 : i64, tpu.core_type = #tpu.core_type<tc>, window_params = [{transform_indices = @transform_0, window_bounds = array<i64: 2, 3, 256>}, {transform_indices = @transform_1, window_bounds = array<i64: 135>}, {transform_indices = @transform_2, window_bounds = array<i64: 5>}, {transform_indices = @transform_3, window_bounds = array<i64: 2, 5, 256>}]} {
    %c0 = arith.constant 0 : index
    %c0_0 = arith.constant 0 : index
    %c0_1 = arith.constant 0 : index
    %0 = vector.load %arg1[%c0, %c0_0, %c0_1] : memref<2x3x256xf32, #tpu.memory_space<vmem>>, vector<2x3x256xf32>
    %c0_2 = arith.constant 0 : index
    %c0_3 = arith.constant 0 : index
    %c0_4 = arith.constant 0 : index
    %1 = vector.load %arg5[%c0_2, %c0_3, %c0_4] : memref<2x3x384xf32, #tpu.memory_space<vmem>>, vector<2x3x256xf32>
    tpu.vector_store %arg5[%c0_2, %c0_3, %c0_4], %0 {strides = array<i32>} : memref<2x3x384xf32, #tpu.memory_space<vmem>>, vector<2x3x256xf32>,
    %cst = arith.constant 0.000000e+00 : f32
    %2 = vector.broadcast %cst : f32 to vector<2x3x128xf32>
    %c0_5 = arith.constant 0 : index
    %c0_6 = arith.constant 0 : index
    %c256 = arith.constant 256 : index
    %3 = vector.load %arg5[%c0_5, %c0_6, %c256] : memref<2x3x384xf32, #tpu.memory_space<vmem>>, vector<2x3x128xf32>
    tpu.vector_store %arg5[%c0_5, %c0_6, %c256], %2 {strides = array<i32>} : memref<2x3x384xf32, #tpu.memory_space<vmem>>, vector<2x3x128xf32>,
    %c0_7 = arith.constant 0 : index
    %4 = memref.load %arg3[%c0_7] : memref<5xf32, #tpu.memory_space<smem>>
    %5 = vector.broadcast %4 : f32 to vector<2x1x256xf32>
    %c0_8 = arith.constant 0 : index
    %6 = memref.load %arg2[%c0_8] : memref<135xf32, #tpu.memory_space<smem>>
    %c0_9 = arith.constant 0 : index
    %c0_10 = arith.constant 0 : index
    %c0_11 = arith.constant 0 : index
    %7 = vector.load %arg5[%c0_9, %c0_10, %c0_11] : memref<2x3x384xf32, #tpu.memory_space<vmem>>, vector<2x1x256xf32>
    %8 = vector.broadcast %6 : f32 to vector<2x1x256xf32>
    %9 = arith.mulf %8, %7 : vector<2x1x256xf32>
    %10 = arith.addf %5, %9 : vector<2x1x256xf32>
    %c1 = arith.constant 1 : index
    %11 = memref.load %arg2[%c1] : memref<135xf32, #tpu.memory_space<smem>>
    %c0_12 = arith.constant 0 : index
    %c0_13 = arith.constant 0 : index
    %c1_14 = arith.constant 1 : index
    %12 = vector.load %arg5[%c0_12, %c0_13, %c1_14] : memref<2x3x384xf32, #tpu.memory_space<vmem>>, vector<2x1x256xf32>
    %13 = vector.broadcast %11 : f32 to vector<2x1x256xf32>
    %14 = arith.mulf %13, %12 : vector<2x1x256xf32>
    %15 = arith.addf %10, %14 : vector<2x1x256xf32>
    %c2 = arith.constant 2 : index
    %16 = memref.load %arg2[%c2] : memref<135xf32, #tpu.memory_space<smem>>
    %c0_15 = arith.constant 0 : index
    %c0_16 = arith.constant 0 : index
    %c2_17 = arith.constant 2 : index
    %17 = vector.load %arg5[%c0_15, %c0_16, %c2_17] : memref<2x3x384xf32, #tpu.memory_space<vmem>>, vector<2x1x256xf32>
    %18 = vector.broadcast %16 : f32 to vector<2x1x256xf32>
    %19 = arith.mulf %18, %17 : vector<2x1x256xf32>
    %20 = arith.addf %15, %19 : vector<2x1x256xf32>
    %c3 = arith.constant 3 : index
    %21 = memref.load %arg2[%c3] : memref<135xf32, #tpu.memory_space<smem>>
    %c0_18 = arith.constant 0 : index
    %c0_19 = arith.constant 0 : index
    %c16 = arith.constant 16 : index
    %22 = vector.load %arg5[%c0_18, %c0_19, %c16] : memref<2x3x384xf32, #tpu.memory_space<vmem>>, vector<2x1x256xf32>
    %23 = vector.broadcast %21 : f32 to vector<2x1x256xf32>
    %24 = arith.mulf %23, %22 : vector<2x1x256xf32>
    %25 = arith.addf %20, %24 : vector<2x1x256xf32>
    %c4 = arith.constant 4 : index
    %26 = memref.load %arg2[%c4] : memref<135xf32, #tpu.memory_space<smem>>
    %c0_20 = arith.constant 0 : index
    %c0_21 = arith.constant 0 : index
    %c17 = arith.constant 17 : index
    %27 = vector.load %arg5[%c0_20, %c0_21, %c17] : memref<2x3x384xf32, #tpu.memory_space<vmem>>, vector<2x1x256xf32>
    %28 = vector.broadcast %26 : f32 to vector<2x1x256xf32>
    %29 = arith.mulf %28, %27 : vector<2x1x256xf32>
    %30 = arith.addf %25, %29 : vector<2x1x256xf32>
    %c5 = arith.constant 5 : index
    %31 = memref.load %arg2[%c5] : memref<135xf32, #tpu.memory_space<smem>>
    %c0_22 = arith.constant 0 : index
    %c0_23 = arith.constant 0 : index
    %c18 = arith.constant 18 : index
    %32 = vector.load %arg5[%c0_22, %c0_23, %c18] : memref<2x3x384xf32, #tpu.memory_space<vmem>>, vector<2x1x256xf32>
    %33 = vector.broadcast %31 : f32 to vector<2x1x256xf32>
    %34 = arith.mulf %33, %32 : vector<2x1x256xf32>
    %35 = arith.addf %30, %34 : vector<2x1x256xf32>
    %c6 = arith.constant 6 : index
    %36 = memref.load %arg2[%c6] : memref<135xf32, #tpu.memory_space<smem>>
    %c0_24 = arith.constant 0 : index
    %c0_25 = arith.constant 0 : index
    %c32 = arith.constant 32 : index
    %37 = vector.load %arg5[%c0_24, %c0_25, %c32] : memref<2x3x384xf32, #tpu.memory_space<vmem>>, vector<2x1x256xf32>
    %38 = vector.broadcast %36 : f32 to vector<2x1x256xf32>
    %39 = arith.mulf %38, %37 : vector<2x1x256xf32>
    %40 = arith.addf %35, %39 : vector<2x1x256xf32>
    %c7 = arith.constant 7 : index
    %41 = memref.load %arg2[%c7] : memref<135xf32, #tpu.memory_space<smem>>
    %c0_26 = arith.constant 0 : index
    %c0_27 = arith.constant 0 : index
    %c33 = arith.constant 33 : index
    %42 = vector.load %arg5[%c0_26, %c0_27, %c33] : memref<2x3x384xf32, #tpu.memory_space<vmem>>, vector<2x1x256xf32>
    %43 = vector.broadcast %41 : f32 to vector<2x1x256xf32>
    %44 = arith.mulf %43, %42 : vector<2x1x256xf32>
    %45 = arith.addf %40, %44 : vector<2x1x256xf32>
    %c8 = arith.constant 8 : index
    %46 = memref.load %arg2[%c8] : memref<135xf32, #tpu.memory_space<smem>>
    %c0_28 = arith.constant 0 : index
    %c0_29 = arith.constant 0 : index
    %c34 = arith.constant 34 : index
    %47 = vector.load %arg5[%c0_28, %c0_29, %c34] : memref<2x3x384xf32, #tpu.memory_space<vmem>>, vector<2x1x256xf32>
    %48 = vector.broadcast %46 : f32 to vector<2x1x256xf32>
    %49 = arith.mulf %48, %47 : vector<2x1x256xf32>
    %50 = arith.addf %45, %49 : vector<2x1x256xf32>
    %c9 = arith.constant 9 : index
    %51 = memref.load %arg2[%c9] : memref<135xf32, #tpu.memory_space<smem>>
    %c0_30 = arith.constant 0 : index
    %c1_31 = arith.constant 1 : index
    %c0_32 = arith.constant 0 : index
    %52 = vector.load %arg5[%c0_30, %c1_31, %c0_32] : memref<2x3x384xf32, #tpu.memory_space<vmem>>, vector<2x1x256xf32>
    %53 = vector.broadcast %51 : f32 to vector<2x1x256xf32>
    %54 = arith.mulf %53, %52 : vector<2x1x256xf32>
    %55 = arith.addf %50, %54 : vector<2x1x256xf32>
    %c10 = arith.constant 10 : index
    %56 = memref.load %arg2[%c10] : memref<135xf32, #tpu.memory_space<smem>>
    %c0_33 = arith.constant 0 : index
    %c1_34 = arith.constant 1 : index
    %c1_35 = arith.constant 1 : index
    %57 = vector.load %arg5[%c0_33, %c1_34, %c1_35] : memref<2x3x384xf32, #tpu.memory_space<vmem>>, vector<2x1x256xf32>
    %58 = vector.broadcast %56 : f32 to vector<2x1x256xf32>
    %59 = arith.mulf %58, %57 : vector<2x1x256xf32>
    %60 = arith.addf %55, %59 : vector<2x1x256xf32>
    %c11 = arith.constant 11 : index
    %61 = memref.load %arg2[%c11] : memref<135xf32, #tpu.memory_space<smem>>
    %c0_36 = arith.constant 0 : index
    %c1_37 = arith.constant 1 : index
    %c2_38 = arith.constant 2 : index
    %62 = vector.load %arg5[%c0_36, %c1_37, %c2_38] : memref<2x3x384xf32, #tpu.memory_space<vmem>>, vector<2x1x256xf32>
    %63 = vector.broadcast %61 : f32 to vector<2x1x256xf32>
    %64 = arith.mulf %63, %62 : vector<2x1x256xf32>
    %65 = arith.addf %60, %64 : vector<2x1x256xf32>
    %c12 = arith.constant 12 : index
    %66 = memref.load %arg2[%c12] : memref<135xf32, #tpu.memory_space<smem>>
    %c0_39 = arith.constant 0 : index
    %c1_40 = arith.constant 1 : index
    %c16_41 = arith.constant 16 : index
    %67 = vector.load %arg5[%c0_39, %c1_40, %c16_41] : memref<2x3x384xf32, #tpu.memory_space<vmem>>, vector<2x1x256xf32>
    %68 = vector.broadcast %66 : f32 to vector<2x1x256xf32>
    %69 = arith.mulf %68, %67 : vector<2x1x256xf32>
    %70 = arith.addf %65, %69 : vector<2x1x256xf32>
    %c13 = arith.constant 13 : index
    %71 = memref.load %arg2[%c13] : memref<135xf32, #tpu.memory_space<smem>>
    %c0_42 = arith.constant 0 : index
    %c1_43 = arith.constant 1 : index
    %c17_44 = arith.constant 17 : index
    %72 = vector.load %arg5[%c0_42, %c1_43, %c17_44] : memref<2x3x384xf32, #tpu.memory_space<vmem>>, vector<2x1x256xf32>
    %73 = vector.broadcast %71 : f32 to vector<2x1x256xf32>
    %74 = arith.mulf %73, %72 : vector<2x1x256xf32>
    %75 = arith.addf %70, %74 : vector<2x1x256xf32>
    %c14 = arith.constant 14 : index
    %76 = memref.load %arg2[%c14] : memref<135xf32, #tpu.memory_space<smem>>
    %c0_45 = arith.constant 0 : index
    %c1_46 = arith.constant 1 : index
    %c18_47 = arith.constant 18 : index
    %77 = vector.load %arg5[%c0_45, %c1_46, %c18_47] : memref<2x3x384xf32, #tpu.memory_space<vmem>>, vector<2x1x256xf32>
    %78 = vector.broadcast %76 : f32 to vector<2x1x256xf32>
    %79 = arith.mulf %78, %77 : vector<2x1x256xf32>
    %80 = arith.addf %75, %79 : vector<2x1x256xf32>
    %c15 = arith.constant 15 : index
    %81 = memref.load %arg2[%c15] : memref<135xf32, #tpu.memory_space<smem>>
    %c0_48 = arith.constant 0 : index
    %c1_49 = arith.constant 1 : index
    %c32_50 = arith.constant 32 : index
    %82 = vector.load %arg5[%c0_48, %c1_49, %c32_50] : memref<2x3x384xf32, #tpu.memory_space<vmem>>, vector<2x1x256xf32>
    %83 = vector.broadcast %81 : f32 to vector<2x1x256xf32>
    %84 = arith.mulf %83, %82 : vector<2x1x256xf32>
    %85 = arith.addf %80, %84 : vector<2x1x256xf32>
    %c16_51 = arith.constant 16 : index
    %86 = memref.load %arg2[%c16_51] : memref<135xf32, #tpu.memory_space<smem>>
    %c0_52 = arith.constant 0 : index
    %c1_53 = arith.constant 1 : index
    %c33_54 = arith.constant 33 : index
    %87 = vector.load %arg5[%c0_52, %c1_53, %c33_54] : memref<2x3x384xf32, #tpu.memory_space<vmem>>, vector<2x1x256xf32>
    %88 = vector.broadcast %86 : f32 to vector<2x1x256xf32>
    %89 = arith.mulf %88, %87 : vector<2x1x256xf32>
    %90 = arith.addf %85, %89 : vector<2x1x256xf32>
    %c17_55 = arith.constant 17 : index
    %91 = memref.load %arg2[%c17_55] : memref<135xf32, #tpu.memory_space<smem>>
    %c0_56 = arith.constant 0 : index
    %c1_57 = arith.constant 1 : index
    %c34_58 = arith.constant 34 : index
    %92 = vector.load %arg5[%c0_56, %c1_57, %c34_58] : memref<2x3x384xf32, #tpu.memory_space<vmem>>, vector<2x1x256xf32>
    %93 = vector.broadcast %91 : f32 to vector<2x1x256xf32>
    %94 = arith.mulf %93, %92 : vector<2x1x256xf32>
    %95 = arith.addf %90, %94 : vector<2x1x256xf32>
    %c18_59 = arith.constant 18 : index
    %96 = memref.load %arg2[%c18_59] : memref<135xf32, #tpu.memory_space<smem>>
    %c0_60 = arith.constant 0 : index
    %c2_61 = arith.constant 2 : index
    %c0_62 = arith.constant 0 : index
    %97 = vector.load %arg5[%c0_60, %c2_61, %c0_62] : memref<2x3x384xf32, #tpu.memory_space<vmem>>, vector<2x1x256xf32>
    %98 = vector.broadcast %96 : f32 to vector<2x1x256xf32>
    %99 = arith.mulf %98, %97 : vector<2x1x256xf32>
    %100 = arith.addf %95, %99 : vector<2x1x256xf32>
    %c19 = arith.constant 19 : index
    %101 = memref.load %arg2[%c19] : memref<135xf32, #tpu.memory_space<smem>>
    %c0_63 = arith.constant 0 : index
    %c2_64 = arith.constant 2 : index
    %c1_65 = arith.constant 1 : index
    %102 = vector.load %arg5[%c0_63, %c2_64, %c1_65] : memref<2x3x384xf32, #tpu.memory_space<vmem>>, vector<2x1x256xf32>
    %103 = vector.broadcast %101 : f32 to vector<2x1x256xf32>
    %104 = arith.mulf %103, %102 : vector<2x1x256xf32>
    %105 = arith.addf %100, %104 : vector<2x1x256xf32>
    %c20 = arith.constant 20 : index
    %106 = memref.load %arg2[%c20] : memref<135xf32, #tpu.memory_space<smem>>
    %c0_66 = arith.constant 0 : index
    %c2_67 = arith.constant 2 : index
    %c2_68 = arith.constant 2 : index
    %107 = vector.load %arg5[%c0_66, %c2_67, %c2_68] : memref<2x3x384xf32, #tpu.memory_space<vmem>>, vector<2x1x256xf32>
    %108 = vector.broadcast %106 : f32 to vector<2x1x256xf32>
    %109 = arith.mulf %108, %107 : vector<2x1x256xf32>
    %110 = arith.addf %105, %109 : vector<2x1x256xf32>
    %c21 = arith.constant 21 : index
    %111 = memref.load %arg2[%c21] : memref<135xf32, #tpu.memory_space<smem>>
    %c0_69 = arith.constant 0 : index
    %c2_70 = arith.constant 2 : index
    %c16_71 = arith.constant 16 : index
    %112 = vector.load %arg5[%c0_69, %c2_70, %c16_71] : memref<2x3x384xf32, #tpu.memory_space<vmem>>, vector<2x1x256xf32>
    %113 = vector.broadcast %111 : f32 to vector<2x1x256xf32>
    %114 = arith.mulf %113, %112 : vector<2x1x256xf32>
    %115 = arith.addf %110, %114 : vector<2x1x256xf32>
    %c22 = arith.constant 22 : index
    %116 = memref.load %arg2[%c22] : memref<135xf32, #tpu.memory_space<smem>>
    %c0_72 = arith.constant 0 : index
    %c2_73 = arith.constant 2 : index
    %c17_74 = arith.constant 17 : index
    %117 = vector.load %arg5[%c0_72, %c2_73, %c17_74] : memref<2x3x384xf32, #tpu.memory_space<vmem>>, vector<2x1x256xf32>
    %118 = vector.broadcast %116 : f32 to vector<2x1x256xf32>
    %119 = arith.mulf %118, %117 : vector<2x1x256xf32>
    %120 = arith.addf %115, %119 : vector<2x1x256xf32>
    %c23 = arith.constant 23 : index
    %121 = memref.load %arg2[%c23] : memref<135xf32, #tpu.memory_space<smem>>
    %c0_75 = arith.constant 0 : index
    %c2_76 = arith.constant 2 : index
    %c18_77 = arith.constant 18 : index
    %122 = vector.load %arg5[%c0_75, %c2_76, %c18_77] : memref<2x3x384xf32, #tpu.memory_space<vmem>>, vector<2x1x256xf32>
    %123 = vector.broadcast %121 : f32 to vector<2x1x256xf32>
    %124 = arith.mulf %123, %122 : vector<2x1x256xf32>
    %125 = arith.addf %120, %124 : vector<2x1x256xf32>
    %c24 = arith.constant 24 : index
    %126 = memref.load %arg2[%c24] : memref<135xf32, #tpu.memory_space<smem>>
    %c0_78 = arith.constant 0 : index
    %c2_79 = arith.constant 2 : index
    %c32_80 = arith.constant 32 : index
    %127 = vector.load %arg5[%c0_78, %c2_79, %c32_80] : memref<2x3x384xf32, #tpu.memory_space<vmem>>, vector<2x1x256xf32>
    %128 = vector.broadcast %126 : f32 to vector<2x1x256xf32>
    %129 = arith.mulf %128, %127 : vector<2x1x256xf32>
    %130 = arith.addf %125, %129 : vector<2x1x256xf32>
    %c25 = arith.constant 25 : index
    %131 = memref.load %arg2[%c25] : memref<135xf32, #tpu.memory_space<smem>>
    %c0_81 = arith.constant 0 : index
    %c2_82 = arith.constant 2 : index
    %c33_83 = arith.constant 33 : index
    %132 = vector.load %arg5[%c0_81, %c2_82, %c33_83] : memref<2x3x384xf32, #tpu.memory_space<vmem>>, vector<2x1x256xf32>
    %133 = vector.broadcast %131 : f32 to vector<2x1x256xf32>
    %134 = arith.mulf %133, %132 : vector<2x1x256xf32>
    %135 = arith.addf %130, %134 : vector<2x1x256xf32>
    %c26 = arith.constant 26 : index
    %136 = memref.load %arg2[%c26] : memref<135xf32, #tpu.memory_space<smem>>
    %c0_84 = arith.constant 0 : index
    %c2_85 = arith.constant 2 : index
    %c34_86 = arith.constant 34 : index
    %137 = vector.load %arg5[%c0_84, %c2_85, %c34_86] : memref<2x3x384xf32, #tpu.memory_space<vmem>>, vector<2x1x256xf32>
    %138 = vector.broadcast %136 : f32 to vector<2x1x256xf32>
    %139 = arith.mulf %138, %137 : vector<2x1x256xf32>
    %140 = arith.addf %135, %139 : vector<2x1x256xf32>
    %c0_87 = arith.constant 0 : index
    %c0_88 = arith.constant 0 : index
    %c0_89 = arith.constant 0 : index
    %141 = vector.load %arg4[%c0_87, %c0_88, %c0_89] : memref<2x5x256xf32, #tpu.memory_space<vmem>>, vector<2x1x256xf32>
    tpu.vector_store %arg4[%c0_87, %c0_88, %c0_89], %140 {strides = array<i32>} : memref<2x5x256xf32, #tpu.memory_space<vmem>>, vector<2x1x256xf32>,
    %c1_90 = arith.constant 1 : index
    %142 = memref.load %arg3[%c1_90] : memref<5xf32, #tpu.memory_space<smem>>
    %143 = vector.broadcast %142 : f32 to vector<2x1x256xf32>
    %c27 = arith.constant 27 : index
    %144 = memref.load %arg2[%c27] : memref<135xf32, #tpu.memory_space<smem>>
    %c0_91 = arith.constant 0 : index
    %c0_92 = arith.constant 0 : index
    %c0_93 = arith.constant 0 : index
    %145 = vector.load %arg5[%c0_91, %c0_92, %c0_93] : memref<2x3x384xf32, #tpu.memory_space<vmem>>, vector<2x1x256xf32>
    %146 = vector.broadcast %144 : f32 to vector<2x1x256xf32>
    %147 = arith.mulf %146, %145 : vector<2x1x256xf32>
    %148 = arith.addf %143, %147 : vector<2x1x256xf32>
    %c28 = arith.constant 28 : index
    %149 = memref.load %arg2[%c28] : memref<135xf32, #tpu.memory_space<smem>>
    %c0_94 = arith.constant 0 : index
    %c0_95 = arith.constant 0 : index
    %c1_96 = arith.constant 1 : index
    %150 = vector.load %arg5[%c0_94, %c0_95, %c1_96] : memref<2x3x384xf32, #tpu.memory_space<vmem>>, vector<2x1x256xf32>
    %151 = vector.broadcast %149 : f32 to vector<2x1x256xf32>
    %152 = arith.mulf %151, %150 : vector<2x1x256xf32>
    %153 = arith.addf %148, %152 : vector<2x1x256xf32>
    %c29 = arith.constant 29 : index
    %154 = memref.load %arg2[%c29] : memref<135xf32, #tpu.memory_space<smem>>
    %c0_97 = arith.constant 0 : index
    %c0_98 = arith.constant 0 : index
    %c2_99 = arith.constant 2 : index
    %155 = vector.load %arg5[%c0_97, %c0_98, %c2_99] : memref<2x3x384xf32, #tpu.memory_space<vmem>>, vector<2x1x256xf32>
    %156 = vector.broadcast %154 : f32 to vector<2x1x256xf32>
    %157 = arith.mulf %156, %155 : vector<2x1x256xf32>
    %158 = arith.addf %153, %157 : vector<2x1x256xf32>
    %c30 = arith.constant 30 : index
    %159 = memref.load %arg2[%c30] : memref<135xf32, #tpu.memory_space<smem>>
    %c0_100 = arith.constant 0 : index
    %c0_101 = arith.constant 0 : index
    %c16_102 = arith.constant 16 : index
    %160 = vector.load %arg5[%c0_100, %c0_101, %c16_102] : memref<2x3x384xf32, #tpu.memory_space<vmem>>, vector<2x1x256xf32>
    %161 = vector.broadcast %159 : f32 to vector<2x1x256xf32>
    %162 = arith.mulf %161, %160 : vector<2x1x256xf32>
    %163 = arith.addf %158, %162 : vector<2x1x256xf32>
    %c31 = arith.constant 31 : index
    %164 = memref.load %arg2[%c31] : memref<135xf32, #tpu.memory_space<smem>>
    %c0_103 = arith.constant 0 : index
    %c0_104 = arith.constant 0 : index
    %c17_105 = arith.constant 17 : index
    %165 = vector.load %arg5[%c0_103, %c0_104, %c17_105] : memref<2x3x384xf32, #tpu.memory_space<vmem>>, vector<2x1x256xf32>
    %166 = vector.broadcast %164 : f32 to vector<2x1x256xf32>
    %167 = arith.mulf %166, %165 : vector<2x1x256xf32>
    %168 = arith.addf %163, %167 : vector<2x1x256xf32>
    %c32_106 = arith.constant 32 : index
    %169 = memref.load %arg2[%c32_106] : memref<135xf32, #tpu.memory_space<smem>>
    %c0_107 = arith.constant 0 : index
    %c0_108 = arith.constant 0 : index
    %c18_109 = arith.constant 18 : index
    %170 = vector.load %arg5[%c0_107, %c0_108, %c18_109] : memref<2x3x384xf32, #tpu.memory_space<vmem>>, vector<2x1x256xf32>
    %171 = vector.broadcast %169 : f32 to vector<2x1x256xf32>
    %172 = arith.mulf %171, %170 : vector<2x1x256xf32>
    %173 = arith.addf %168, %172 : vector<2x1x256xf32>
    %c33_110 = arith.constant 33 : index
    %174 = memref.load %arg2[%c33_110] : memref<135xf32, #tpu.memory_space<smem>>
    %c0_111 = arith.constant 0 : index
    %c0_112 = arith.constant 0 : index
    %c32_113 = arith.constant 32 : index
    %175 = vector.load %arg5[%c0_111, %c0_112, %c32_113] : memref<2x3x384xf32, #tpu.memory_space<vmem>>, vector<2x1x256xf32>
    %176 = vector.broadcast %174 : f32 to vector<2x1x256xf32>
    %177 = arith.mulf %176, %175 : vector<2x1x256xf32>
    %178 = arith.addf %173, %177 : vector<2x1x256xf32>
    %c34_114 = arith.constant 34 : index
    %179 = memref.load %arg2[%c34_114] : memref<135xf32, #tpu.memory_space<smem>>
    %c0_115 = arith.constant 0 : index
    %c0_116 = arith.constant 0 : index
    %c33_117 = arith.constant 33 : index
    %180 = vector.load %arg5[%c0_115, %c0_116, %c33_117] : memref<2x3x384xf32, #tpu.memory_space<vmem>>, vector<2x1x256xf32>
    %181 = vector.broadcast %179 : f32 to vector<2x1x256xf32>
    %182 = arith.mulf %181, %180 : vector<2x1x256xf32>
    %183 = arith.addf %178, %182 : vector<2x1x256xf32>
    %c35 = arith.constant 35 : index
    %184 = memref.load %arg2[%c35] : memref<135xf32, #tpu.memory_space<smem>>
    %c0_118 = arith.constant 0 : index
    %c0_119 = arith.constant 0 : index
    %c34_120 = arith.constant 34 : index
    %185 = vector.load %arg5[%c0_118, %c0_119, %c34_120] : memref<2x3x384xf32, #tpu.memory_space<vmem>>, vector<2x1x256xf32>
    %186 = vector.broadcast %184 : f32 to vector<2x1x256xf32>
    %187 = arith.mulf %186, %185 : vector<2x1x256xf32>
    %188 = arith.addf %183, %187 : vector<2x1x256xf32>
    %c36 = arith.constant 36 : index
    %189 = memref.load %arg2[%c36] : memref<135xf32, #tpu.memory_space<smem>>
    %c0_121 = arith.constant 0 : index
    %c1_122 = arith.constant 1 : index
    %c0_123 = arith.constant 0 : index
    %190 = vector.load %arg5[%c0_121, %c1_122, %c0_123] : memref<2x3x384xf32, #tpu.memory_space<vmem>>, vector<2x1x256xf32>
    %191 = vector.broadcast %189 : f32 to vector<2x1x256xf32>
    %192 = arith.mulf %191, %190 : vector<2x1x256xf32>
    %193 = arith.addf %188, %192 : vector<2x1x256xf32>
    %c37 = arith.constant 37 : index
    %194 = memref.load %arg2[%c37] : memref<135xf32, #tpu.memory_space<smem>>
    %c0_124 = arith.constant 0 : index
    %c1_125 = arith.constant 1 : index
    %c1_126 = arith.constant 1 : index
    %195 = vector.load %arg5[%c0_124, %c1_125, %c1_126] : memref<2x3x384xf32, #tpu.memory_space<vmem>>, vector<2x1x256xf32>
    %196 = vector.broadcast %194 : f32 to vector<2x1x256xf32>
    %197 = arith.mulf %196, %195 : vector<2x1x256xf32>
    %198 = arith.addf %193, %197 : vector<2x1x256xf32>
    %c38 = arith.constant 38 : index
    %199 = memref.load %arg2[%c38] : memref<135xf32, #tpu.memory_space<smem>>
    %c0_127 = arith.constant 0 : index
    %c1_128 = arith.constant 1 : index
    %c2_129 = arith.constant 2 : index
    %200 = vector.load %arg5[%c0_127, %c1_128, %c2_129] : memref<2x3x384xf32, #tpu.memory_space<vmem>>, vector<2x1x256xf32>
    %201 = vector.broadcast %199 : f32 to vector<2x1x256xf32>
    %202 = arith.mulf %201, %200 : vector<2x1x256xf32>
    %203 = arith.addf %198, %202 : vector<2x1x256xf32>
    %c39 = arith.constant 39 : index
    %204 = memref.load %arg2[%c39] : memref<135xf32, #tpu.memory_space<smem>>
    %c0_130 = arith.constant 0 : index
    %c1_131 = arith.constant 1 : index
    %c16_132 = arith.constant 16 : index
    %205 = vector.load %arg5[%c0_130, %c1_131, %c16_132] : memref<2x3x384xf32, #tpu.memory_space<vmem>>, vector<2x1x256xf32>
    %206 = vector.broadcast %204 : f32 to vector<2x1x256xf32>
    %207 = arith.mulf %206, %205 : vector<2x1x256xf32>
    %208 = arith.addf %203, %207 : vector<2x1x256xf32>
    %c40 = arith.constant 40 : index
    %209 = memref.load %arg2[%c40] : memref<135xf32, #tpu.memory_space<smem>>
    %c0_133 = arith.constant 0 : index
    %c1_134 = arith.constant 1 : index
    %c17_135 = arith.constant 17 : index
    %210 = vector.load %arg5[%c0_133, %c1_134, %c17_135] : memref<2x3x384xf32, #tpu.memory_space<vmem>>, vector<2x1x256xf32>
    %211 = vector.broadcast %209 : f32 to vector<2x1x256xf32>
    %212 = arith.mulf %211, %210 : vector<2x1x256xf32>
    %213 = arith.addf %208, %212 : vector<2x1x256xf32>
    %c41 = arith.constant 41 : index
    %214 = memref.load %arg2[%c41] : memref<135xf32, #tpu.memory_space<smem>>
    %c0_136 = arith.constant 0 : index
    %c1_137 = arith.constant 1 : index
    %c18_138 = arith.constant 18 : index
    %215 = vector.load %arg5[%c0_136, %c1_137, %c18_138] : memref<2x3x384xf32, #tpu.memory_space<vmem>>, vector<2x1x256xf32>
    %216 = vector.broadcast %214 : f32 to vector<2x1x256xf32>
    %217 = arith.mulf %216, %215 : vector<2x1x256xf32>
    %218 = arith.addf %213, %217 : vector<2x1x256xf32>
    %c42 = arith.constant 42 : index
    %219 = memref.load %arg2[%c42] : memref<135xf32, #tpu.memory_space<smem>>
    %c0_139 = arith.constant 0 : index
    %c1_140 = arith.constant 1 : index
    %c32_141 = arith.constant 32 : index
    %220 = vector.load %arg5[%c0_139, %c1_140, %c32_141] : memref<2x3x384xf32, #tpu.memory_space<vmem>>, vector<2x1x256xf32>
    %221 = vector.broadcast %219 : f32 to vector<2x1x256xf32>
    %222 = arith.mulf %221, %220 : vector<2x1x256xf32>
    %223 = arith.addf %218, %222 : vector<2x1x256xf32>
    %c43 = arith.constant 43 : index
    %224 = memref.load %arg2[%c43] : memref<135xf32, #tpu.memory_space<smem>>
    %c0_142 = arith.constant 0 : index
    %c1_143 = arith.constant 1 : index
    %c33_144 = arith.constant 33 : index
    %225 = vector.load %arg5[%c0_142, %c1_143, %c33_144] : memref<2x3x384xf32, #tpu.memory_space<vmem>>, vector<2x1x256xf32>
    %226 = vector.broadcast %224 : f32 to vector<2x1x256xf32>
    %227 = arith.mulf %226, %225 : vector<2x1x256xf32>
    %228 = arith.addf %223, %227 : vector<2x1x256xf32>
    %c44 = arith.constant 44 : index
    %229 = memref.load %arg2[%c44] : memref<135xf32, #tpu.memory_space<smem>>
    %c0_145 = arith.constant 0 : index
    %c1_146 = arith.constant 1 : index
    %c34_147 = arith.constant 34 : index
    %230 = vector.load %arg5[%c0_145, %c1_146, %c34_147] : memref<2x3x384xf32, #tpu.memory_space<vmem>>, vector<2x1x256xf32>
    %231 = vector.broadcast %229 : f32 to vector<2x1x256xf32>
    %232 = arith.mulf %231, %230 : vector<2x1x256xf32>
    %233 = arith.addf %228, %232 : vector<2x1x256xf32>
    %c45 = arith.constant 45 : index
    %234 = memref.load %arg2[%c45] : memref<135xf32, #tpu.memory_space<smem>>
    %c0_148 = arith.constant 0 : index
    %c2_149 = arith.constant 2 : index
    %c0_150 = arith.constant 0 : index
    %235 = vector.load %arg5[%c0_148, %c2_149, %c0_150] : memref<2x3x384xf32, #tpu.memory_space<vmem>>, vector<2x1x256xf32>
    %236 = vector.broadcast %234 : f32 to vector<2x1x256xf32>
    %237 = arith.mulf %236, %235 : vector<2x1x256xf32>
    %238 = arith.addf %233, %237 : vector<2x1x256xf32>
    %c46 = arith.constant 46 : index
    %239 = memref.load %arg2[%c46] : memref<135xf32, #tpu.memory_space<smem>>
    %c0_151 = arith.constant 0 : index
    %c2_152 = arith.constant 2 : index
    %c1_153 = arith.constant 1 : index
    %240 = vector.load %arg5[%c0_151, %c2_152, %c1_153] : memref<2x3x384xf32, #tpu.memory_space<vmem>>, vector<2x1x256xf32>
    %241 = vector.broadcast %239 : f32 to vector<2x1x256xf32>
    %242 = arith.mulf %241, %240 : vector<2x1x256xf32>
    %243 = arith.addf %238, %242 : vector<2x1x256xf32>
    %c47 = arith.constant 47 : index
    %244 = memref.load %arg2[%c47] : memref<135xf32, #tpu.memory_space<smem>>
    %c0_154 = arith.constant 0 : index
    %c2_155 = arith.constant 2 : index
    %c2_156 = arith.constant 2 : index
    %245 = vector.load %arg5[%c0_154, %c2_155, %c2_156] : memref<2x3x384xf32, #tpu.memory_space<vmem>>, vector<2x1x256xf32>
    %246 = vector.broadcast %244 : f32 to vector<2x1x256xf32>
    %247 = arith.mulf %246, %245 : vector<2x1x256xf32>
    %248 = arith.addf %243, %247 : vector<2x1x256xf32>
    %c48 = arith.constant 48 : index
    %249 = memref.load %arg2[%c48] : memref<135xf32, #tpu.memory_space<smem>>
    %c0_157 = arith.constant 0 : index
    %c2_158 = arith.constant 2 : index
    %c16_159 = arith.constant 16 : index
    %250 = vector.load %arg5[%c0_157, %c2_158, %c16_159] : memref<2x3x384xf32, #tpu.memory_space<vmem>>, vector<2x1x256xf32>
    %251 = vector.broadcast %249 : f32 to vector<2x1x256xf32>
    %252 = arith.mulf %251, %250 : vector<2x1x256xf32>
    %253 = arith.addf %248, %252 : vector<2x1x256xf32>
    %c49 = arith.constant 49 : index
    %254 = memref.load %arg2[%c49] : memref<135xf32, #tpu.memory_space<smem>>
    %c0_160 = arith.constant 0 : index
    %c2_161 = arith.constant 2 : index
    %c17_162 = arith.constant 17 : index
    %255 = vector.load %arg5[%c0_160, %c2_161, %c17_162] : memref<2x3x384xf32, #tpu.memory_space<vmem>>, vector<2x1x256xf32>
    %256 = vector.broadcast %254 : f32 to vector<2x1x256xf32>
    %257 = arith.mulf %256, %255 : vector<2x1x256xf32>
    %258 = arith.addf %253, %257 : vector<2x1x256xf32>
    %c50 = arith.constant 50 : index
    %259 = memref.load %arg2[%c50] : memref<135xf32, #tpu.memory_space<smem>>
    %c0_163 = arith.constant 0 : index
    %c2_164 = arith.constant 2 : index
    %c18_165 = arith.constant 18 : index
    %260 = vector.load %arg5[%c0_163, %c2_164, %c18_165] : memref<2x3x384xf32, #tpu.memory_space<vmem>>, vector<2x1x256xf32>
    %261 = vector.broadcast %259 : f32 to vector<2x1x256xf32>
    %262 = arith.mulf %261, %260 : vector<2x1x256xf32>
    %263 = arith.addf %258, %262 : vector<2x1x256xf32>
    %c51 = arith.constant 51 : index
    %264 = memref.load %arg2[%c51] : memref<135xf32, #tpu.memory_space<smem>>
    %c0_166 = arith.constant 0 : index
    %c2_167 = arith.constant 2 : index
    %c32_168 = arith.constant 32 : index
    %265 = vector.load %arg5[%c0_166, %c2_167, %c32_168] : memref<2x3x384xf32, #tpu.memory_space<vmem>>, vector<2x1x256xf32>
    %266 = vector.broadcast %264 : f32 to vector<2x1x256xf32>
    %267 = arith.mulf %266, %265 : vector<2x1x256xf32>
    %268 = arith.addf %263, %267 : vector<2x1x256xf32>
    %c52 = arith.constant 52 : index
    %269 = memref.load %arg2[%c52] : memref<135xf32, #tpu.memory_space<smem>>
    %c0_169 = arith.constant 0 : index
    %c2_170 = arith.constant 2 : index
    %c33_171 = arith.constant 33 : index
    %270 = vector.load %arg5[%c0_169, %c2_170, %c33_171] : memref<2x3x384xf32, #tpu.memory_space<vmem>>, vector<2x1x256xf32>
    %271 = vector.broadcast %269 : f32 to vector<2x1x256xf32>
    %272 = arith.mulf %271, %270 : vector<2x1x256xf32>
    %273 = arith.addf %268, %272 : vector<2x1x256xf32>
    %c53 = arith.constant 53 : index
    %274 = memref.load %arg2[%c53] : memref<135xf32, #tpu.memory_space<smem>>
    %c0_172 = arith.constant 0 : index
    %c2_173 = arith.constant 2 : index
    %c34_174 = arith.constant 34 : index
    %275 = vector.load %arg5[%c0_172, %c2_173, %c34_174] : memref<2x3x384xf32, #tpu.memory_space<vmem>>, vector<2x1x256xf32>
    %276 = vector.broadcast %274 : f32 to vector<2x1x256xf32>
    %277 = arith.mulf %276, %275 : vector<2x1x256xf32>
    %278 = arith.addf %273, %277 : vector<2x1x256xf32>
    %c0_175 = arith.constant 0 : index
    %c1_176 = arith.constant 1 : index
    %c0_177 = arith.constant 0 : index
    %279 = vector.load %arg4[%c0_175, %c1_176, %c0_177] : memref<2x5x256xf32, #tpu.memory_space<vmem>>, vector<2x1x256xf32>
    tpu.vector_store %arg4[%c0_175, %c1_176, %c0_177], %278 {strides = array<i32>} : memref<2x5x256xf32, #tpu.memory_space<vmem>>, vector<2x1x256xf32>,
    %c2_178 = arith.constant 2 : index
    %280 = memref.load %arg3[%c2_178] : memref<5xf32, #tpu.memory_space<smem>>
    %281 = vector.broadcast %280 : f32 to vector<2x1x256xf32>
    %c54 = arith.constant 54 : index
    %282 = memref.load %arg2[%c54] : memref<135xf32, #tpu.memory_space<smem>>
    %c0_179 = arith.constant 0 : index
    %c0_180 = arith.constant 0 : index
    %c0_181 = arith.constant 0 : index
    %283 = vector.load %arg5[%c0_179, %c0_180, %c0_181] : memref<2x3x384xf32, #tpu.memory_space<vmem>>, vector<2x1x256xf32>
    %284 = vector.broadcast %282 : f32 to vector<2x1x256xf32>
    %285 = arith.mulf %284, %283 : vector<2x1x256xf32>
    %286 = arith.addf %281, %285 : vector<2x1x256xf32>
    %c55 = arith.constant 55 : index
    %287 = memref.load %arg2[%c55] : memref<135xf32, #tpu.memory_space<smem>>
    %c0_182 = arith.constant 0 : index
    %c0_183 = arith.constant 0 : index
    %c1_184 = arith.constant 1 : index
    %288 = vector.load %arg5[%c0_182, %c0_183, %c1_184] : memref<2x3x384xf32, #tpu.memory_space<vmem>>, vector<2x1x256xf32>
    %289 = vector.broadcast %287 : f32 to vector<2x1x256xf32>
    %290 = arith.mulf %289, %288 : vector<2x1x256xf32>
    %291 = arith.addf %286, %290 : vector<2x1x256xf32>
    %c56 = arith.constant 56 : index
    %292 = memref.load %arg2[%c56] : memref<135xf32, #tpu.memory_space<smem>>
    %c0_185 = arith.constant 0 : index
    %c0_186 = arith.constant 0 : index
    %c2_187 = arith.constant 2 : index
    %293 = vector.load %arg5[%c0_185, %c0_186, %c2_187] : memref<2x3x384xf32, #tpu.memory_space<vmem>>, vector<2x1x256xf32>
    %294 = vector.broadcast %292 : f32 to vector<2x1x256xf32>
    %295 = arith.mulf %294, %293 : vector<2x1x256xf32>
    %296 = arith.addf %291, %295 : vector<2x1x256xf32>
    %c57 = arith.constant 57 : index
    %297 = memref.load %arg2[%c57] : memref<135xf32, #tpu.memory_space<smem>>
    %c0_188 = arith.constant 0 : index
    %c0_189 = arith.constant 0 : index
    %c16_190 = arith.constant 16 : index
    %298 = vector.load %arg5[%c0_188, %c0_189, %c16_190] : memref<2x3x384xf32, #tpu.memory_space<vmem>>, vector<2x1x256xf32>
    %299 = vector.broadcast %297 : f32 to vector<2x1x256xf32>
    %300 = arith.mulf %299, %298 : vector<2x1x256xf32>
    %301 = arith.addf %296, %300 : vector<2x1x256xf32>
    %c58 = arith.constant 58 : index
    %302 = memref.load %arg2[%c58] : memref<135xf32, #tpu.memory_space<smem>>
    %c0_191 = arith.constant 0 : index
    %c0_192 = arith.constant 0 : index
    %c17_193 = arith.constant 17 : index
    %303 = vector.load %arg5[%c0_191, %c0_192, %c17_193] : memref<2x3x384xf32, #tpu.memory_space<vmem>>, vector<2x1x256xf32>
    %304 = vector.broadcast %302 : f32 to vector<2x1x256xf32>
    %305 = arith.mulf %304, %303 : vector<2x1x256xf32>
    %306 = arith.addf %301, %305 : vector<2x1x256xf32>
    %c59 = arith.constant 59 : index
    %307 = memref.load %arg2[%c59] : memref<135xf32, #tpu.memory_space<smem>>
    %c0_194 = arith.constant 0 : index
    %c0_195 = arith.constant 0 : index
    %c18_196 = arith.constant 18 : index
    %308 = vector.load %arg5[%c0_194, %c0_195, %c18_196] : memref<2x3x384xf32, #tpu.memory_space<vmem>>, vector<2x1x256xf32>
    %309 = vector.broadcast %307 : f32 to vector<2x1x256xf32>
    %310 = arith.mulf %309, %308 : vector<2x1x256xf32>
    %311 = arith.addf %306, %310 : vector<2x1x256xf32>
    %c60 = arith.constant 60 : index
    %312 = memref.load %arg2[%c60] : memref<135xf32, #tpu.memory_space<smem>>
    %c0_197 = arith.constant 0 : index
    %c0_198 = arith.constant 0 : index
    %c32_199 = arith.constant 32 : index
    %313 = vector.load %arg5[%c0_197, %c0_198, %c32_199] : memref<2x3x384xf32, #tpu.memory_space<vmem>>, vector<2x1x256xf32>
    %314 = vector.broadcast %312 : f32 to vector<2x1x256xf32>
    %315 = arith.mulf %314, %313 : vector<2x1x256xf32>
    %316 = arith.addf %311, %315 : vector<2x1x256xf32>
    %c61 = arith.constant 61 : index
    %317 = memref.load %arg2[%c61] : memref<135xf32, #tpu.memory_space<smem>>
    %c0_200 = arith.constant 0 : index
    %c0_201 = arith.constant 0 : index
    %c33_202 = arith.constant 33 : index
    %318 = vector.load %arg5[%c0_200, %c0_201, %c33_202] : memref<2x3x384xf32, #tpu.memory_space<vmem>>, vector<2x1x256xf32>
    %319 = vector.broadcast %317 : f32 to vector<2x1x256xf32>
    %320 = arith.mulf %319, %318 : vector<2x1x256xf32>
    %321 = arith.addf %316, %320 : vector<2x1x256xf32>
    %c62 = arith.constant 62 : index
    %322 = memref.load %arg2[%c62] : memref<135xf32, #tpu.memory_space<smem>>
    %c0_203 = arith.constant 0 : index
    %c0_204 = arith.constant 0 : index
    %c34_205 = arith.constant 34 : index
    %323 = vector.load %arg5[%c0_203, %c0_204, %c34_205] : memref<2x3x384xf32, #tpu.memory_space<vmem>>, vector<2x1x256xf32>
    %324 = vector.broadcast %322 : f32 to vector<2x1x256xf32>
    %325 = arith.mulf %324, %323 : vector<2x1x256xf32>
    %326 = arith.addf %321, %325 : vector<2x1x256xf32>
    %c63 = arith.constant 63 : index
    %327 = memref.load %arg2[%c63] : memref<135xf32, #tpu.memory_space<smem>>
    %c0_206 = arith.constant 0 : index
    %c1_207 = arith.constant 1 : index
    %c0_208 = arith.constant 0 : index
    %328 = vector.load %arg5[%c0_206, %c1_207, %c0_208] : memref<2x3x384xf32, #tpu.memory_space<vmem>>, vector<2x1x256xf32>
    %329 = vector.broadcast %327 : f32 to vector<2x1x256xf32>
    %330 = arith.mulf %329, %328 : vector<2x1x256xf32>
    %331 = arith.addf %326, %330 : vector<2x1x256xf32>
    %c64 = arith.constant 64 : index
    %332 = memref.load %arg2[%c64] : memref<135xf32, #tpu.memory_space<smem>>
    %c0_209 = arith.constant 0 : index
    %c1_210 = arith.constant 1 : index
    %c1_211 = arith.constant 1 : index
    %333 = vector.load %arg5[%c0_209, %c1_210, %c1_211] : memref<2x3x384xf32, #tpu.memory_space<vmem>>, vector<2x1x256xf32>
    %334 = vector.broadcast %332 : f32 to vector<2x1x256xf32>
    %335 = arith.mulf %334, %333 : vector<2x1x256xf32>
    %336 = arith.addf %331, %335 : vector<2x1x256xf32>
    %c65 = arith.constant 65 : index
    %337 = memref.load %arg2[%c65] : memref<135xf32, #tpu.memory_space<smem>>
    %c0_212 = arith.constant 0 : index
    %c1_213 = arith.constant 1 : index
    %c2_214 = arith.constant 2 : index
    %338 = vector.load %arg5[%c0_212, %c1_213, %c2_214] : memref<2x3x384xf32, #tpu.memory_space<vmem>>, vector<2x1x256xf32>
    %339 = vector.broadcast %337 : f32 to vector<2x1x256xf32>
    %340 = arith.mulf %339, %338 : vector<2x1x256xf32>
    %341 = arith.addf %336, %340 : vector<2x1x256xf32>
    %c66 = arith.constant 66 : index
    %342 = memref.load %arg2[%c66] : memref<135xf32, #tpu.memory_space<smem>>
    %c0_215 = arith.constant 0 : index
    %c1_216 = arith.constant 1 : index
    %c16_217 = arith.constant 16 : index
    %343 = vector.load %arg5[%c0_215, %c1_216, %c16_217] : memref<2x3x384xf32, #tpu.memory_space<vmem>>, vector<2x1x256xf32>
    %344 = vector.broadcast %342 : f32 to vector<2x1x256xf32>
    %345 = arith.mulf %344, %343 : vector<2x1x256xf32>
    %346 = arith.addf %341, %345 : vector<2x1x256xf32>
    %c67 = arith.constant 67 : index
    %347 = memref.load %arg2[%c67] : memref<135xf32, #tpu.memory_space<smem>>
    %c0_218 = arith.constant 0 : index
    %c1_219 = arith.constant 1 : index
    %c17_220 = arith.constant 17 : index
    %348 = vector.load %arg5[%c0_218, %c1_219, %c17_220] : memref<2x3x384xf32, #tpu.memory_space<vmem>>, vector<2x1x256xf32>
    %349 = vector.broadcast %347 : f32 to vector<2x1x256xf32>
    %350 = arith.mulf %349, %348 : vector<2x1x256xf32>
    %351 = arith.addf %346, %350 : vector<2x1x256xf32>
    %c68 = arith.constant 68 : index
    %352 = memref.load %arg2[%c68] : memref<135xf32, #tpu.memory_space<smem>>
    %c0_221 = arith.constant 0 : index
    %c1_222 = arith.constant 1 : index
    %c18_223 = arith.constant 18 : index
    %353 = vector.load %arg5[%c0_221, %c1_222, %c18_223] : memref<2x3x384xf32, #tpu.memory_space<vmem>>, vector<2x1x256xf32>
    %354 = vector.broadcast %352 : f32 to vector<2x1x256xf32>
    %355 = arith.mulf %354, %353 : vector<2x1x256xf32>
    %356 = arith.addf %351, %355 : vector<2x1x256xf32>
    %c69 = arith.constant 69 : index
    %357 = memref.load %arg2[%c69] : memref<135xf32, #tpu.memory_space<smem>>
    %c0_224 = arith.constant 0 : index
    %c1_225 = arith.constant 1 : index
    %c32_226 = arith.constant 32 : index
    %358 = vector.load %arg5[%c0_224, %c1_225, %c32_226] : memref<2x3x384xf32, #tpu.memory_space<vmem>>, vector<2x1x256xf32>
    %359 = vector.broadcast %357 : f32 to vector<2x1x256xf32>
    %360 = arith.mulf %359, %358 : vector<2x1x256xf32>
    %361 = arith.addf %356, %360 : vector<2x1x256xf32>
    %c70 = arith.constant 70 : index
    %362 = memref.load %arg2[%c70] : memref<135xf32, #tpu.memory_space<smem>>
    %c0_227 = arith.constant 0 : index
    %c1_228 = arith.constant 1 : index
    %c33_229 = arith.constant 33 : index
    %363 = vector.load %arg5[%c0_227, %c1_228, %c33_229] : memref<2x3x384xf32, #tpu.memory_space<vmem>>, vector<2x1x256xf32>
    %364 = vector.broadcast %362 : f32 to vector<2x1x256xf32>
    %365 = arith.mulf %364, %363 : vector<2x1x256xf32>
    %366 = arith.addf %361, %365 : vector<2x1x256xf32>
    %c71 = arith.constant 71 : index
    %367 = memref.load %arg2[%c71] : memref<135xf32, #tpu.memory_space<smem>>
    %c0_230 = arith.constant 0 : index
    %c1_231 = arith.constant 1 : index
    %c34_232 = arith.constant 34 : index
    %368 = vector.load %arg5[%c0_230, %c1_231, %c34_232] : memref<2x3x384xf32, #tpu.memory_space<vmem>>, vector<2x1x256xf32>
    %369 = vector.broadcast %367 : f32 to vector<2x1x256xf32>
    %370 = arith.mulf %369, %368 : vector<2x1x256xf32>
    %371 = arith.addf %366, %370 : vector<2x1x256xf32>
    %c72 = arith.constant 72 : index
    %372 = memref.load %arg2[%c72] : memref<135xf32, #tpu.memory_space<smem>>
    %c0_233 = arith.constant 0 : index
    %c2_234 = arith.constant 2 : index
    %c0_235 = arith.constant 0 : index
    %373 = vector.load %arg5[%c0_233, %c2_234, %c0_235] : memref<2x3x384xf32, #tpu.memory_space<vmem>>, vector<2x1x256xf32>
    %374 = vector.broadcast %372 : f32 to vector<2x1x256xf32>
    %375 = arith.mulf %374, %373 : vector<2x1x256xf32>
    %376 = arith.addf %371, %375 : vector<2x1x256xf32>
    %c73 = arith.constant 73 : index
    %377 = memref.load %arg2[%c73] : memref<135xf32, #tpu.memory_space<smem>>
    %c0_236 = arith.constant 0 : index
    %c2_237 = arith.constant 2 : index
    %c1_238 = arith.constant 1 : index
    %378 = vector.load %arg5[%c0_236, %c2_237, %c1_238] : memref<2x3x384xf32, #tpu.memory_space<vmem>>, vector<2x1x256xf32>
    %379 = vector.broadcast %377 : f32 to vector<2x1x256xf32>
    %380 = arith.mulf %379, %378 : vector<2x1x256xf32>
    %381 = arith.addf %376, %380 : vector<2x1x256xf32>
    %c74 = arith.constant 74 : index
    %382 = memref.load %arg2[%c74] : memref<135xf32, #tpu.memory_space<smem>>
    %c0_239 = arith.constant 0 : index
    %c2_240 = arith.constant 2 : index
    %c2_241 = arith.constant 2 : index
    %383 = vector.load %arg5[%c0_239, %c2_240, %c2_241] : memref<2x3x384xf32, #tpu.memory_space<vmem>>, vector<2x1x256xf32>
    %384 = vector.broadcast %382 : f32 to vector<2x1x256xf32>
    %385 = arith.mulf %384, %383 : vector<2x1x256xf32>
    %386 = arith.addf %381, %385 : vector<2x1x256xf32>
    %c75 = arith.constant 75 : index
    %387 = memref.load %arg2[%c75] : memref<135xf32, #tpu.memory_space<smem>>
    %c0_242 = arith.constant 0 : index
    %c2_243 = arith.constant 2 : index
    %c16_244 = arith.constant 16 : index
    %388 = vector.load %arg5[%c0_242, %c2_243, %c16_244] : memref<2x3x384xf32, #tpu.memory_space<vmem>>, vector<2x1x256xf32>
    %389 = vector.broadcast %387 : f32 to vector<2x1x256xf32>
    %390 = arith.mulf %389, %388 : vector<2x1x256xf32>
    %391 = arith.addf %386, %390 : vector<2x1x256xf32>
    %c76 = arith.constant 76 : index
    %392 = memref.load %arg2[%c76] : memref<135xf32, #tpu.memory_space<smem>>
    %c0_245 = arith.constant 0 : index
    %c2_246 = arith.constant 2 : index
    %c17_247 = arith.constant 17 : index
    %393 = vector.load %arg5[%c0_245, %c2_246, %c17_247] : memref<2x3x384xf32, #tpu.memory_space<vmem>>, vector<2x1x256xf32>
    %394 = vector.broadcast %392 : f32 to vector<2x1x256xf32>
    %395 = arith.mulf %394, %393 : vector<2x1x256xf32>
    %396 = arith.addf %391, %395 : vector<2x1x256xf32>
    %c77 = arith.constant 77 : index
    %397 = memref.load %arg2[%c77] : memref<135xf32, #tpu.memory_space<smem>>
    %c0_248 = arith.constant 0 : index
    %c2_249 = arith.constant 2 : index
    %c18_250 = arith.constant 18 : index
    %398 = vector.load %arg5[%c0_248, %c2_249, %c18_250] : memref<2x3x384xf32, #tpu.memory_space<vmem>>, vector<2x1x256xf32>
    %399 = vector.broadcast %397 : f32 to vector<2x1x256xf32>
    %400 = arith.mulf %399, %398 : vector<2x1x256xf32>
    %401 = arith.addf %396, %400 : vector<2x1x256xf32>
    %c78 = arith.constant 78 : index
    %402 = memref.load %arg2[%c78] : memref<135xf32, #tpu.memory_space<smem>>
    %c0_251 = arith.constant 0 : index
    %c2_252 = arith.constant 2 : index
    %c32_253 = arith.constant 32 : index
    %403 = vector.load %arg5[%c0_251, %c2_252, %c32_253] : memref<2x3x384xf32, #tpu.memory_space<vmem>>, vector<2x1x256xf32>
    %404 = vector.broadcast %402 : f32 to vector<2x1x256xf32>
    %405 = arith.mulf %404, %403 : vector<2x1x256xf32>
    %406 = arith.addf %401, %405 : vector<2x1x256xf32>
    %c79 = arith.constant 79 : index
    %407 = memref.load %arg2[%c79] : memref<135xf32, #tpu.memory_space<smem>>
    %c0_254 = arith.constant 0 : index
    %c2_255 = arith.constant 2 : index
    %c33_256 = arith.constant 33 : index
    %408 = vector.load %arg5[%c0_254, %c2_255, %c33_256] : memref<2x3x384xf32, #tpu.memory_space<vmem>>, vector<2x1x256xf32>
    %409 = vector.broadcast %407 : f32 to vector<2x1x256xf32>
    %410 = arith.mulf %409, %408 : vector<2x1x256xf32>
    %411 = arith.addf %406, %410 : vector<2x1x256xf32>
    %c80 = arith.constant 80 : index
    %412 = memref.load %arg2[%c80] : memref<135xf32, #tpu.memory_space<smem>>
    %c0_257 = arith.constant 0 : index
    %c2_258 = arith.constant 2 : index
    %c34_259 = arith.constant 34 : index
    %413 = vector.load %arg5[%c0_257, %c2_258, %c34_259] : memref<2x3x384xf32, #tpu.memory_space<vmem>>, vector<2x1x256xf32>
    %414 = vector.broadcast %412 : f32 to vector<2x1x256xf32>
    %415 = arith.mulf %414, %413 : vector<2x1x256xf32>
    %416 = arith.addf %411, %415 : vector<2x1x256xf32>
    %c0_260 = arith.constant 0 : index
    %c2_261 = arith.constant 2 : index
    %c0_262 = arith.constant 0 : index
    %417 = vector.load %arg4[%c0_260, %c2_261, %c0_262] : memref<2x5x256xf32, #tpu.memory_space<vmem>>, vector<2x1x256xf32>
    tpu.vector_store %arg4[%c0_260, %c2_261, %c0_262], %416 {strides = array<i32>} : memref<2x5x256xf32, #tpu.memory_space<vmem>>, vector<2x1x256xf32>,
    %c3_263 = arith.constant 3 : index
    %418 = memref.load %arg3[%c3_263] : memref<5xf32, #tpu.memory_space<smem>>
    %419 = vector.broadcast %418 : f32 to vector<2x1x256xf32>
    %c81 = arith.constant 81 : index
    %420 = memref.load %arg2[%c81] : memref<135xf32, #tpu.memory_space<smem>>
    %c0_264 = arith.constant 0 : index
    %c0_265 = arith.constant 0 : index
    %c0_266 = arith.constant 0 : index
    %421 = vector.load %arg5[%c0_264, %c0_265, %c0_266] : memref<2x3x384xf32, #tpu.memory_space<vmem>>, vector<2x1x256xf32>
    %422 = vector.broadcast %420 : f32 to vector<2x1x256xf32>
    %423 = arith.mulf %422, %421 : vector<2x1x256xf32>
    %424 = arith.addf %419, %423 : vector<2x1x256xf32>
    %c82 = arith.constant 82 : index
    %425 = memref.load %arg2[%c82] : memref<135xf32, #tpu.memory_space<smem>>
    %c0_267 = arith.constant 0 : index
    %c0_268 = arith.constant 0 : index
    %c1_269 = arith.constant 1 : index
    %426 = vector.load %arg5[%c0_267, %c0_268, %c1_269] : memref<2x3x384xf32, #tpu.memory_space<vmem>>, vector<2x1x256xf32>
    %427 = vector.broadcast %425 : f32 to vector<2x1x256xf32>
    %428 = arith.mulf %427, %426 : vector<2x1x256xf32>
    %429 = arith.addf %424, %428 : vector<2x1x256xf32>
    %c83 = arith.constant 83 : index
    %430 = memref.load %arg2[%c83] : memref<135xf32, #tpu.memory_space<smem>>
    %c0_270 = arith.constant 0 : index
    %c0_271 = arith.constant 0 : index
    %c2_272 = arith.constant 2 : index
    %431 = vector.load %arg5[%c0_270, %c0_271, %c2_272] : memref<2x3x384xf32, #tpu.memory_space<vmem>>, vector<2x1x256xf32>
    %432 = vector.broadcast %430 : f32 to vector<2x1x256xf32>
    %433 = arith.mulf %432, %431 : vector<2x1x256xf32>
    %434 = arith.addf %429, %433 : vector<2x1x256xf32>
    %c84 = arith.constant 84 : index
    %435 = memref.load %arg2[%c84] : memref<135xf32, #tpu.memory_space<smem>>
    %c0_273 = arith.constant 0 : index
    %c0_274 = arith.constant 0 : index
    %c16_275 = arith.constant 16 : index
    %436 = vector.load %arg5[%c0_273, %c0_274, %c16_275] : memref<2x3x384xf32, #tpu.memory_space<vmem>>, vector<2x1x256xf32>
    %437 = vector.broadcast %435 : f32 to vector<2x1x256xf32>
    %438 = arith.mulf %437, %436 : vector<2x1x256xf32>
    %439 = arith.addf %434, %438 : vector<2x1x256xf32>
    %c85 = arith.constant 85 : index
    %440 = memref.load %arg2[%c85] : memref<135xf32, #tpu.memory_space<smem>>
    %c0_276 = arith.constant 0 : index
    %c0_277 = arith.constant 0 : index
    %c17_278 = arith.constant 17 : index
    %441 = vector.load %arg5[%c0_276, %c0_277, %c17_278] : memref<2x3x384xf32, #tpu.memory_space<vmem>>, vector<2x1x256xf32>
    %442 = vector.broadcast %440 : f32 to vector<2x1x256xf32>
    %443 = arith.mulf %442, %441 : vector<2x1x256xf32>
    %444 = arith.addf %439, %443 : vector<2x1x256xf32>
    %c86 = arith.constant 86 : index
    %445 = memref.load %arg2[%c86] : memref<135xf32, #tpu.memory_space<smem>>
    %c0_279 = arith.constant 0 : index
    %c0_280 = arith.constant 0 : index
    %c18_281 = arith.constant 18 : index
    %446 = vector.load %arg5[%c0_279, %c0_280, %c18_281] : memref<2x3x384xf32, #tpu.memory_space<vmem>>, vector<2x1x256xf32>
    %447 = vector.broadcast %445 : f32 to vector<2x1x256xf32>
    %448 = arith.mulf %447, %446 : vector<2x1x256xf32>
    %449 = arith.addf %444, %448 : vector<2x1x256xf32>
    %c87 = arith.constant 87 : index
    %450 = memref.load %arg2[%c87] : memref<135xf32, #tpu.memory_space<smem>>
    %c0_282 = arith.constant 0 : index
    %c0_283 = arith.constant 0 : index
    %c32_284 = arith.constant 32 : index
    %451 = vector.load %arg5[%c0_282, %c0_283, %c32_284] : memref<2x3x384xf32, #tpu.memory_space<vmem>>, vector<2x1x256xf32>
    %452 = vector.broadcast %450 : f32 to vector<2x1x256xf32>
    %453 = arith.mulf %452, %451 : vector<2x1x256xf32>
    %454 = arith.addf %449, %453 : vector<2x1x256xf32>
    %c88 = arith.constant 88 : index
    %455 = memref.load %arg2[%c88] : memref<135xf32, #tpu.memory_space<smem>>
    %c0_285 = arith.constant 0 : index
    %c0_286 = arith.constant 0 : index
    %c33_287 = arith.constant 33 : index
    %456 = vector.load %arg5[%c0_285, %c0_286, %c33_287] : memref<2x3x384xf32, #tpu.memory_space<vmem>>, vector<2x1x256xf32>
    %457 = vector.broadcast %455 : f32 to vector<2x1x256xf32>
    %458 = arith.mulf %457, %456 : vector<2x1x256xf32>
    %459 = arith.addf %454, %458 : vector<2x1x256xf32>
    %c89 = arith.constant 89 : index
    %460 = memref.load %arg2[%c89] : memref<135xf32, #tpu.memory_space<smem>>
    %c0_288 = arith.constant 0 : index
    %c0_289 = arith.constant 0 : index
    %c34_290 = arith.constant 34 : index
    %461 = vector.load %arg5[%c0_288, %c0_289, %c34_290] : memref<2x3x384xf32, #tpu.memory_space<vmem>>, vector<2x1x256xf32>
    %462 = vector.broadcast %460 : f32 to vector<2x1x256xf32>
    %463 = arith.mulf %462, %461 : vector<2x1x256xf32>
    %464 = arith.addf %459, %463 : vector<2x1x256xf32>
    %c90 = arith.constant 90 : index
    %465 = memref.load %arg2[%c90] : memref<135xf32, #tpu.memory_space<smem>>
    %c0_291 = arith.constant 0 : index
    %c1_292 = arith.constant 1 : index
    %c0_293 = arith.constant 0 : index
    %466 = vector.load %arg5[%c0_291, %c1_292, %c0_293] : memref<2x3x384xf32, #tpu.memory_space<vmem>>, vector<2x1x256xf32>
    %467 = vector.broadcast %465 : f32 to vector<2x1x256xf32>
    %468 = arith.mulf %467, %466 : vector<2x1x256xf32>
    %469 = arith.addf %464, %468 : vector<2x1x256xf32>
    %c91 = arith.constant 91 : index
    %470 = memref.load %arg2[%c91] : memref<135xf32, #tpu.memory_space<smem>>
    %c0_294 = arith.constant 0 : index
    %c1_295 = arith.constant 1 : index
    %c1_296 = arith.constant 1 : index
    %471 = vector.load %arg5[%c0_294, %c1_295, %c1_296] : memref<2x3x384xf32, #tpu.memory_space<vmem>>, vector<2x1x256xf32>
    %472 = vector.broadcast %470 : f32 to vector<2x1x256xf32>
    %473 = arith.mulf %472, %471 : vector<2x1x256xf32>
    %474 = arith.addf %469, %473 : vector<2x1x256xf32>
    %c92 = arith.constant 92 : index
    %475 = memref.load %arg2[%c92] : memref<135xf32, #tpu.memory_space<smem>>
    %c0_297 = arith.constant 0 : index
    %c1_298 = arith.constant 1 : index
    %c2_299 = arith.constant 2 : index
    %476 = vector.load %arg5[%c0_297, %c1_298, %c2_299] : memref<2x3x384xf32, #tpu.memory_space<vmem>>, vector<2x1x256xf32>
    %477 = vector.broadcast %475 : f32 to vector<2x1x256xf32>
    %478 = arith.mulf %477, %476 : vector<2x1x256xf32>
    %479 = arith.addf %474, %478 : vector<2x1x256xf32>
    %c93 = arith.constant 93 : index
    %480 = memref.load %arg2[%c93] : memref<135xf32, #tpu.memory_space<smem>>
    %c0_300 = arith.constant 0 : index
    %c1_301 = arith.constant 1 : index
    %c16_302 = arith.constant 16 : index
    %481 = vector.load %arg5[%c0_300, %c1_301, %c16_302] : memref<2x3x384xf32, #tpu.memory_space<vmem>>, vector<2x1x256xf32>
    %482 = vector.broadcast %480 : f32 to vector<2x1x256xf32>
    %483 = arith.mulf %482, %481 : vector<2x1x256xf32>
    %484 = arith.addf %479, %483 : vector<2x1x256xf32>
    %c94 = arith.constant 94 : index
    %485 = memref.load %arg2[%c94] : memref<135xf32, #tpu.memory_space<smem>>
    %c0_303 = arith.constant 0 : index
    %c1_304 = arith.constant 1 : index
    %c17_305 = arith.constant 17 : index
    %486 = vector.load %arg5[%c0_303, %c1_304, %c17_305] : memref<2x3x384xf32, #tpu.memory_space<vmem>>, vector<2x1x256xf32>
    %487 = vector.broadcast %485 : f32 to vector<2x1x256xf32>
    %488 = arith.mulf %487, %486 : vector<2x1x256xf32>
    %489 = arith.addf %484, %488 : vector<2x1x256xf32>
    %c95 = arith.constant 95 : index
    %490 = memref.load %arg2[%c95] : memref<135xf32, #tpu.memory_space<smem>>
    %c0_306 = arith.constant 0 : index
    %c1_307 = arith.constant 1 : index
    %c18_308 = arith.constant 18 : index
    %491 = vector.load %arg5[%c0_306, %c1_307, %c18_308] : memref<2x3x384xf32, #tpu.memory_space<vmem>>, vector<2x1x256xf32>
    %492 = vector.broadcast %490 : f32 to vector<2x1x256xf32>
    %493 = arith.mulf %492, %491 : vector<2x1x256xf32>
    %494 = arith.addf %489, %493 : vector<2x1x256xf32>
    %c96 = arith.constant 96 : index
    %495 = memref.load %arg2[%c96] : memref<135xf32, #tpu.memory_space<smem>>
    %c0_309 = arith.constant 0 : index
    %c1_310 = arith.constant 1 : index
    %c32_311 = arith.constant 32 : index
    %496 = vector.load %arg5[%c0_309, %c1_310, %c32_311] : memref<2x3x384xf32, #tpu.memory_space<vmem>>, vector<2x1x256xf32>
    %497 = vector.broadcast %495 : f32 to vector<2x1x256xf32>
    %498 = arith.mulf %497, %496 : vector<2x1x256xf32>
    %499 = arith.addf %494, %498 : vector<2x1x256xf32>
    %c97 = arith.constant 97 : index
    %500 = memref.load %arg2[%c97] : memref<135xf32, #tpu.memory_space<smem>>
    %c0_312 = arith.constant 0 : index
    %c1_313 = arith.constant 1 : index
    %c33_314 = arith.constant 33 : index
    %501 = vector.load %arg5[%c0_312, %c1_313, %c33_314] : memref<2x3x384xf32, #tpu.memory_space<vmem>>, vector<2x1x256xf32>
    %502 = vector.broadcast %500 : f32 to vector<2x1x256xf32>
    %503 = arith.mulf %502, %501 : vector<2x1x256xf32>
    %504 = arith.addf %499, %503 : vector<2x1x256xf32>
    %c98 = arith.constant 98 : index
    %505 = memref.load %arg2[%c98] : memref<135xf32, #tpu.memory_space<smem>>
    %c0_315 = arith.constant 0 : index
    %c1_316 = arith.constant 1 : index
    %c34_317 = arith.constant 34 : index
    %506 = vector.load %arg5[%c0_315, %c1_316, %c34_317] : memref<2x3x384xf32, #tpu.memory_space<vmem>>, vector<2x1x256xf32>
    %507 = vector.broadcast %505 : f32 to vector<2x1x256xf32>
    %508 = arith.mulf %507, %506 : vector<2x1x256xf32>
    %509 = arith.addf %504, %508 : vector<2x1x256xf32>
    %c99 = arith.constant 99 : index
    %510 = memref.load %arg2[%c99] : memref<135xf32, #tpu.memory_space<smem>>
    %c0_318 = arith.constant 0 : index
    %c2_319 = arith.constant 2 : index
    %c0_320 = arith.constant 0 : index
    %511 = vector.load %arg5[%c0_318, %c2_319, %c0_320] : memref<2x3x384xf32, #tpu.memory_space<vmem>>, vector<2x1x256xf32>
    %512 = vector.broadcast %510 : f32 to vector<2x1x256xf32>
    %513 = arith.mulf %512, %511 : vector<2x1x256xf32>
    %514 = arith.addf %509, %513 : vector<2x1x256xf32>
    %c100 = arith.constant 100 : index
    %515 = memref.load %arg2[%c100] : memref<135xf32, #tpu.memory_space<smem>>
    %c0_321 = arith.constant 0 : index
    %c2_322 = arith.constant 2 : index
    %c1_323 = arith.constant 1 : index
    %516 = vector.load %arg5[%c0_321, %c2_322, %c1_323] : memref<2x3x384xf32, #tpu.memory_space<vmem>>, vector<2x1x256xf32>
    %517 = vector.broadcast %515 : f32 to vector<2x1x256xf32>
    %518 = arith.mulf %517, %516 : vector<2x1x256xf32>
    %519 = arith.addf %514, %518 : vector<2x1x256xf32>
    %c101 = arith.constant 101 : index
    %520 = memref.load %arg2[%c101] : memref<135xf32, #tpu.memory_space<smem>>
    %c0_324 = arith.constant 0 : index
    %c2_325 = arith.constant 2 : index
    %c2_326 = arith.constant 2 : index
    %521 = vector.load %arg5[%c0_324, %c2_325, %c2_326] : memref<2x3x384xf32, #tpu.memory_space<vmem>>, vector<2x1x256xf32>
    %522 = vector.broadcast %520 : f32 to vector<2x1x256xf32>
    %523 = arith.mulf %522, %521 : vector<2x1x256xf32>
    %524 = arith.addf %519, %523 : vector<2x1x256xf32>
    %c102 = arith.constant 102 : index
    %525 = memref.load %arg2[%c102] : memref<135xf32, #tpu.memory_space<smem>>
    %c0_327 = arith.constant 0 : index
    %c2_328 = arith.constant 2 : index
    %c16_329 = arith.constant 16 : index
    %526 = vector.load %arg5[%c0_327, %c2_328, %c16_329] : memref<2x3x384xf32, #tpu.memory_space<vmem>>, vector<2x1x256xf32>
    %527 = vector.broadcast %525 : f32 to vector<2x1x256xf32>
    %528 = arith.mulf %527, %526 : vector<2x1x256xf32>
    %529 = arith.addf %524, %528 : vector<2x1x256xf32>
    %c103 = arith.constant 103 : index
    %530 = memref.load %arg2[%c103] : memref<135xf32, #tpu.memory_space<smem>>
    %c0_330 = arith.constant 0 : index
    %c2_331 = arith.constant 2 : index
    %c17_332 = arith.constant 17 : index
    %531 = vector.load %arg5[%c0_330, %c2_331, %c17_332] : memref<2x3x384xf32, #tpu.memory_space<vmem>>, vector<2x1x256xf32>
    %532 = vector.broadcast %530 : f32 to vector<2x1x256xf32>
    %533 = arith.mulf %532, %531 : vector<2x1x256xf32>
    %534 = arith.addf %529, %533 : vector<2x1x256xf32>
    %c104 = arith.constant 104 : index
    %535 = memref.load %arg2[%c104] : memref<135xf32, #tpu.memory_space<smem>>
    %c0_333 = arith.constant 0 : index
    %c2_334 = arith.constant 2 : index
    %c18_335 = arith.constant 18 : index
    %536 = vector.load %arg5[%c0_333, %c2_334, %c18_335] : memref<2x3x384xf32, #tpu.memory_space<vmem>>, vector<2x1x256xf32>
    %537 = vector.broadcast %535 : f32 to vector<2x1x256xf32>
    %538 = arith.mulf %537, %536 : vector<2x1x256xf32>
    %539 = arith.addf %534, %538 : vector<2x1x256xf32>
    %c105 = arith.constant 105 : index
    %540 = memref.load %arg2[%c105] : memref<135xf32, #tpu.memory_space<smem>>
    %c0_336 = arith.constant 0 : index
    %c2_337 = arith.constant 2 : index
    %c32_338 = arith.constant 32 : index
    %541 = vector.load %arg5[%c0_336, %c2_337, %c32_338] : memref<2x3x384xf32, #tpu.memory_space<vmem>>, vector<2x1x256xf32>
    %542 = vector.broadcast %540 : f32 to vector<2x1x256xf32>
    %543 = arith.mulf %542, %541 : vector<2x1x256xf32>
    %544 = arith.addf %539, %543 : vector<2x1x256xf32>
    %c106 = arith.constant 106 : index
    %545 = memref.load %arg2[%c106] : memref<135xf32, #tpu.memory_space<smem>>
    %c0_339 = arith.constant 0 : index
    %c2_340 = arith.constant 2 : index
    %c33_341 = arith.constant 33 : index
    %546 = vector.load %arg5[%c0_339, %c2_340, %c33_341] : memref<2x3x384xf32, #tpu.memory_space<vmem>>, vector<2x1x256xf32>
    %547 = vector.broadcast %545 : f32 to vector<2x1x256xf32>
    %548 = arith.mulf %547, %546 : vector<2x1x256xf32>
    %549 = arith.addf %544, %548 : vector<2x1x256xf32>
    %c107 = arith.constant 107 : index
    %550 = memref.load %arg2[%c107] : memref<135xf32, #tpu.memory_space<smem>>
    %c0_342 = arith.constant 0 : index
    %c2_343 = arith.constant 2 : index
    %c34_344 = arith.constant 34 : index
    %551 = vector.load %arg5[%c0_342, %c2_343, %c34_344] : memref<2x3x384xf32, #tpu.memory_space<vmem>>, vector<2x1x256xf32>
    %552 = vector.broadcast %550 : f32 to vector<2x1x256xf32>
    %553 = arith.mulf %552, %551 : vector<2x1x256xf32>
    %554 = arith.addf %549, %553 : vector<2x1x256xf32>
    %c0_345 = arith.constant 0 : index
    %c3_346 = arith.constant 3 : index
    %c0_347 = arith.constant 0 : index
    %555 = vector.load %arg4[%c0_345, %c3_346, %c0_347] : memref<2x5x256xf32, #tpu.memory_space<vmem>>, vector<2x1x256xf32>
    tpu.vector_store %arg4[%c0_345, %c3_346, %c0_347], %554 {strides = array<i32>} : memref<2x5x256xf32, #tpu.memory_space<vmem>>, vector<2x1x256xf32>,
    %c4_348 = arith.constant 4 : index
    %556 = memref.load %arg3[%c4_348] : memref<5xf32, #tpu.memory_space<smem>>
    %557 = vector.broadcast %556 : f32 to vector<2x1x256xf32>
    %c108 = arith.constant 108 : index
    %558 = memref.load %arg2[%c108] : memref<135xf32, #tpu.memory_space<smem>>
    %c0_349 = arith.constant 0 : index
    %c0_350 = arith.constant 0 : index
    %c0_351 = arith.constant 0 : index
    %559 = vector.load %arg5[%c0_349, %c0_350, %c0_351] : memref<2x3x384xf32, #tpu.memory_space<vmem>>, vector<2x1x256xf32>
    %560 = vector.broadcast %558 : f32 to vector<2x1x256xf32>
    %561 = arith.mulf %560, %559 : vector<2x1x256xf32>
    %562 = arith.addf %557, %561 : vector<2x1x256xf32>
    %c109 = arith.constant 109 : index
    %563 = memref.load %arg2[%c109] : memref<135xf32, #tpu.memory_space<smem>>
    %c0_352 = arith.constant 0 : index
    %c0_353 = arith.constant 0 : index
    %c1_354 = arith.constant 1 : index
    %564 = vector.load %arg5[%c0_352, %c0_353, %c1_354] : memref<2x3x384xf32, #tpu.memory_space<vmem>>, vector<2x1x256xf32>
    %565 = vector.broadcast %563 : f32 to vector<2x1x256xf32>
    %566 = arith.mulf %565, %564 : vector<2x1x256xf32>
    %567 = arith.addf %562, %566 : vector<2x1x256xf32>
    %c110 = arith.constant 110 : index
    %568 = memref.load %arg2[%c110] : memref<135xf32, #tpu.memory_space<smem>>
    %c0_355 = arith.constant 0 : index
    %c0_356 = arith.constant 0 : index
    %c2_357 = arith.constant 2 : index
    %569 = vector.load %arg5[%c0_355, %c0_356, %c2_357] : memref<2x3x384xf32, #tpu.memory_space<vmem>>, vector<2x1x256xf32>
    %570 = vector.broadcast %568 : f32 to vector<2x1x256xf32>
    %571 = arith.mulf %570, %569 : vector<2x1x256xf32>
    %572 = arith.addf %567, %571 : vector<2x1x256xf32>
    %c111 = arith.constant 111 : index
    %573 = memref.load %arg2[%c111] : memref<135xf32, #tpu.memory_space<smem>>
    %c0_358 = arith.constant 0 : index
    %c0_359 = arith.constant 0 : index
    %c16_360 = arith.constant 16 : index
    %574 = vector.load %arg5[%c0_358, %c0_359, %c16_360] : memref<2x3x384xf32, #tpu.memory_space<vmem>>, vector<2x1x256xf32>
    %575 = vector.broadcast %573 : f32 to vector<2x1x256xf32>
    %576 = arith.mulf %575, %574 : vector<2x1x256xf32>
    %577 = arith.addf %572, %576 : vector<2x1x256xf32>
    %c112 = arith.constant 112 : index
    %578 = memref.load %arg2[%c112] : memref<135xf32, #tpu.memory_space<smem>>
    %c0_361 = arith.constant 0 : index
    %c0_362 = arith.constant 0 : index
    %c17_363 = arith.constant 17 : index
    %579 = vector.load %arg5[%c0_361, %c0_362, %c17_363] : memref<2x3x384xf32, #tpu.memory_space<vmem>>, vector<2x1x256xf32>
    %580 = vector.broadcast %578 : f32 to vector<2x1x256xf32>
    %581 = arith.mulf %580, %579 : vector<2x1x256xf32>
    %582 = arith.addf %577, %581 : vector<2x1x256xf32>
    %c113 = arith.constant 113 : index
    %583 = memref.load %arg2[%c113] : memref<135xf32, #tpu.memory_space<smem>>
    %c0_364 = arith.constant 0 : index
    %c0_365 = arith.constant 0 : index
    %c18_366 = arith.constant 18 : index
    %584 = vector.load %arg5[%c0_364, %c0_365, %c18_366] : memref<2x3x384xf32, #tpu.memory_space<vmem>>, vector<2x1x256xf32>
    %585 = vector.broadcast %583 : f32 to vector<2x1x256xf32>
    %586 = arith.mulf %585, %584 : vector<2x1x256xf32>
    %587 = arith.addf %582, %586 : vector<2x1x256xf32>
    %c114 = arith.constant 114 : index
    %588 = memref.load %arg2[%c114] : memref<135xf32, #tpu.memory_space<smem>>
    %c0_367 = arith.constant 0 : index
    %c0_368 = arith.constant 0 : index
    %c32_369 = arith.constant 32 : index
    %589 = vector.load %arg5[%c0_367, %c0_368, %c32_369] : memref<2x3x384xf32, #tpu.memory_space<vmem>>, vector<2x1x256xf32>
    %590 = vector.broadcast %588 : f32 to vector<2x1x256xf32>
    %591 = arith.mulf %590, %589 : vector<2x1x256xf32>
    %592 = arith.addf %587, %591 : vector<2x1x256xf32>
    %c115 = arith.constant 115 : index
    %593 = memref.load %arg2[%c115] : memref<135xf32, #tpu.memory_space<smem>>
    %c0_370 = arith.constant 0 : index
    %c0_371 = arith.constant 0 : index
    %c33_372 = arith.constant 33 : index
    %594 = vector.load %arg5[%c0_370, %c0_371, %c33_372] : memref<2x3x384xf32, #tpu.memory_space<vmem>>, vector<2x1x256xf32>
    %595 = vector.broadcast %593 : f32 to vector<2x1x256xf32>
    %596 = arith.mulf %595, %594 : vector<2x1x256xf32>
    %597 = arith.addf %592, %596 : vector<2x1x256xf32>
    %c116 = arith.constant 116 : index
    %598 = memref.load %arg2[%c116] : memref<135xf32, #tpu.memory_space<smem>>
    %c0_373 = arith.constant 0 : index
    %c0_374 = arith.constant 0 : index
    %c34_375 = arith.constant 34 : index
    %599 = vector.load %arg5[%c0_373, %c0_374, %c34_375] : memref<2x3x384xf32, #tpu.memory_space<vmem>>, vector<2x1x256xf32>
    %600 = vector.broadcast %598 : f32 to vector<2x1x256xf32>
    %601 = arith.mulf %600, %599 : vector<2x1x256xf32>
    %602 = arith.addf %597, %601 : vector<2x1x256xf32>
    %c117 = arith.constant 117 : index
    %603 = memref.load %arg2[%c117] : memref<135xf32, #tpu.memory_space<smem>>
    %c0_376 = arith.constant 0 : index
    %c1_377 = arith.constant 1 : index
    %c0_378 = arith.constant 0 : index
    %604 = vector.load %arg5[%c0_376, %c1_377, %c0_378] : memref<2x3x384xf32, #tpu.memory_space<vmem>>, vector<2x1x256xf32>
    %605 = vector.broadcast %603 : f32 to vector<2x1x256xf32>
    %606 = arith.mulf %605, %604 : vector<2x1x256xf32>
    %607 = arith.addf %602, %606 : vector<2x1x256xf32>
    %c118 = arith.constant 118 : index
    %608 = memref.load %arg2[%c118] : memref<135xf32, #tpu.memory_space<smem>>
    %c0_379 = arith.constant 0 : index
    %c1_380 = arith.constant 1 : index
    %c1_381 = arith.constant 1 : index
    %609 = vector.load %arg5[%c0_379, %c1_380, %c1_381] : memref<2x3x384xf32, #tpu.memory_space<vmem>>, vector<2x1x256xf32>
    %610 = vector.broadcast %608 : f32 to vector<2x1x256xf32>
    %611 = arith.mulf %610, %609 : vector<2x1x256xf32>
    %612 = arith.addf %607, %611 : vector<2x1x256xf32>
    %c119 = arith.constant 119 : index
    %613 = memref.load %arg2[%c119] : memref<135xf32, #tpu.memory_space<smem>>
    %c0_382 = arith.constant 0 : index
    %c1_383 = arith.constant 1 : index
    %c2_384 = arith.constant 2 : index
    %614 = vector.load %arg5[%c0_382, %c1_383, %c2_384] : memref<2x3x384xf32, #tpu.memory_space<vmem>>, vector<2x1x256xf32>
    %615 = vector.broadcast %613 : f32 to vector<2x1x256xf32>
    %616 = arith.mulf %615, %614 : vector<2x1x256xf32>
    %617 = arith.addf %612, %616 : vector<2x1x256xf32>
    %c120 = arith.constant 120 : index
    %618 = memref.load %arg2[%c120] : memref<135xf32, #tpu.memory_space<smem>>
    %c0_385 = arith.constant 0 : index
    %c1_386 = arith.constant 1 : index
    %c16_387 = arith.constant 16 : index
    %619 = vector.load %arg5[%c0_385, %c1_386, %c16_387] : memref<2x3x384xf32, #tpu.memory_space<vmem>>, vector<2x1x256xf32>
    %620 = vector.broadcast %618 : f32 to vector<2x1x256xf32>
    %621 = arith.mulf %620, %619 : vector<2x1x256xf32>
    %622 = arith.addf %617, %621 : vector<2x1x256xf32>
    %c121 = arith.constant 121 : index
    %623 = memref.load %arg2[%c121] : memref<135xf32, #tpu.memory_space<smem>>
    %c0_388 = arith.constant 0 : index
    %c1_389 = arith.constant 1 : index
    %c17_390 = arith.constant 17 : index
    %624 = vector.load %arg5[%c0_388, %c1_389, %c17_390] : memref<2x3x384xf32, #tpu.memory_space<vmem>>, vector<2x1x256xf32>
    %625 = vector.broadcast %623 : f32 to vector<2x1x256xf32>
    %626 = arith.mulf %625, %624 : vector<2x1x256xf32>
    %627 = arith.addf %622, %626 : vector<2x1x256xf32>
    %c122 = arith.constant 122 : index
    %628 = memref.load %arg2[%c122] : memref<135xf32, #tpu.memory_space<smem>>
    %c0_391 = arith.constant 0 : index
    %c1_392 = arith.constant 1 : index
    %c18_393 = arith.constant 18 : index
    %629 = vector.load %arg5[%c0_391, %c1_392, %c18_393] : memref<2x3x384xf32, #tpu.memory_space<vmem>>, vector<2x1x256xf32>
    %630 = vector.broadcast %628 : f32 to vector<2x1x256xf32>
    %631 = arith.mulf %630, %629 : vector<2x1x256xf32>
    %632 = arith.addf %627, %631 : vector<2x1x256xf32>
    %c123 = arith.constant 123 : index
    %633 = memref.load %arg2[%c123] : memref<135xf32, #tpu.memory_space<smem>>
    %c0_394 = arith.constant 0 : index
    %c1_395 = arith.constant 1 : index
    %c32_396 = arith.constant 32 : index
    %634 = vector.load %arg5[%c0_394, %c1_395, %c32_396] : memref<2x3x384xf32, #tpu.memory_space<vmem>>, vector<2x1x256xf32>
    %635 = vector.broadcast %633 : f32 to vector<2x1x256xf32>
    %636 = arith.mulf %635, %634 : vector<2x1x256xf32>
    %637 = arith.addf %632, %636 : vector<2x1x256xf32>
    %c124 = arith.constant 124 : index
    %638 = memref.load %arg2[%c124] : memref<135xf32, #tpu.memory_space<smem>>
    %c0_397 = arith.constant 0 : index
    %c1_398 = arith.constant 1 : index
    %c33_399 = arith.constant 33 : index
    %639 = vector.load %arg5[%c0_397, %c1_398, %c33_399] : memref<2x3x384xf32, #tpu.memory_space<vmem>>, vector<2x1x256xf32>
    %640 = vector.broadcast %638 : f32 to vector<2x1x256xf32>
    %641 = arith.mulf %640, %639 : vector<2x1x256xf32>
    %642 = arith.addf %637, %641 : vector<2x1x256xf32>
    %c125 = arith.constant 125 : index
    %643 = memref.load %arg2[%c125] : memref<135xf32, #tpu.memory_space<smem>>
    %c0_400 = arith.constant 0 : index
    %c1_401 = arith.constant 1 : index
    %c34_402 = arith.constant 34 : index
    %644 = vector.load %arg5[%c0_400, %c1_401, %c34_402] : memref<2x3x384xf32, #tpu.memory_space<vmem>>, vector<2x1x256xf32>
    %645 = vector.broadcast %643 : f32 to vector<2x1x256xf32>
    %646 = arith.mulf %645, %644 : vector<2x1x256xf32>
    %647 = arith.addf %642, %646 : vector<2x1x256xf32>
    %c126 = arith.constant 126 : index
    %648 = memref.load %arg2[%c126] : memref<135xf32, #tpu.memory_space<smem>>
    %c0_403 = arith.constant 0 : index
    %c2_404 = arith.constant 2 : index
    %c0_405 = arith.constant 0 : index
    %649 = vector.load %arg5[%c0_403, %c2_404, %c0_405] : memref<2x3x384xf32, #tpu.memory_space<vmem>>, vector<2x1x256xf32>
    %650 = vector.broadcast %648 : f32 to vector<2x1x256xf32>
    %651 = arith.mulf %650, %649 : vector<2x1x256xf32>
    %652 = arith.addf %647, %651 : vector<2x1x256xf32>
    %c127 = arith.constant 127 : index
    %653 = memref.load %arg2[%c127] : memref<135xf32, #tpu.memory_space<smem>>
    %c0_406 = arith.constant 0 : index
    %c2_407 = arith.constant 2 : index
    %c1_408 = arith.constant 1 : index
    %654 = vector.load %arg5[%c0_406, %c2_407, %c1_408] : memref<2x3x384xf32, #tpu.memory_space<vmem>>, vector<2x1x256xf32>
    %655 = vector.broadcast %653 : f32 to vector<2x1x256xf32>
    %656 = arith.mulf %655, %654 : vector<2x1x256xf32>
    %657 = arith.addf %652, %656 : vector<2x1x256xf32>
    %c128 = arith.constant 128 : index
    %658 = memref.load %arg2[%c128] : memref<135xf32, #tpu.memory_space<smem>>
    %c0_409 = arith.constant 0 : index
    %c2_410 = arith.constant 2 : index
    %c2_411 = arith.constant 2 : index
    %659 = vector.load %arg5[%c0_409, %c2_410, %c2_411] : memref<2x3x384xf32, #tpu.memory_space<vmem>>, vector<2x1x256xf32>
    %660 = vector.broadcast %658 : f32 to vector<2x1x256xf32>
    %661 = arith.mulf %660, %659 : vector<2x1x256xf32>
    %662 = arith.addf %657, %661 : vector<2x1x256xf32>
    %c129 = arith.constant 129 : index
    %663 = memref.load %arg2[%c129] : memref<135xf32, #tpu.memory_space<smem>>
    %c0_412 = arith.constant 0 : index
    %c2_413 = arith.constant 2 : index
    %c16_414 = arith.constant 16 : index
    %664 = vector.load %arg5[%c0_412, %c2_413, %c16_414] : memref<2x3x384xf32, #tpu.memory_space<vmem>>, vector<2x1x256xf32>
    %665 = vector.broadcast %663 : f32 to vector<2x1x256xf32>
    %666 = arith.mulf %665, %664 : vector<2x1x256xf32>
    %667 = arith.addf %662, %666 : vector<2x1x256xf32>
    %c130 = arith.constant 130 : index
    %668 = memref.load %arg2[%c130] : memref<135xf32, #tpu.memory_space<smem>>
    %c0_415 = arith.constant 0 : index
    %c2_416 = arith.constant 2 : index
    %c17_417 = arith.constant 17 : index
    %669 = vector.load %arg5[%c0_415, %c2_416, %c17_417] : memref<2x3x384xf32, #tpu.memory_space<vmem>>, vector<2x1x256xf32>
    %670 = vector.broadcast %668 : f32 to vector<2x1x256xf32>
    %671 = arith.mulf %670, %669 : vector<2x1x256xf32>
    %672 = arith.addf %667, %671 : vector<2x1x256xf32>
    %c131 = arith.constant 131 : index
    %673 = memref.load %arg2[%c131] : memref<135xf32, #tpu.memory_space<smem>>
    %c0_418 = arith.constant 0 : index
    %c2_419 = arith.constant 2 : index
    %c18_420 = arith.constant 18 : index
    %674 = vector.load %arg5[%c0_418, %c2_419, %c18_420] : memref<2x3x384xf32, #tpu.memory_space<vmem>>, vector<2x1x256xf32>
    %675 = vector.broadcast %673 : f32 to vector<2x1x256xf32>
    %676 = arith.mulf %675, %674 : vector<2x1x256xf32>
    %677 = arith.addf %672, %676 : vector<2x1x256xf32>
    %c132 = arith.constant 132 : index
    %678 = memref.load %arg2[%c132] : memref<135xf32, #tpu.memory_space<smem>>
    %c0_421 = arith.constant 0 : index
    %c2_422 = arith.constant 2 : index
    %c32_423 = arith.constant 32 : index
    %679 = vector.load %arg5[%c0_421, %c2_422, %c32_423] : memref<2x3x384xf32, #tpu.memory_space<vmem>>, vector<2x1x256xf32>
    %680 = vector.broadcast %678 : f32 to vector<2x1x256xf32>
    %681 = arith.mulf %680, %679 : vector<2x1x256xf32>
    %682 = arith.addf %677, %681 : vector<2x1x256xf32>
    %c133 = arith.constant 133 : index
    %683 = memref.load %arg2[%c133] : memref<135xf32, #tpu.memory_space<smem>>
    %c0_424 = arith.constant 0 : index
    %c2_425 = arith.constant 2 : index
    %c33_426 = arith.constant 33 : index
    %684 = vector.load %arg5[%c0_424, %c2_425, %c33_426] : memref<2x3x384xf32, #tpu.memory_space<vmem>>, vector<2x1x256xf32>
    %685 = vector.broadcast %683 : f32 to vector<2x1x256xf32>
    %686 = arith.mulf %685, %684 : vector<2x1x256xf32>
    %687 = arith.addf %682, %686 : vector<2x1x256xf32>
    %c134 = arith.constant 134 : index
    %688 = memref.load %arg2[%c134] : memref<135xf32, #tpu.memory_space<smem>>
    %c0_427 = arith.constant 0 : index
    %c2_428 = arith.constant 2 : index
    %c34_429 = arith.constant 34 : index
    %689 = vector.load %arg5[%c0_427, %c2_428, %c34_429] : memref<2x3x384xf32, #tpu.memory_space<vmem>>, vector<2x1x256xf32>
    %690 = vector.broadcast %688 : f32 to vector<2x1x256xf32>
    %691 = arith.mulf %690, %689 : vector<2x1x256xf32>
    %692 = arith.addf %687, %691 : vector<2x1x256xf32>
    %c0_430 = arith.constant 0 : index
    %c4_431 = arith.constant 4 : index
    %c0_432 = arith.constant 0 : index
    %693 = vector.load %arg4[%c0_430, %c4_431, %c0_432] : memref<2x5x256xf32, #tpu.memory_space<vmem>>, vector<2x1x256xf32>
    tpu.vector_store %arg4[%c0_430, %c4_431, %c0_432], %692 {strides = array<i32>} : memref<2x5x256xf32, #tpu.memory_space<vmem>>, vector<2x1x256xf32>,
    return
  }
  func.func @transform_0(%arg0: i32) -> (i32, i32, i32) {
    %c0_i32 = arith.constant 0 : i32
    %c0_i32_0 = arith.constant 0 : i32
    %c0_i32_1 = arith.constant 0 : i32
    return %arg0, %c0_i32, %c0_i32_0 : i32, i32, i32
  }
  func.func @transform_1(%arg0: i32) -> i32 {
    %c0_i32 = arith.constant 0 : i32
    %c0_i32_0 = arith.constant 0 : i32
    return %c0_i32 : i32
  }
  func.func @transform_2(%arg0: i32) -> i32 {
    %c0_i32 = arith.constant 0 : i32
    %c0_i32_0 = arith.constant 0 : i32
    return %c0_i32 : i32
  }
  func.func @transform_3(%arg0: i32) -> (i32, i32, i32) {
    %c0_i32 = arith.constant 0 : i32
    %c0_i32_0 = arith.constant 0 : i32
    %c0_i32_1 = arith.constant 0 : i32
    return %arg0, %c0_i32, %c0_i32_0 : i32, i32, i32
  }
}

</mosaic_0001>

<llo_original>
// kernel: _conv2d_pallas.1
$region0: #{_conv2d_pallas.1}
  #allocation0 [shape = 'u32[]', space=smem, size = 0x4, offset = 0x4, fixed_abs, tag = 'smem constant byte address 0x4 - core index']
  #allocation1 [shape = 'u32[144,128]{1,0:T(1,128)}', space=vmem, size = 0x12000, scoped, tag = 'internal scratch']
  #allocation2 [shape = 'f32[2,3,384]{2,1,0:T(4,128)}', space=vmem, size = 0x3000, scoped, tag = 'scratch operand']
  %s0 = inlined_call_operand.vmem [shape: f32[2,3,256], index: 0, kind: input, shape index: {}]
  %s1 = inlined_call_operand.vmem [shape: f32[135], index: 1, kind: input, shape index: {}]
  %s2 = inlined_call_operand.vmem [shape: f32[5], index: 2, kind: input, shape index: {}]
  %s3 = inlined_call_operand.vmem [shape: f32[2,5,256], index: 3, kind: output, shape index: {}]
  %s4 = sld [smem:[#allocation0]]
  $region30: #{_conv2d_pallas.1} parent=0
    _
  %s6 = ssub.s32 1, %s4
  %s7 = scalar_select 0, %s6, %s4
  $region1: #{_conv2d_pallas.1} parent=0
    #allocation3 [shape = 'u8[1024]{0}', space=smem, size = 0x400, scoped, tag = 'input window, operand 1, single buffered']
    #allocation4 [shape = 's32[1]{0}', space=sflag, size = 0x4, scoped, tag = 'scoped memory for _conv2d_pallas.1']
    #allocation5 [shape = 'u8[512]{0}', space=smem, size = 0x200, scoped, tag = 'input window, operand 2, single buffered']
    #allocation6 [shape = 's32[1]{0}', space=sflag, size = 0x4, scoped, tag = 'scoped memory for _conv2d_pallas.1']
    %8 = vsyncpa [#allocation4], 0
    %9 = vsyncpa [#allocation6], 0
    // Predicated region
    $region2: #{_conv2d_pallas.1} parent=1 // pred_check
      _
    $region3: #{_conv2d_pallas.1} parent=1 // pred_check_branch
      %11 = sbr.rel (0) target = $region5
    $region4: #{_conv2d_pallas.1} parent=1 // pred_region
      _
    $region5: #{_conv2d_pallas.1} parent=1 // pred_fallthru
      _
    // Predicated region
    $region6: #{_conv2d_pallas.1} parent=1 // pred_check
      _
    $region7: #{_conv2d_pallas.1} parent=1 // pred_check_branch
      %13 = sbr.rel (0) target = $region9
    $region8: #{_conv2d_pallas.1} parent=1 // pred_region
      %s15 = ssub.s32 32, 32
      %16 = vsyncadd [#allocation4], %s15
      %s18 = sshll.u32 %s1, 4
      %s19 = int_to_ptr.vmem [resolvable:$true] %s18
      %21 = dma.vmem_to_smem %s19, 32, [#allocation3], [#allocation4]
    $region9: #{_conv2d_pallas.1} parent=1 // pred_fallthru
      _
    // Predicated region
    $region10: #{_conv2d_pallas.1} parent=1 // pred_check
      _
    $region11: #{_conv2d_pallas.1} parent=1 // pred_check_branch
      %23 = sbr.rel (0) target = $region13
    $region12: #{_conv2d_pallas.1} parent=1 // pred_region
      %s25 = ssub.s32 16, 16
      %26 = vsyncadd [#allocation6], %s25
      %s28 = sshll.u32 %s2, 4
      %s29 = int_to_ptr.vmem [resolvable:$true] %s28
      %31 = dma.vmem_to_smem %s29, 16, [#allocation5], [#allocation6]
    $region13: #{_conv2d_pallas.1} parent=1 // pred_fallthru
      _
    // Predicated region
    $region14: #{_conv2d_pallas.1} parent=1 // pred_check
      _
    $region15: #{_conv2d_pallas.1} parent=1 // pred_check_branch
      %33 = sbr.rel (0) target = $region17
    $region16: #{_conv2d_pallas.1} parent=1 // pred_region
      %34 = dma.done [#allocation4], 32
    $region17: #{_conv2d_pallas.1} parent=1 // pred_fallthru
      _
    // Predicated region
    $region18: #{_conv2d_pallas.1} parent=1 // pred_check
      _
    $region19: #{_conv2d_pallas.1} parent=1 // pred_check_branch
      %36 = sbr.rel (0) target = $region21
    $region20: #{_conv2d_pallas.1} parent=1 // pred_region
      %37 = dma.done [#allocation6], 16
    $region21: #{_conv2d_pallas.1} parent=1 // pred_fallthru
      _
    %38 = sfence
    %v39 = vld [vmem:[%s0] sm:$0x77]
    %v40 = vld [vmem:[%s0 + $0x8] sm:$0x77]
    %41 = vst [vmem:[#allocation2] sm:$0x77] %v39
    %42 = vst [vmem:[#allocation2 + $0xc] sm:$0x77] %v40
    %43 = vst [vmem:[#allocation2 + $0x8] sm:$0x7] 0.0
    %44 = vst [vmem:[#allocation2 + $0x14] sm:$0x7] 0.0
    %s45 = sld [smem:[#allocation5]]
    %v46 = vstv %s45
    %s47 = sld [smem:[#allocation3]]
    %v48 = vld [vmem:[#allocation2] ss:$4 sm:$0x3]
    %s49 = scalar_lea.vmem [#allocation2], 12
    %v50 = vld [vmem:[%s49] ss:$4 sm:$0x3]
    %v51 = vstv %s47
    %v52 = vmul.f32 %v51, %v48
    %v53 = vmul.f32 %v51, %v50
    %v54 = vadd.f32 %v46, %v52
    %v55 = vadd.f32 %v46, %v53
    %s56 = sld [smem:[#allocation3 + $0x1]]
    %v57 = vld [vmem:[#allocation2] ss:$4 sm:$0x7]
    %v58 = vld [vmem:[%s49] ss:$4 sm:$0x7]
    %v59 = vstv %s56
    %v60 = vmul.f32 %v59, %v57
    %v61 = vmul.f32 %v59, %v58
    %64 = vrot.lane.b32.xlu0 %v60, 127
    %v65 = vpop.permute.xlu0 %64
    %66 = vrot.lane.b32.xlu0 %v61, 127
    %v67 = vpop.permute.xlu0 %66
    %v68 = vrot.slane %v65, 1
    %v69 = vrot.slane %v67, 1
    %vm70 = vcmask 1039360
    %v71 = vsel %vm70, %v65, %v68
    %v72 = vsel %vm70, %v67, %v69
    %v75 = vadd.f32 %v54, %v71
    %v76 = vadd.f32 %v55, %v72
    %s77 = sld [smem:[#allocation3 + $0x2]]
    %v78 = vstv %s77
    %v79 = vmul.f32 %v78, %v57
    %v80 = vmul.f32 %v78, %v58
    %83 = vrot.lane.b32.xlu0 %v79, 126
    %v84 = vpop.permute.xlu0 %83
    %85 = vrot.lane.b32.xlu0 %v80, 126
    %v86 = vpop.permute.xlu0 %85
    %v87 = vrot.slane %v84, 1
    %v88 = vrot.slane %v86, 1
    %vm89 = vcmask 1031168
    %v90 = vsel %vm89, %v84, %v87
    %v91 = vsel %vm89, %v86, %v88
    %v94 = vadd.f32 %v75, %v90
    %v95 = vadd.f32 %v76, %v91
    %s96 = sld [smem:[#allocation3 + $0x3]]
    %v97 = vstv %s96
    %v98 = vmul.f32 %v97, %v57
    %v99 = vmul.f32 %v97, %v58
    %102 = vrot.lane.b32.xlu0 %v98, 112
    %v103 = vpop.permute.xlu0 %102
    %104 = vrot.lane.b32.xlu0 %v99, 112
    %v105 = vpop.permute.xlu0 %104
    %v106 = vrot.slane %v103, 1
    %v107 = vrot.slane %v105, 1
    %vm108 = vcmask 916480
    %v109 = vsel %vm108, %v103, %v106
    %v110 = vsel %vm108, %v105, %v107
    %v113 = vadd.f32 %v94, %v109
    %v114 = vadd.f32 %v95, %v110
    %s115 = sld [smem:[#allocation3 + $0x4]]
    %v116 = vstv %s115
    %v117 = vmul.f32 %v116, %v57
    %v118 = vmul.f32 %v116, %v58
    %121 = vrot.lane.b32.xlu0 %v117, 111
    %v122 = vpop.permute.xlu0 %121
    %123 = vrot.lane.b32.xlu0 %v118, 111
    %v124 = vpop.permute.xlu0 %123
    %v125 = vrot.slane %v122, 1
    %v126 = vrot.slane %v124, 1
    %vm127 = vcmask 908288
    %v128 = vsel %vm127, %v122, %v125
    %v129 = vsel %vm127, %v124, %v126
    %v132 = vadd.f32 %v113, %v128
    %v133 = vadd.f32 %v114, %v129
    %s134 = sld [smem:[#allocation3 + $0x5]]
    %v135 = vstv %s134
    %v136 = vmul.f32 %v135, %v57
    %v137 = vmul.f32 %v135, %v58
    %140 = vrot.lane.b32.xlu0 %v136, 110
    %v141 = vpop.permute.xlu0 %140
    %142 = vrot.lane.b32.xlu0 %v137, 110
    %v143 = vpop.permute.xlu0 %142
    %v144 = vrot.slane %v141, 1
    %v145 = vrot.slane %v143, 1
    %vm146 = vcmask 900096
    %v147 = vsel %vm146, %v141, %v144
    %v148 = vsel %vm146, %v143, %v145
    %v151 = vadd.f32 %v132, %v147
    %v152 = vadd.f32 %v133, %v148
    %s153 = sld [smem:[#allocation3 + $0x6]]
    %v154 = vstv %s153
    %v155 = vmul.f32 %v154, %v57
    %v156 = vmul.f32 %v154, %v58
    %159 = vrot.lane.b32.xlu0 %v155, 96
    %v160 = vpop.permute.xlu0 %159
    %161 = vrot.lane.b32.xlu0 %v156, 96
    %v162 = vpop.permute.xlu0 %161
    %v163 = vrot.slane %v160, 1
    %v164 = vrot.slane %v162, 1
    %vm165 = vcmask 785408
    %v166 = vsel %vm165, %v160, %v163
    %v167 = vsel %vm165, %v162, %v164
    %v170 = vadd.f32 %v151, %v166
    %v171 = vadd.f32 %v152, %v167
    %s172 = sld [smem:[#allocation3 + $0x7]]
    %v173 = vstv %s172
    %v174 = vmul.f32 %v173, %v57
    %v175 = vmul.f32 %v173, %v58
    %178 = vrot.lane.b32.xlu0 %v174, 95
    %v179 = vpop.permute.xlu0 %178
    %180 = vrot.lane.b32.xlu0 %v175, 95
    %v181 = vpop.permute.xlu0 %180
    %v182 = vrot.slane %v179, 1
    %v183 = vrot.slane %v181, 1
    %vm184 = vcmask 777216
    %v185 = vsel %vm184, %v179, %v182
    %v186 = vsel %vm184, %v181, %v183
    %v189 = vadd.f32 %v170, %v185
    %v190 = vadd.f32 %v171, %v186
    %s191 = sld [smem:[#allocation3 + $0x8]]
    %v192 = vstv %s191
    %v193 = vmul.f32 %v192, %v57
    %v194 = vmul.f32 %v192, %v58
    %197 = vrot.lane.b32.xlu0 %v193, 94
    %v198 = vpop.permute.xlu0 %197
    %199 = vrot.lane.b32.xlu0 %v194, 94
    %v200 = vpop.permute.xlu0 %199
    %v201 = vrot.slane %v198, 1
    %v202 = vrot.slane %v200, 1
    %vm203 = vcmask 769024
    %v204 = vsel %vm203, %v198, %v201
    %v205 = vsel %vm203, %v200, %v202
    %v208 = vadd.f32 %v189, %v204
    %v209 = vadd.f32 %v190, %v205
    %s210 = sld [smem:[#allocation3 + $0x9]]
    %s211 = scalar_lea.vmem [#allocation2], 1
    %v212 = vld [vmem:[%s211] ss:$4 sm:$0x3]
    %s213 = scalar_lea.vmem [#allocation2], 13
    %v214 = vld [vmem:[%s213] ss:$4 sm:$0x3]
    %v215 = vstv %s210
    %v216 = vmul.f32 %v215, %v212
    %v217 = vmul.f32 %v215, %v214
    %v218 = vadd.f32 %v208, %v216
    %v219 = vadd.f32 %v209, %v217
    %s220 = sld [smem:[#allocation3 + $0xa]]
    %v221 = vld [vmem:[%s211] ss:$4 sm:$0x7]
    %v222 = vld [vmem:[%s213] ss:$4 sm:$0x7]
    %v223 = vstv %s220
    %v224 = vmul.f32 %v223, %v221
    %v225 = vmul.f32 %v223, %v222
    %228 = vrot.lane.b32.xlu0 %v224, 127
    %v229 = vpop.permute.xlu0 %228
    %230 = vrot.lane.b32.xlu0 %v225, 127
    %v231 = vpop.permute.xlu0 %230
    %v232 = vrot.slane %v229, 1
    %v233 = vrot.slane %v231, 1
    %v234 = vsel %vm70, %v229, %v232
    %v235 = vsel %vm70, %v231, %v233
    %v238 = vadd.f32 %v218, %v234
    %v239 = vadd.f32 %v219, %v235
    %s240 = sld [smem:[#allocation3 + $0xb]]
    %v241 = vstv %s240
    %v242 = vmul.f32 %v241, %v221
    %v243 = vmul.f32 %v241, %v222
    %246 = vrot.lane.b32.xlu0 %v242, 126
    %v247 = vpop.permute.xlu0 %246
    %248 = vrot.lane.b32.xlu0 %v243, 126
    %v249 = vpop.permute.xlu0 %248
    %v250 = vrot.slane %v247, 1
    %v251 = vrot.slane %v249, 1
    %v252 = vsel %vm89, %v247, %v250
    %v253 = vsel %vm89, %v249, %v251
    %v256 = vadd.f32 %v238, %v252
    %v257 = vadd.f32 %v239, %v253
    %s258 = sld [smem:[#allocation3 + $0xc]]
    %v259 = vstv %s258
    %v260 = vmul.f32 %v259, %v221
    %v261 = vmul.f32 %v259, %v222
    %264 = vrot.lane.b32.xlu0 %v260, 112
    %v265 = vpop.permute.xlu0 %264
    %266 = vrot.lane.b32.xlu0 %v261, 112
    %v267 = vpop.permute.xlu0 %266
    %v268 = vrot.slane %v265, 1
    %v269 = vrot.slane %v267, 1
    %v270 = vsel %vm108, %v265, %v268
    %v271 = vsel %vm108, %v267, %v269
    %v274 = vadd.f32 %v256, %v270
    %v275 = vadd.f32 %v257, %v271
    %s276 = sld [smem:[#allocation3 + $0xd]]
    %v277 = vstv %s276
    %v278 = vmul.f32 %v277, %v221
    %v279 = vmul.f32 %v277, %v222
    %282 = vrot.lane.b32.xlu0 %v278, 111
    %v283 = vpop.permute.xlu0 %282
    %284 = vrot.lane.b32.xlu0 %v279, 111
    %v285 = vpop.permute.xlu0 %284
    %v286 = vrot.slane %v283, 1
    %v287 = vrot.slane %v285, 1
    %v288 = vsel %vm127, %v283, %v286
    %v289 = vsel %vm127, %v285, %v287
    %v292 = vadd.f32 %v274, %v288
    %v293 = vadd.f32 %v275, %v289
    %s294 = sld [smem:[#allocation3 + $0xe]]
    %v295 = vstv %s294
    %v296 = vmul.f32 %v295, %v221
    %v297 = vmul.f32 %v295, %v222
    %300 = vrot.lane.b32.xlu0 %v296, 110
    %v301 = vpop.permute.xlu0 %300
    %302 = vrot.lane.b32.xlu0 %v297, 110
    %v303 = vpop.permute.xlu0 %302
    %v304 = vrot.slane %v301, 1
    %v305 = vrot.slane %v303, 1
    %v306 = vsel %vm146, %v301, %v304
    %v307 = vsel %vm146, %v303, %v305
    %v310 = vadd.f32 %v292, %v306
    %v311 = vadd.f32 %v293, %v307
    %s312 = sld [smem:[#allocation3 + $0xf]]
    %v313 = vstv %s312
    %v314 = vmul.f32 %v313, %v221
    %v315 = vmul.f32 %v313, %v222
    %318 = vrot.lane.b32.xlu0 %v314, 96
    %v319 = vpop.permute.xlu0 %318
    %320 = vrot.lane.b32.xlu0 %v315, 96
    %v321 = vpop.permute.xlu0 %320
    %v322 = vrot.slane %v319, 1
    %v323 = vrot.slane %v321, 1
    %v324 = vsel %vm165, %v319, %v322
    %v325 = vsel %vm165, %v321, %v323
    %v328 = vadd.f32 %v310, %v324
    %v329 = vadd.f32 %v311, %v325
    %s330 = sld [smem:[#allocation3 + $0x10]]
    %v331 = vstv %s330
    %v332 = vmul.f32 %v331, %v221
    %v333 = vmul.f32 %v331, %v222
    %336 = vrot.lane.b32.xlu0 %v332, 95
    %v337 = vpop.permute.xlu0 %336
    %338 = vrot.lane.b32.xlu0 %v333, 95
    %v339 = vpop.permute.xlu0 %338
    %v340 = vrot.slane %v337, 1
    %v341 = vrot.slane %v339, 1
    %v342 = vsel %vm184, %v337, %v340
    %v343 = vsel %vm184, %v339, %v341
    %v346 = vadd.f32 %v328, %v342
    %v347 = vadd.f32 %v329, %v343
    %s348 = sld [smem:[#allocation3 + $0x11]]
    %v349 = vstv %s348
    %v350 = vmul.f32 %v349, %v221
    %v351 = vmul.f32 %v349, %v222
    %354 = vrot.lane.b32.xlu0 %v350, 94
    %v355 = vpop.permute.xlu0 %354
    %356 = vrot.lane.b32.xlu0 %v351, 94
    %v357 = vpop.permute.xlu0 %356
    %v358 = vrot.slane %v355, 1
    %v359 = vrot.slane %v357, 1
    %v360 = vsel %vm203, %v355, %v358
    %v361 = vsel %vm203, %v357, %v359
    %v364 = vadd.f32 %v346, %v360
    %v365 = vadd.f32 %v347, %v361
    %s366 = sld [smem:[#allocation3 + $0x12]]
    %s367 = scalar_lea.vmem [#allocation2], 2
    %v368 = vld [vmem:[%s367] ss:$4 sm:$0x3]
    %s369 = scalar_lea.vmem [#allocation2], 14
    %v370 = vld [vmem:[%s369] ss:$4 sm:$0x3]
    %v371 = vstv %s366
    %v372 = vmul.f32 %v371, %v368
    %v373 = vmul.f32 %v371, %v370
    %v374 = vadd.f32 %v364, %v372
    %v375 = vadd.f32 %v365, %v373
    %s376 = sld [smem:[#allocation3 + $0x13]]
    %v377 = vld [vmem:[%s367] ss:$4 sm:$0x7]
    %v378 = vld [vmem:[%s369] ss:$4 sm:$0x7]
    %v379 = vstv %s376
    %v380 = vmul.f32 %v379, %v377
    %v381 = vmul.f32 %v379, %v378
    %384 = vrot.lane.b32.xlu0 %v380, 127
    %v385 = vpop.permute.xlu0 %384
    %386 = vrot.lane.b32.xlu0 %v381, 127
    %v387 = vpop.permute.xlu0 %386
    %v388 = vrot.slane %v385, 1
    %v389 = vrot.slane %v387, 1
    %v390 = vsel %vm70, %v385, %v388
    %v391 = vsel %vm70, %v387, %v389
    %v394 = vadd.f32 %v374, %v390
    %v395 = vadd.f32 %v375, %v391
    %s396 = sld [smem:[#allocation3 + $0x14]]
    %v397 = vstv %s396
    %v398 = vmul.f32 %v397, %v377
    %v399 = vmul.f32 %v397, %v378
    %402 = vrot.lane.b32.xlu0 %v398, 126
    %v403 = vpop.permute.xlu0 %402
    %404 = vrot.lane.b32.xlu0 %v399, 126
    %v405 = vpop.permute.xlu0 %404
    %v406 = vrot.slane %v403, 1
    %v407 = vrot.slane %v405, 1
    %v408 = vsel %vm89, %v403, %v406
    %v409 = vsel %vm89, %v405, %v407
    %v412 = vadd.f32 %v394, %v408
    %v413 = vadd.f32 %v395, %v409
    %s414 = sld [smem:[#allocation3 + $0x15]]
    %v415 = vstv %s414
    %v416 = vmul.f32 %v415, %v377
    %v417 = vmul.f32 %v415, %v378
    %420 = vrot.lane.b32.xlu0 %v416, 112
    %v421 = vpop.permute.xlu0 %420
    %422 = vrot.lane.b32.xlu0 %v417, 112
    %v423 = vpop.permute.xlu0 %422
    %v424 = vrot.slane %v421, 1
    %v425 = vrot.slane %v423, 1
    %v426 = vsel %vm108, %v421, %v424
    %v427 = vsel %vm108, %v423, %v425
    %v430 = vadd.f32 %v412, %v426
    %v431 = vadd.f32 %v413, %v427
    %s432 = sld [smem:[#allocation3 + $0x16]]
    %v433 = vstv %s432
    %v434 = vmul.f32 %v433, %v377
    %v435 = vmul.f32 %v433, %v378
    %438 = vrot.lane.b32.xlu0 %v434, 111
    %v439 = vpop.permute.xlu0 %438
    %440 = vrot.lane.b32.xlu0 %v435, 111
    %v441 = vpop.permute.xlu0 %440
    %v442 = vrot.slane %v439, 1
    %v443 = vrot.slane %v441, 1
    %v444 = vsel %vm127, %v439, %v442
    %v445 = vsel %vm127, %v441, %v443
    %v448 = vadd.f32 %v430, %v444
    %v449 = vadd.f32 %v431, %v445
    %s450 = sld [smem:[#allocation3 + $0x17]]
    %v451 = vstv %s450
    %v452 = vmul.f32 %v451, %v377
    %v453 = vmul.f32 %v451, %v378
    %456 = vrot.lane.b32.xlu0 %v452, 110
    %v457 = vpop.permute.xlu0 %456
    %458 = vrot.lane.b32.xlu0 %v453, 110
    %v459 = vpop.permute.xlu0 %458
    %v460 = vrot.slane %v457, 1
    %v461 = vrot.slane %v459, 1
    %v462 = vsel %vm146, %v457, %v460
    %v463 = vsel %vm146, %v459, %v461
    %v466 = vadd.f32 %v448, %v462
    %v467 = vadd.f32 %v449, %v463
    %s468 = sld [smem:[#allocation3 + $0x18]]
    %v469 = vstv %s468
    %v470 = vmul.f32 %v469, %v377
    %v471 = vmul.f32 %v469, %v378
    %474 = vrot.lane.b32.xlu0 %v470, 96
    %v475 = vpop.permute.xlu0 %474
    %476 = vrot.lane.b32.xlu0 %v471, 96
    %v477 = vpop.permute.xlu0 %476
    %v478 = vrot.slane %v475, 1
    %v479 = vrot.slane %v477, 1
    %v480 = vsel %vm165, %v475, %v478
    %v481 = vsel %vm165, %v477, %v479
    %v484 = vadd.f32 %v466, %v480
    %v485 = vadd.f32 %v467, %v481
    %s486 = sld [smem:[#allocation3 + $0x19]]
    %v487 = vstv %s486
    %v488 = vmul.f32 %v487, %v377
    %v489 = vmul.f32 %v487, %v378
    %492 = vrot.lane.b32.xlu0 %v488, 95
    %v493 = vpop.permute.xlu0 %492
    %494 = vrot.lane.b32.xlu0 %v489, 95
    %v495 = vpop.permute.xlu0 %494
    %v496 = vrot.slane %v493, 1
    %v497 = vrot.slane %v495, 1
    %v498 = vsel %vm184, %v493, %v496
    %v499 = vsel %vm184, %v495, %v497
    %v502 = vadd.f32 %v484, %v498
    %v503 = vadd.f32 %v485, %v499
    %s504 = sld [smem:[#allocation3 + $0x1a]]
    %v505 = vstv %s504
    %v506 = vmul.f32 %v505, %v377
    %v507 = vmul.f32 %v505, %v378
    %510 = vrot.lane.b32.xlu0 %v506, 94
    %v511 = vpop.permute.xlu0 %510
    %512 = vrot.lane.b32.xlu0 %v507, 94
    %v513 = vpop.permute.xlu0 %512
    %v514 = vrot.slane %v511, 1
    %v515 = vrot.slane %v513, 1
    %v516 = vsel %vm203, %v511, %v514
    %v517 = vsel %vm203, %v513, %v515
    %v520 = vadd.f32 %v502, %v516
    %v521 = vadd.f32 %v503, %v517
    %v522 = vlaneseq
    %vm523 = vcmp.ge.s32.totalorder %v522, 0
    %vm524 = vcmp.lt.s32.totalorder %v522, 256
    %vm525 = vmand %vm523, %vm524
    %526 = vst.msk [vmem:[%s3] ss:$8 sm:$0x3] %vm525, %v520
    %527 = vst.msk [vmem:[%s3] ss:$8 sm:$0x0] %vm525, %v520
    %s528 = scalar_lea.vmem %s3, 16
    %529 = vst.msk [vmem:[%s528] ss:$8 sm:$0x3] %vm525, %v521
    %530 = vst.msk [vmem:[%s528] ss:$8 sm:$0x0] %vm525, %v521
    %s531 = sld [smem:[#allocation5 + $0x1]]
    %v532 = vstv %s531
    %s533 = sld [smem:[#allocation3 + $0x1b]]
    %v534 = vld [vmem:[#allocation2] ss:$4 sm:$0x3]
    %v535 = vld [vmem:[%s49] ss:$4 sm:$0x3]
    %v536 = vstv %s533
    %v537 = vmul.f32 %v536, %v534
    %v538 = vmul.f32 %v536, %v535
    %v539 = vadd.f32 %v532, %v537
    %v540 = vadd.f32 %v532, %v538
    %s541 = sld [smem:[#allocation3 + $0x1c]]
    %v542 = vld [vmem:[#allocation2] ss:$4 sm:$0x7]
    %v543 = vld [vmem:[%s49] ss:$4 sm:$0x7]
    %v544 = vstv %s541
    %v545 = vmul.f32 %v544, %v542
    %v546 = vmul.f32 %v544, %v543
    %549 = vrot.lane.b32.xlu0 %v545, 127
    %v550 = vpop.permute.xlu0 %549
    %551 = vrot.lane.b32.xlu0 %v546, 127
    %v552 = vpop.permute.xlu0 %551
    %v553 = vrot.slane %v550, 1
    %v554 = vrot.slane %v552, 1
    %v555 = vsel %vm70, %v550, %v553
    %v556 = vsel %vm70, %v552, %v554
    %v559 = vadd.f32 %v539, %v555
    %v560 = vadd.f32 %v540, %v556
    %s561 = sld [smem:[#allocation3 + $0x1d]]
    %v562 = vstv %s561
    %v563 = vmul.f32 %v562, %v542
    %v564 = vmul.f32 %v562, %v543
    %567 = vrot.lane.b32.xlu0 %v563, 126
    %v568 = vpop.permute.xlu0 %567
    %569 = vrot.lane.b32.xlu0 %v564, 126
    %v570 = vpop.permute.xlu0 %569
    %v571 = vrot.slane %v568, 1
    %v572 = vrot.slane %v570, 1
    %v573 = vsel %vm89, %v568, %v571
    %v574 = vsel %vm89, %v570, %v572
    %v577 = vadd.f32 %v559, %v573
    %v578 = vadd.f32 %v560, %v574
    %s579 = sld [smem:[#allocation3 + $0x1e]]
    %v580 = vstv %s579
    %v581 = vmul.f32 %v580, %v542
    %v582 = vmul.f32 %v580, %v543
    %585 = vrot.lane.b32.xlu0 %v581, 112
    %v586 = vpop.permute.xlu0 %585
    %587 = vrot.lane.b32.xlu0 %v582, 112
    %v588 = vpop.permute.xlu0 %587
    %v589 = vrot.slane %v586, 1
    %v590 = vrot.slane %v588, 1
    %v591 = vsel %vm108, %v586, %v589
    %v592 = vsel %vm108, %v588, %v590
    %v595 = vadd.f32 %v577, %v591
    %v596 = vadd.f32 %v578, %v592
    %s597 = sld [smem:[#allocation3 + $0x1f]]
    %v598 = vstv %s597
    %v599 = vmul.f32 %v598, %v542
    %v600 = vmul.f32 %v598, %v543
    %603 = vrot.lane.b32.xlu0 %v599, 111
    %v604 = vpop.permute.xlu0 %603
    %605 = vrot.lane.b32.xlu0 %v600, 111
    %v606 = vpop.permute.xlu0 %605
    %v607 = vrot.slane %v604, 1
    %v608 = vrot.slane %v606, 1
    %v609 = vsel %vm127, %v604, %v607
    %v610 = vsel %vm127, %v606, %v608
    %v613 = vadd.f32 %v595, %v609
    %v614 = vadd.f32 %v596, %v610
    %s615 = sld [smem:[#allocation3 + $0x20]]
    %v616 = vstv %s615
    %v617 = vmul.f32 %v616, %v542
    %v618 = vmul.f32 %v616, %v543
    %621 = vrot.lane.b32.xlu0 %v617, 110
    %v622 = vpop.permute.xlu0 %621
    %623 = vrot.lane.b32.xlu0 %v618, 110
    %v624 = vpop.permute.xlu0 %623
    %v625 = vrot.slane %v622, 1
    %v626 = vrot.slane %v624, 1
    %v627 = vsel %vm146, %v622, %v625
    %v628 = vsel %vm146, %v624, %v626
    %v631 = vadd.f32 %v613, %v627
    %v632 = vadd.f32 %v614, %v628
    %s633 = sld [smem:[#allocation3 + $0x21]]
    %v634 = vstv %s633
    %v635 = vmul.f32 %v634, %v542
    %v636 = vmul.f32 %v634, %v543
    %639 = vrot.lane.b32.xlu0 %v635, 96
    %v640 = vpop.permute.xlu0 %639
    %641 = vrot.lane.b32.xlu0 %v636, 96
    %v642 = vpop.permute.xlu0 %641
    %v643 = vrot.slane %v640, 1
    %v644 = vrot.slane %v642, 1
    %v645 = vsel %vm165, %v640, %v643
    %v646 = vsel %vm165, %v642, %v644
    %v649 = vadd.f32 %v631, %v645
    %v650 = vadd.f32 %v632, %v646
    %s651 = sld [smem:[#allocation3 + $0x22]]
    %v652 = vstv %s651
    %v653 = vmul.f32 %v652, %v542
    %v654 = vmul.f32 %v652, %v543
    %657 = vrot.lane.b32.xlu0 %v653, 95
    %v658 = vpop.permute.xlu0 %657
    %659 = vrot.lane.b32.xlu0 %v654, 95
    %v660 = vpop.permute.xlu0 %659
    %v661 = vrot.slane %v658, 1
    %v662 = vrot.slane %v660, 1
    %v663 = vsel %vm184, %v658, %v661
    %v664 = vsel %vm184, %v660, %v662
    %v667 = vadd.f32 %v649, %v663
    %v668 = vadd.f32 %v650, %v664
    %s669 = sld [smem:[#allocation3 + $0x23]]
    %v670 = vstv %s669
    %v671 = vmul.f32 %v670, %v542
    %v672 = vmul.f32 %v670, %v543
    %675 = vrot.lane.b32.xlu0 %v671, 94
    %v676 = vpop.permute.xlu0 %675
    %677 = vrot.lane.b32.xlu0 %v672, 94
    %v678 = vpop.permute.xlu0 %677
    %v679 = vrot.slane %v676, 1
    %v680 = vrot.slane %v678, 1
    %v681 = vsel %vm203, %v676, %v679
    %v682 = vsel %vm203, %v678, %v680
    %v685 = vadd.f32 %v667, %v681
    %v686 = vadd.f32 %v668, %v682
    %s687 = sld [smem:[#allocation3 + $0x24]]
    %v688 = vld [vmem:[%s211] ss:$4 sm:$0x3]
    %v689 = vld [vmem:[%s213] ss:$4 sm:$0x3]
    %v690 = vstv %s687
    %v691 = vmul.f32 %v690, %v688
    %v692 = vmul.f32 %v690, %v689
    %v693 = vadd.f32 %v685, %v691
    %v694 = vadd.f32 %v686, %v692
    %s695 = sld [smem:[#allocation3 + $0x25]]
    %v696 = vld [vmem:[%s211] ss:$4 sm:$0x7]
    %v697 = vld [vmem:[%s213] ss:$4 sm:$0x7]
    %v698 = vstv %s695
    %v699 = vmul.f32 %v698, %v696
    %v700 = vmul.f32 %v698, %v697
    %703 = vrot.lane.b32.xlu0 %v699, 127
    %v704 = vpop.permute.xlu0 %703
    %705 = vrot.lane.b32.xlu0 %v700, 127
    %v706 = vpop.permute.xlu0 %705
    %v707 = vrot.slane %v704, 1
    %v708 = vrot.slane %v706, 1
    %v709 = vsel %vm70, %v704, %v707
    %v710 = vsel %vm70, %v706, %v708
    %v713 = vadd.f32 %v693, %v709
    %v714 = vadd.f32 %v694, %v710
    %s715 = sld [smem:[#allocation3 + $0x26]]
    %v716 = vstv %s715
    %v717 = vmul.f32 %v716, %v696
    %v718 = vmul.f32 %v716, %v697
    %721 = vrot.lane.b32.xlu0 %v717, 126
    %v722 = vpop.permute.xlu0 %721
    %723 = vrot.lane.b32.xlu0 %v718, 126
    %v724 = vpop.permute.xlu0 %723
    %v725 = vrot.slane %v722, 1
    %v726 = vrot.slane %v724, 1
    %v727 = vsel %vm89, %v722, %v725
    %v728 = vsel %vm89, %v724, %v726
    %v731 = vadd.f32 %v713, %v727
    %v732 = vadd.f32 %v714, %v728
    %s733 = sld [smem:[#allocation3 + $0x27]]
    %v734 = vstv %s733
    %v735 = vmul.f32 %v734, %v696
    %v736 = vmul.f32 %v734, %v697
    %739 = vrot.lane.b32.xlu0 %v735, 112
    %v740 = vpop.permute.xlu0 %739
    %741 = vrot.lane.b32.xlu0 %v736, 112
    %v742 = vpop.permute.xlu0 %741
    %v743 = vrot.slane %v740, 1
    %v744 = vrot.slane %v742, 1
    %v745 = vsel %vm108, %v740, %v743
    %v746 = vsel %vm108, %v742, %v744
    %v749 = vadd.f32 %v731, %v745
    %v750 = vadd.f32 %v732, %v746
    %s751 = sld [smem:[#allocation3 + $0x28]]
    %v752 = vstv %s751
    %v753 = vmul.f32 %v752, %v696
    %v754 = vmul.f32 %v752, %v697
    %757 = vrot.lane.b32.xlu0 %v753, 111
    %v758 = vpop.permute.xlu0 %757
    %759 = vrot.lane.b32.xlu0 %v754, 111
    %v760 = vpop.permute.xlu0 %759
    %v761 = vrot.slane %v758, 1
    %v762 = vrot.slane %v760, 1
    %v763 = vsel %vm127, %v758, %v761
    %v764 = vsel %vm127, %v760, %v762
    %v767 = vadd.f32 %v749, %v763
    %v768 = vadd.f32 %v750, %v764
    %s769 = sld [smem:[#allocation3 + $0x29]]
    %v770 = vstv %s769
    %v771 = vmul.f32 %v770, %v696
    %v772 = vmul.f32 %v770, %v697
    %775 = vrot.lane.b32.xlu0 %v771, 110
    %v776 = vpop.permute.xlu0 %775
    %777 = vrot.lane.b32.xlu0 %v772, 110
    %v778 = vpop.permute.xlu0 %777
    %v779 = vrot.slane %v776, 1
    %v780 = vrot.slane %v778, 1
    %v781 = vsel %vm146, %v776, %v779
    %v782 = vsel %vm146, %v778, %v780
    %v785 = vadd.f32 %v767, %v781
    %v786 = vadd.f32 %v768, %v782
    %s787 = sld [smem:[#allocation3 + $0x2a]]
    %v788 = vstv %s787
    %v789 = vmul.f32 %v788, %v696
    %v790 = vmul.f32 %v788, %v697
    %793 = vrot.lane.b32.xlu0 %v789, 96
    %v794 = vpop.permute.xlu0 %793
    %795 = vrot.lane.b32.xlu0 %v790, 96
    %v796 = vpop.permute.xlu0 %795
    %v797 = vrot.slane %v794, 1
    %v798 = vrot.slane %v796, 1
    %v799 = vsel %vm165, %v794, %v797
    %v800 = vsel %vm165, %v796, %v798
    %v803 = vadd.f32 %v785, %v799
    %v804 = vadd.f32 %v786, %v800
    %s805 = sld [smem:[#allocation3 + $0x2b]]
    %v806 = vstv %s805
    %v807 = vmul.f32 %v806, %v696
    %v808 = vmul.f32 %v806, %v697
    %811 = vrot.lane.b32.xlu0 %v807, 95
    %v812 = vpop.permute.xlu0 %811
    %813 = vrot.lane.b32.xlu0 %v808, 95
    %v814 = vpop.permute.xlu0 %813
    %v815 = vrot.slane %v812, 1
    %v816 = vrot.slane %v814, 1
    %v817 = vsel %vm184, %v812, %v815
    %v818 = vsel %vm184, %v814, %v816
    %v821 = vadd.f32 %v803, %v817
    %v822 = vadd.f32 %v804, %v818
    %s823 = sld [smem:[#allocation3 + $0x2c]]
    %v824 = vstv %s823
    %v825 = vmul.f32 %v824, %v696
    %v826 = vmul.f32 %v824, %v697
    %829 = vrot.lane.b32.xlu0 %v825, 94
    %v830 = vpop.permute.xlu0 %829
    %831 = vrot.lane.b32.xlu0 %v826, 94
    %v832 = vpop.permute.xlu0 %831
    %v833 = vrot.slane %v830, 1
    %v834 = vrot.slane %v832, 1
    %v835 = vsel %vm203, %v830, %v833
    %v836 = vsel %vm203, %v832, %v834
    %v839 = vadd.f32 %v821, %v835
    %v840 = vadd.f32 %v822, %v836
    %s841 = sld [smem:[#allocation3 + $0x2d]]
    %v842 = vld [vmem:[%s367] ss:$4 sm:$0x3]
    %v843 = vld [vmem:[%s369] ss:$4 sm:$0x3]
    %v844 = vstv %s841
    %v845 = vmul.f32 %v844, %v842
    %v846 = vmul.f32 %v844, %v843
    %v847 = vadd.f32 %v839, %v845
    %v848 = vadd.f32 %v840, %v846
    %s849 = sld [smem:[#allocation3 + $0x2e]]
    %v850 = vld [vmem:[%s367] ss:$4 sm:$0x7]
    %v851 = vld [vmem:[%s369] ss:$4 sm:$0x7]
    %v852 = vstv %s849
    %v853 = vmul.f32 %v852, %v850
    %v854 = vmul.f32 %v852, %v851
    %857 = vrot.lane.b32.xlu0 %v853, 127
    %v858 = vpop.permute.xlu0 %857
    %859 = vrot.lane.b32.xlu0 %v854, 127
    %v860 = vpop.permute.xlu0 %859
    %v861 = vrot.slane %v858, 1
    %v862 = vrot.slane %v860, 1
    %v863 = vsel %vm70, %v858, %v861
    %v864 = vsel %vm70, %v860, %v862
    %v867 = vadd.f32 %v847, %v863
    %v868 = vadd.f32 %v848, %v864
    %s869 = sld [smem:[#allocation3 + $0x2f]]
    %v870 = vstv %s869
    %v871 = vmul.f32 %v870, %v850
    %v872 = vmul.f32 %v870, %v851
    %875 = vrot.lane.b32.xlu0 %v871, 126
    %v876 = vpop.permute.xlu0 %875
    %877 = vrot.lane.b32.xlu0 %v872, 126
    %v878 = vpop.permute.xlu0 %877
    %v879 = vrot.slane %v876, 1
    %v880 = vrot.slane %v878, 1
    %v881 = vsel %vm89, %v876, %v879
    %v882 = vsel %vm89, %v878, %v880
    %v885 = vadd.f32 %v867, %v881
    %v886 = vadd.f32 %v868, %v882
    %s887 = sld [smem:[#allocation3 + $0x30]]
    %v888 = vstv %s887
    %v889 = vmul.f32 %v888, %v850
    %v890 = vmul.f32 %v888, %v851
    %893 = vrot.lane.b32.xlu0 %v889, 112
    %v894 = vpop.permute.xlu0 %893
    %895 = vrot.lane.b32.xlu0 %v890, 112
    %v896 = vpop.permute.xlu0 %895
    %v897 = vrot.slane %v894, 1
    %v898 = vrot.slane %v896, 1
    %v899 = vsel %vm108, %v894, %v897
    %v900 = vsel %vm108, %v896, %v898
    %v903 = vadd.f32 %v885, %v899
    %v904 = vadd.f32 %v886, %v900
    %s905 = sld [smem:[#allocation3 + $0x31]]
    %v906 = vstv %s905
    %v907 = vmul.f32 %v906, %v850
    %v908 = vmul.f32 %v906, %v851
    %911 = vrot.lane.b32.xlu0 %v907, 111
    %v912 = vpop.permute.xlu0 %911
    %913 = vrot.lane.b32.xlu0 %v908, 111
    %v914 = vpop.permute.xlu0 %913
    %v915 = vrot.slane %v912, 1
    %v916 = vrot.slane %v914, 1
    %v917 = vsel %vm127, %v912, %v915
    %v918 = vsel %vm127, %v914, %v916
    %v921 = vadd.f32 %v903, %v917
    %v922 = vadd.f32 %v904, %v918
    %s923 = sld [smem:[#allocation3 + $0x32]]
    %v924 = vstv %s923
    %v925 = vmul.f32 %v924, %v850
    %v926 = vmul.f32 %v924, %v851
    %929 = vrot.lane.b32.xlu0 %v925, 110
    %v930 = vpop.permute.xlu0 %929
    %931 = vrot.lane.b32.xlu0 %v926, 110
    %v932 = vpop.permute.xlu0 %931
    %v933 = vrot.slane %v930, 1
    %v934 = vrot.slane %v932, 1
    %v935 = vsel %vm146, %v930, %v933
    %v936 = vsel %vm146, %v932, %v934
    %v939 = vadd.f32 %v921, %v935
    %v940 = vadd.f32 %v922, %v936
    %s941 = sld [smem:[#allocation3 + $0x33]]
    %v942 = vstv %s941
    %v943 = vmul.f32 %v942, %v850
    %v944 = vmul.f32 %v942, %v851
    %947 = vrot.lane.b32.xlu0 %v943, 96
    %v948 = vpop.permute.xlu0 %947
    %949 = vrot.lane.b32.xlu0 %v944, 96
    %v950 = vpop.permute.xlu0 %949
    %v951 = vrot.slane %v948, 1
    %v952 = vrot.slane %v950, 1
    %v953 = vsel %vm165, %v948, %v951
    %v954 = vsel %vm165, %v950, %v952
    %v957 = vadd.f32 %v939, %v953
    %v958 = vadd.f32 %v940, %v954
    %s959 = sld [smem:[#allocation3 + $0x34]]
    %v960 = vstv %s959
    %v961 = vmul.f32 %v960, %v850
    %v962 = vmul.f32 %v960, %v851
    %965 = vrot.lane.b32.xlu0 %v961, 95
    %v966 = vpop.permute.xlu0 %965
    %967 = vrot.lane.b32.xlu0 %v962, 95
    %v968 = vpop.permute.xlu0 %967
    %v969 = vrot.slane %v966, 1
    %v970 = vrot.slane %v968, 1
    %v971 = vsel %vm184, %v966, %v969
    %v972 = vsel %vm184, %v968, %v970
    %v975 = vadd.f32 %v957, %v971
    %v976 = vadd.f32 %v958, %v972
    %s977 = sld [smem:[#allocation3 + $0x35]]
    %v978 = vstv %s977
    %v979 = vmul.f32 %v978, %v850
    %v980 = vmul.f32 %v978, %v851
    %983 = vrot.lane.b32.xlu0 %v979, 94
    %v984 = vpop.permute.xlu0 %983
    %985 = vrot.lane.b32.xlu0 %v980, 94
    %v986 = vpop.permute.xlu0 %985
    %v987 = vrot.slane %v984, 1
    %v988 = vrot.slane %v986, 1
    %v989 = vsel %vm203, %v984, %v987
    %v990 = vsel %vm203, %v986, %v988
    %v993 = vadd.f32 %v975, %v989
    %v994 = vadd.f32 %v976, %v990
    %s995 = scalar_lea.vmem %s3, 1
    %996 = vst.msk [vmem:[%s995] ss:$8 sm:$0x3] %vm525, %v993
    %997 = vst.msk [vmem:[%s995] ss:$8 sm:$0x0] %vm525, %v993
    %s998 = scalar_lea.vmem %s3, 17
    %999 = vst.msk [vmem:[%s998] ss:$8 sm:$0x3] %vm525, %v994
    %1000 = vst.msk [vmem:[%s998] ss:$8 sm:$0x0] %vm525, %v994
    %s1001 = sld [smem:[#allocation5 + $0x2]]
    %v1002 = vstv %s1001
    %s1003 = sld [smem:[#allocation3 + $0x36]]
    %v1004 = vld [vmem:[#allocation2] ss:$4 sm:$0x3]
    %v1005 = vld [vmem:[%s49] ss:$4 sm:$0x3]
    %v1006 = vstv %s1003
    %v1007 = vmul.f32 %v1006, %v1004
    %v1008 = vmul.f32 %v1006, %v1005
    %v1009 = vadd.f32 %v1002, %v1007
    %v1010 = vadd.f32 %v1002, %v1008
    %s1011 = sld [smem:[#allocation3 + $0x37]]
    %v1012 = vld [vmem:[#allocation2] ss:$4 sm:$0x7]
    %v1013 = vld [vmem:[%s49] ss:$4 sm:$0x7]
    %v1014 = vstv %s1011
    %v1015 = vmul.f32 %v1014, %v1012
    %v1016 = vmul.f32 %v1014, %v1013
    %1019 = vrot.lane.b32.xlu0 %v1015, 127
    %v1020 = vpop.permute.xlu0 %1019
    %1021 = vrot.lane.b32.xlu0 %v1016, 127
    %v1022 = vpop.permute.xlu0 %1021
    %v1023 = vrot.slane %v1020, 1
    %v1024 = vrot.slane %v1022, 1
    %v1025 = vsel %vm70, %v1020, %v1023
    %v1026 = vsel %vm70, %v1022, %v1024
    %v1029 = vadd.f32 %v1009, %v1025
    %v1030 = vadd.f32 %v1010, %v1026
    %s1031 = sld [smem:[#allocation3 + $0x38]]
    %v1032 = vstv %s1031
    %v1033 = vmul.f32 %v1032, %v1012
    %v1034 = vmul.f32 %v1032, %v1013
    %1037 = vrot.lane.b32.xlu0 %v1033, 126
    %v1038 = vpop.permute.xlu0 %1037
    %1039 = vrot.lane.b32.xlu0 %v1034, 126
    %v1040 = vpop.permute.xlu0 %1039
    %v1041 = vrot.slane %v1038, 1
    %v1042 = vrot.slane %v1040, 1
    %v1043 = vsel %vm89, %v1038, %v1041
    %v1044 = vsel %vm89, %v1040, %v1042
    %v1047 = vadd.f32 %v1029, %v1043
    %v1048 = vadd.f32 %v1030, %v1044
    %s1049 = sld [smem:[#allocation3 + $0x39]]
    %v1050 = vstv %s1049
    %v1051 = vmul.f32 %v1050, %v1012
    %v1052 = vmul.f32 %v1050, %v1013
    %1055 = vrot.lane.b32.xlu0 %v1051, 112
    %v1056 = vpop.permute.xlu0 %1055
    %1057 = vrot.lane.b32.xlu0 %v1052, 112
    %v1058 = vpop.permute.xlu0 %1057
    %v1059 = vrot.slane %v1056, 1
    %v1060 = vrot.slane %v1058, 1
    %v1061 = vsel %vm108, %v1056, %v1059
    %v1062 = vsel %vm108, %v1058, %v1060
    %v1065 = vadd.f32 %v1047, %v1061
    %v1066 = vadd.f32 %v1048, %v1062
    %s1067 = sld [smem:[#allocation3 + $0x3a]]
    %v1068 = vstv %s1067
    %v1069 = vmul.f32 %v1068, %v1012
    %v1070 = vmul.f32 %v1068, %v1013
    %1073 = vrot.lane.b32.xlu0 %v1069, 111
    %v1074 = vpop.permute.xlu0 %1073
    %1075 = vrot.lane.b32.xlu0 %v1070, 111
    %v1076 = vpop.permute.xlu0 %1075
    %v1077 = vrot.slane %v1074, 1
    %v1078 = vrot.slane %v1076, 1
    %v1079 = vsel %vm127, %v1074, %v1077
    %v1080 = vsel %vm127, %v1076, %v1078
    %v1083 = vadd.f32 %v1065, %v1079
    %v1084 = vadd.f32 %v1066, %v1080
    %s1085 = sld [smem:[#allocation3 + $0x3b]]
    %v1086 = vstv %s1085
    %v1087 = vmul.f32 %v1086, %v1012
    %v1088 = vmul.f32 %v1086, %v1013
    %1091 = vrot.lane.b32.xlu0 %v1087, 110
    %v1092 = vpop.permute.xlu0 %1091
    %1093 = vrot.lane.b32.xlu0 %v1088, 110
    %v1094 = vpop.permute.xlu0 %1093
    %v1095 = vrot.slane %v1092, 1
    %v1096 = vrot.slane %v1094, 1
    %v1097 = vsel %vm146, %v1092, %v1095
    %v1098 = vsel %vm146, %v1094, %v1096
    %v1101 = vadd.f32 %v1083, %v1097
    %v1102 = vadd.f32 %v1084, %v1098
    %s1103 = sld [smem:[#allocation3 + $0x3c]]
    %v1104 = vstv %s1103
    %v1105 = vmul.f32 %v1104, %v1012
    %v1106 = vmul.f32 %v1104, %v1013
    %1109 = vrot.lane.b32.xlu0 %v1105, 96
    %v1110 = vpop.permute.xlu0 %1109
    %1111 = vrot.lane.b32.xlu0 %v1106, 96
    %v1112 = vpop.permute.xlu0 %1111
    %v1113 = vrot.slane %v1110, 1
    %v1114 = vrot.slane %v1112, 1
    %v1115 = vsel %vm165, %v1110, %v1113
    %v1116 = vsel %vm165, %v1112, %v1114
    %v1119 = vadd.f32 %v1101, %v1115
    %v1120 = vadd.f32 %v1102, %v1116
    %s1121 = sld [smem:[#allocation3 + $0x3d]]
    %v1122 = vstv %s1121
    %v1123 = vmul.f32 %v1122, %v1012
    %v1124 = vmul.f32 %v1122, %v1013
    %1127 = vrot.lane.b32.xlu0 %v1123, 95
    %v1128 = vpop.permute.xlu0 %1127
    %1129 = vrot.lane.b32.xlu0 %v1124, 95
    %v1130 = vpop.permute.xlu0 %1129
    %v1131 = vrot.slane %v1128, 1
    %v1132 = vrot.slane %v1130, 1
    %v1133 = vsel %vm184, %v1128, %v1131
    %v1134 = vsel %vm184, %v1130, %v1132
    %v1137 = vadd.f32 %v1119, %v1133
    %v1138 = vadd.f32 %v1120, %v1134
    %s1139 = sld [smem:[#allocation3 + $0x3e]]
    %v1140 = vstv %s1139
    %v1141 = vmul.f32 %v1140, %v1012
    %v1142 = vmul.f32 %v1140, %v1013
    %1145 = vrot.lane.b32.xlu0 %v1141, 94
    %v1146 = vpop.permute.xlu0 %1145
    %1147 = vrot.lane.b32.xlu0 %v1142, 94
    %v1148 = vpop.permute.xlu0 %1147
    %v1149 = vrot.slane %v1146, 1
    %v1150 = vrot.slane %v1148, 1
    %v1151 = vsel %vm203, %v1146, %v1149
    %v1152 = vsel %vm203, %v1148, %v1150
    %v1155 = vadd.f32 %v1137, %v1151
    %v1156 = vadd.f32 %v1138, %v1152
    %s1157 = sld [smem:[#allocation3 + $0x3f]]
    %v1158 = vld [vmem:[%s211] ss:$4 sm:$0x3]
    %v1159 = vld [vmem:[%s213] ss:$4 sm:$0x3]
    %v1160 = vstv %s1157
    %v1161 = vmul.f32 %v1160, %v1158
    %v1162 = vmul.f32 %v1160, %v1159
    %v1163 = vadd.f32 %v1155, %v1161
    %v1164 = vadd.f32 %v1156, %v1162
    %s1165 = sld [smem:[#allocation3 + $0x40]]
    %v1166 = vld [vmem:[%s211] ss:$4 sm:$0x7]
    %v1167 = vld [vmem:[%s213] ss:$4 sm:$0x7]
    %v1168 = vstv %s1165
    %v1169 = vmul.f32 %v1168, %v1166
    %v1170 = vmul.f32 %v1168, %v1167
    %1173 = vrot.lane.b32.xlu0 %v1169, 127
    %v1174 = vpop.permute.xlu0 %1173
    %1175 = vrot.lane.b32.xlu0 %v1170, 127
    %v1176 = vpop.permute.xlu0 %1175
    %v1177 = vrot.slane %v1174, 1
    %v1178 = vrot.slane %v1176, 1
    %v1179 = vsel %vm70, %v1174, %v1177
    %v1180 = vsel %vm70, %v1176, %v1178
    %v1183 = vadd.f32 %v1163, %v1179
    %v1184 = vadd.f32 %v1164, %v1180
    %s1185 = sld [smem:[#allocation3 + $0x41]]
    %v1186 = vstv %s1185
    %v1187 = vmul.f32 %v1186, %v1166
    %v1188 = vmul.f32 %v1186, %v1167
    %1191 = vrot.lane.b32.xlu0 %v1187, 126
    %v1192 = vpop.permute.xlu0 %1191
    %1193 = vrot.lane.b32.xlu0 %v1188, 126
    %v1194 = vpop.permute.xlu0 %1193
    %v1195 = vrot.slane %v1192, 1
    %v1196 = vrot.slane %v1194, 1
    %v1197 = vsel %vm89, %v1192, %v1195
    %v1198 = vsel %vm89, %v1194, %v1196
    %v1201 = vadd.f32 %v1183, %v1197
    %v1202 = vadd.f32 %v1184, %v1198
    %s1203 = sld [smem:[#allocation3 + $0x42]]
    %v1204 = vstv %s1203
    %v1205 = vmul.f32 %v1204, %v1166
    %v1206 = vmul.f32 %v1204, %v1167
    %1209 = vrot.lane.b32.xlu0 %v1205, 112
    %v1210 = vpop.permute.xlu0 %1209
    %1211 = vrot.lane.b32.xlu0 %v1206, 112
    %v1212 = vpop.permute.xlu0 %1211
    %v1213 = vrot.slane %v1210, 1
    %v1214 = vrot.slane %v1212, 1
    %v1215 = vsel %vm108, %v1210, %v1213
    %v1216 = vsel %vm108, %v1212, %v1214
    %v1219 = vadd.f32 %v1201, %v1215
    %v1220 = vadd.f32 %v1202, %v1216
    %s1221 = sld [smem:[#allocation3 + $0x43]]
    %v1222 = vstv %s1221
    %v1223 = vmul.f32 %v1222, %v1166
    %v1224 = vmul.f32 %v1222, %v1167
    %1227 = vrot.lane.b32.xlu0 %v1223, 111
    %v1228 = vpop.permute.xlu0 %1227
    %1229 = vrot.lane.b32.xlu0 %v1224, 111
    %v1230 = vpop.permute.xlu0 %1229
    %v1231 = vrot.slane %v1228, 1
    %v1232 = vrot.slane %v1230, 1
    %v1233 = vsel %vm127, %v1228, %v1231
    %v1234 = vsel %vm127, %v1230, %v1232
    %v1237 = vadd.f32 %v1219, %v1233
    %v1238 = vadd.f32 %v1220, %v1234
    %s1239 = sld [smem:[#allocation3 + $0x44]]
    %v1240 = vstv %s1239
    %v1241 = vmul.f32 %v1240, %v1166
    %v1242 = vmul.f32 %v1240, %v1167
    %1245 = vrot.lane.b32.xlu0 %v1241, 110
    %v1246 = vpop.permute.xlu0 %1245
    %1247 = vrot.lane.b32.xlu0 %v1242, 110
    %v1248 = vpop.permute.xlu0 %1247
    %v1249 = vrot.slane %v1246, 1
    %v1250 = vrot.slane %v1248, 1
    %v1251 = vsel %vm146, %v1246, %v1249
    %v1252 = vsel %vm146, %v1248, %v1250
    %v1255 = vadd.f32 %v1237, %v1251
    %v1256 = vadd.f32 %v1238, %v1252
    %s1257 = sld [smem:[#allocation3 + $0x45]]
    %v1258 = vstv %s1257
    %v1259 = vmul.f32 %v1258, %v1166
    %v1260 = vmul.f32 %v1258, %v1167
    %1263 = vrot.lane.b32.xlu0 %v1259, 96
    %v1264 = vpop.permute.xlu0 %1263
    %1265 = vrot.lane.b32.xlu0 %v1260, 96
    %v1266 = vpop.permute.xlu0 %1265
    %v1267 = vrot.slane %v1264, 1
    %v1268 = vrot.slane %v1266, 1
    %v1269 = vsel %vm165, %v1264, %v1267
    %v1270 = vsel %vm165, %v1266, %v1268
    %v1273 = vadd.f32 %v1255, %v1269
    %v1274 = vadd.f32 %v1256, %v1270
    %s1275 = sld [smem:[#allocation3 + $0x46]]
    %v1276 = vstv %s1275
    %v1277 = vmul.f32 %v1276, %v1166
    %v1278 = vmul.f32 %v1276, %v1167
    %1281 = vrot.lane.b32.xlu0 %v1277, 95
    %v1282 = vpop.permute.xlu0 %1281
    %1283 = vrot.lane.b32.xlu0 %v1278, 95
    %v1284 = vpop.permute.xlu0 %1283
    %v1285 = vrot.slane %v1282, 1
    %v1286 = vrot.slane %v1284, 1
    %v1287 = vsel %vm184, %v1282, %v1285
    %v1288 = vsel %vm184, %v1284, %v1286
    %v1291 = vadd.f32 %v1273, %v1287
    %v1292 = vadd.f32 %v1274, %v1288
    %s1293 = sld [smem:[#allocation3 + $0x47]]
    %v1294 = vstv %s1293
    %v1295 = vmul.f32 %v1294, %v1166
    %v1296 = vmul.f32 %v1294, %v1167
    %1299 = vrot.lane.b32.xlu0 %v1295, 94
    %v1300 = vpop.permute.xlu0 %1299
    %1301 = vrot.lane.b32.xlu0 %v1296, 94
    %v1302 = vpop.permute.xlu0 %1301
    %v1303 = vrot.slane %v1300, 1
    %v1304 = vrot.slane %v1302, 1
    %v1305 = vsel %vm203, %v1300, %v1303
    %v1306 = vsel %vm203, %v1302, %v1304
    %v1309 = vadd.f32 %v1291, %v1305
    %v1310 = vadd.f32 %v1292, %v1306
    %s1311 = sld [smem:[#allocation3 + $0x48]]
    %v1312 = vld [vmem:[%s367] ss:$4 sm:$0x3]
    %v1313 = vld [vmem:[%s369] ss:$4 sm:$0x3]
    %v1314 = vstv %s1311
    %v1315 = vmul.f32 %v1314, %v1312
    %v1316 = vmul.f32 %v1314, %v1313
    %v1317 = vadd.f32 %v1309, %v1315
    %v1318 = vadd.f32 %v1310, %v1316
    %s1319 = sld [smem:[#allocation3 + $0x49]]
    %v1320 = vld [vmem:[%s367] ss:$4 sm:$0x7]
    %v1321 = vld [vmem:[%s369] ss:$4 sm:$0x7]
    %v1322 = vstv %s1319
    %v1323 = vmul.f32 %v1322, %v1320
    %v1324 = vmul.f32 %v1322, %v1321
    %1327 = vrot.lane.b32.xlu0 %v1323, 127
    %v1328 = vpop.permute.xlu0 %1327
    %1329 = vrot.lane.b32.xlu0 %v1324, 127
    %v1330 = vpop.permute.xlu0 %1329
    %v1331 = vrot.slane %v1328, 1
    %v1332 = vrot.slane %v1330, 1
    %v1333 = vsel %vm70, %v1328, %v1331
    %v1334 = vsel %vm70, %v1330, %v1332
    %v1337 = vadd.f32 %v1317, %v1333
    %v1338 = vadd.f32 %v1318, %v1334
    %s1339 = sld [smem:[#allocation3 + $0x4a]]
    %v1340 = vstv %s1339
    %v1341 = vmul.f32 %v1340, %v1320
    %v1342 = vmul.f32 %v1340, %v1321
    %1345 = vrot.lane.b32.xlu0 %v1341, 126
    %v1346 = vpop.permute.xlu0 %1345
    %1347 = vrot.lane.b32.xlu0 %v1342, 126
    %v1348 = vpop.permute.xlu0 %1347
    %v1349 = vrot.slane %v1346, 1
    %v1350 = vrot.slane %v1348, 1
    %v1351 = vsel %vm89, %v1346, %v1349
    %v1352 = vsel %vm89, %v1348, %v1350
    %v1355 = vadd.f32 %v1337, %v1351
    %v1356 = vadd.f32 %v1338, %v1352
    %s1357 = sld [smem:[#allocation3 + $0x4b]]
    %v1358 = vstv %s1357
    %v1359 = vmul.f32 %v1358, %v1320
    %v1360 = vmul.f32 %v1358, %v1321
    %1363 = vrot.lane.b32.xlu0 %v1359, 112
    %v1364 = vpop.permute.xlu0 %1363
    %1365 = vrot.lane.b32.xlu0 %v1360, 112
    %v1366 = vpop.permute.xlu0 %1365
    %v1367 = vrot.slane %v1364, 1
    %v1368 = vrot.slane %v1366, 1
    %v1369 = vsel %vm108, %v1364, %v1367
    %v1370 = vsel %vm108, %v1366, %v1368
    %v1373 = vadd.f32 %v1355, %v1369
    %v1374 = vadd.f32 %v1356, %v1370
    %s1375 = sld [smem:[#allocation3 + $0x4c]]
    %v1376 = vstv %s1375
    %v1377 = vmul.f32 %v1376, %v1320
    %v1378 = vmul.f32 %v1376, %v1321
    %1381 = vrot.lane.b32.xlu0 %v1377, 111
    %v1382 = vpop.permute.xlu0 %1381
    %1383 = vrot.lane.b32.xlu0 %v1378, 111
    %v1384 = vpop.permute.xlu0 %1383
    %v1385 = vrot.slane %v1382, 1
    %v1386 = vrot.slane %v1384, 1
    %v1387 = vsel %vm127, %v1382, %v1385
    %v1388 = vsel %vm127, %v1384, %v1386
    %v1391 = vadd.f32 %v1373, %v1387
    %v1392 = vadd.f32 %v1374, %v1388
    %s1393 = sld [smem:[#allocation3 + $0x4d]]
    %v1394 = vstv %s1393
    %v1395 = vmul.f32 %v1394, %v1320
    %v1396 = vmul.f32 %v1394, %v1321
    %1399 = vrot.lane.b32.xlu0 %v1395, 110
    %v1400 = vpop.permute.xlu0 %1399
    %1401 = vrot.lane.b32.xlu0 %v1396, 110
    %v1402 = vpop.permute.xlu0 %1401
    %v1403 = vrot.slane %v1400, 1
    %v1404 = vrot.slane %v1402, 1
    %v1405 = vsel %vm146, %v1400, %v1403
    %v1406 = vsel %vm146, %v1402, %v1404
    %v1409 = vadd.f32 %v1391, %v1405
    %v1410 = vadd.f32 %v1392, %v1406
    %s1411 = sld [smem:[#allocation3 + $0x4e]]
    %v1412 = vstv %s1411
    %v1413 = vmul.f32 %v1412, %v1320
    %v1414 = vmul.f32 %v1412, %v1321
    %1417 = vrot.lane.b32.xlu0 %v1413, 96
    %v1418 = vpop.permute.xlu0 %1417
    %1419 = vrot.lane.b32.xlu0 %v1414, 96
    %v1420 = vpop.permute.xlu0 %1419
    %v1421 = vrot.slane %v1418, 1
    %v1422 = vrot.slane %v1420, 1
    %v1423 = vsel %vm165, %v1418, %v1421
    %v1424 = vsel %vm165, %v1420, %v1422
    %v1427 = vadd.f32 %v1409, %v1423
    %v1428 = vadd.f32 %v1410, %v1424
    %s1429 = sld [smem:[#allocation3 + $0x4f]]
    %v1430 = vstv %s1429
    %v1431 = vmul.f32 %v1430, %v1320
    %v1432 = vmul.f32 %v1430, %v1321
    %1435 = vrot.lane.b32.xlu0 %v1431, 95
    %v1436 = vpop.permute.xlu0 %1435
    %1437 = vrot.lane.b32.xlu0 %v1432, 95
    %v1438 = vpop.permute.xlu0 %1437
    %v1439 = vrot.slane %v1436, 1
    %v1440 = vrot.slane %v1438, 1
    %v1441 = vsel %vm184, %v1436, %v1439
    %v1442 = vsel %vm184, %v1438, %v1440
    %v1445 = vadd.f32 %v1427, %v1441
    %v1446 = vadd.f32 %v1428, %v1442
    %s1447 = sld [smem:[#allocation3 + $0x50]]
    %v1448 = vstv %s1447
    %v1449 = vmul.f32 %v1448, %v1320
    %v1450 = vmul.f32 %v1448, %v1321
    %1453 = vrot.lane.b32.xlu0 %v1449, 94
    %v1454 = vpop.permute.xlu0 %1453
    %1455 = vrot.lane.b32.xlu0 %v1450, 94
    %v1456 = vpop.permute.xlu0 %1455
    %v1457 = vrot.slane %v1454, 1
    %v1458 = vrot.slane %v1456, 1
    %v1459 = vsel %vm203, %v1454, %v1457
    %v1460 = vsel %vm203, %v1456, %v1458
    %v1463 = vadd.f32 %v1445, %v1459
    %v1464 = vadd.f32 %v1446, %v1460
    %s1465 = scalar_lea.vmem %s3, 2
    %1466 = vst.msk [vmem:[%s1465] ss:$8 sm:$0x3] %vm525, %v1463
    %1467 = vst.msk [vmem:[%s1465] ss:$8 sm:$0x0] %vm525, %v1463
    %s1468 = scalar_lea.vmem %s3, 18
    %1469 = vst.msk [vmem:[%s1468] ss:$8 sm:$0x3] %vm525, %v1464
    %1470 = vst.msk [vmem:[%s1468] ss:$8 sm:$0x0] %vm525, %v1464
    %s1471 = sld [smem:[#allocation5 + $0x3]]
    %v1472 = vstv %s1471
    %s1473 = sld [smem:[#allocation3 + $0x51]]
    %v1474 = vld [vmem:[#allocation2] ss:$4 sm:$0x3]
    %v1475 = vld [vmem:[%s49] ss:$4 sm:$0x3]
    %v1476 = vstv %s1473
    %v1477 = vmul.f32 %v1476, %v1474
    %v1478 = vmul.f32 %v1476, %v1475
    %v1479 = vadd.f32 %v1472, %v1477
    %v1480 = vadd.f32 %v1472, %v1478
    %s1481 = sld [smem:[#allocation3 + $0x52]]
    %v1482 = vld [vmem:[#allocation2] ss:$4 sm:$0x7]
    %v1483 = vld [vmem:[%s49] ss:$4 sm:$0x7]
    %v1484 = vstv %s1481
    %v1485 = vmul.f32 %v1484, %v1482
    %v1486 = vmul.f32 %v1484, %v1483
    %1489 = vrot.lane.b32.xlu0 %v1485, 127
    %v1490 = vpop.permute.xlu0 %1489
    %1491 = vrot.lane.b32.xlu0 %v1486, 127
    %v1492 = vpop.permute.xlu0 %1491
    %v1493 = vrot.slane %v1490, 1
    %v1494 = vrot.slane %v1492, 1
    %v1495 = vsel %vm70, %v1490, %v1493
    %v1496 = vsel %vm70, %v1492, %v1494
    %v1499 = vadd.f32 %v1479, %v1495
    %v1500 = vadd.f32 %v1480, %v1496
    %s1501 = sld [smem:[#allocation3 + $0x53]]
    %v1502 = vstv %s1501
    %v1503 = vmul.f32 %v1502, %v1482
    %v1504 = vmul.f32 %v1502, %v1483
    %1507 = vrot.lane.b32.xlu0 %v1503, 126
    %v1508 = vpop.permute.xlu0 %1507
    %1509 = vrot.lane.b32.xlu0 %v1504, 126
    %v1510 = vpop.permute.xlu0 %1509
    %v1511 = vrot.slane %v1508, 1
    %v1512 = vrot.slane %v1510, 1
    %v1513 = vsel %vm89, %v1508, %v1511
    %v1514 = vsel %vm89, %v1510, %v1512
    %v1517 = vadd.f32 %v1499, %v1513
    %v1518 = vadd.f32 %v1500, %v1514
    %s1519 = sld [smem:[#allocation3 + $0x54]]
    %v1520 = vstv %s1519
    %v1521 = vmul.f32 %v1520, %v1482
    %v1522 = vmul.f32 %v1520, %v1483
    %1525 = vrot.lane.b32.xlu0 %v1521, 112
    %v1526 = vpop.permute.xlu0 %1525
    %1527 = vrot.lane.b32.xlu0 %v1522, 112
    %v1528 = vpop.permute.xlu0 %1527
    %v1529 = vrot.slane %v1526, 1
    %v1530 = vrot.slane %v1528, 1
    %v1531 = vsel %vm108, %v1526, %v1529
    %v1532 = vsel %vm108, %v1528, %v1530
    %v1535 = vadd.f32 %v1517, %v1531
    %v1536 = vadd.f32 %v1518, %v1532
    %s1537 = sld [smem:[#allocation3 + $0x55]]
    %v1538 = vstv %s1537
    %v1539 = vmul.f32 %v1538, %v1482
    %v1540 = vmul.f32 %v1538, %v1483
    %1543 = vrot.lane.b32.xlu0 %v1539, 111
    %v1544 = vpop.permute.xlu0 %1543
    %1545 = vrot.lane.b32.xlu0 %v1540, 111
    %v1546 = vpop.permute.xlu0 %1545
    %v1547 = vrot.slane %v1544, 1
    %v1548 = vrot.slane %v1546, 1
    %v1549 = vsel %vm127, %v1544, %v1547
    %v1550 = vsel %vm127, %v1546, %v1548
    %v1553 = vadd.f32 %v1535, %v1549
    %v1554 = vadd.f32 %v1536, %v1550
    %s1555 = sld [smem:[#allocation3 + $0x56]]
    %v1556 = vstv %s1555
    %v1557 = vmul.f32 %v1556, %v1482
    %v1558 = vmul.f32 %v1556, %v1483
    %1561 = vrot.lane.b32.xlu0 %v1557, 110
    %v1562 = vpop.permute.xlu0 %1561
    %1563 = vrot.lane.b32.xlu0 %v1558, 110
    %v1564 = vpop.permute.xlu0 %1563
    %v1565 = vrot.slane %v1562, 1
    %v1566 = vrot.slane %v1564, 1
    %v1567 = vsel %vm146, %v1562, %v1565
    %v1568 = vsel %vm146, %v1564, %v1566
    %v1571 = vadd.f32 %v1553, %v1567
    %v1572 = vadd.f32 %v1554, %v1568
    %s1573 = sld [smem:[#allocation3 + $0x57]]
    %v1574 = vstv %s1573
    %v1575 = vmul.f32 %v1574, %v1482
    %v1576 = vmul.f32 %v1574, %v1483
    %1579 = vrot.lane.b32.xlu0 %v1575, 96
    %v1580 = vpop.permute.xlu0 %1579
    %1581 = vrot.lane.b32.xlu0 %v1576, 96
    %v1582 = vpop.permute.xlu0 %1581
    %v1583 = vrot.slane %v1580, 1
    %v1584 = vrot.slane %v1582, 1
    %v1585 = vsel %vm165, %v1580, %v1583
    %v1586 = vsel %vm165, %v1582, %v1584
    %v1589 = vadd.f32 %v1571, %v1585
    %v1590 = vadd.f32 %v1572, %v1586
    %s1591 = sld [smem:[#allocation3 + $0x58]]
    %v1592 = vstv %s1591
    %v1593 = vmul.f32 %v1592, %v1482
    %v1594 = vmul.f32 %v1592, %v1483
    %1597 = vrot.lane.b32.xlu0 %v1593, 95
    %v1598 = vpop.permute.xlu0 %1597
    %1599 = vrot.lane.b32.xlu0 %v1594, 95
    %v1600 = vpop.permute.xlu0 %1599
    %v1601 = vrot.slane %v1598, 1
    %v1602 = vrot.slane %v1600, 1
    %v1603 = vsel %vm184, %v1598, %v1601
    %v1604 = vsel %vm184, %v1600, %v1602
    %v1607 = vadd.f32 %v1589, %v1603
    %v1608 = vadd.f32 %v1590, %v1604
    %s1609 = sld [smem:[#allocation3 + $0x59]]
    %v1610 = vstv %s1609
    %v1611 = vmul.f32 %v1610, %v1482
    %v1612 = vmul.f32 %v1610, %v1483
    %1615 = vrot.lane.b32.xlu0 %v1611, 94
    %v1616 = vpop.permute.xlu0 %1615
    %1617 = vrot.lane.b32.xlu0 %v1612, 94
    %v1618 = vpop.permute.xlu0 %1617
    %v1619 = vrot.slane %v1616, 1
    %v1620 = vrot.slane %v1618, 1
    %v1621 = vsel %vm203, %v1616, %v1619
    %v1622 = vsel %vm203, %v1618, %v1620
    %v1625 = vadd.f32 %v1607, %v1621
    %v1626 = vadd.f32 %v1608, %v1622
    %s1627 = sld [smem:[#allocation3 + $0x5a]]
    %v1628 = vld [vmem:[%s211] ss:$4 sm:$0x3]
    %v1629 = vld [vmem:[%s213] ss:$4 sm:$0x3]
    %v1630 = vstv %s1627
    %v1631 = vmul.f32 %v1630, %v1628
    %v1632 = vmul.f32 %v1630, %v1629
    %v1633 = vadd.f32 %v1625, %v1631
    %v1634 = vadd.f32 %v1626, %v1632
    %s1635 = sld [smem:[#allocation3 + $0x5b]]
    %v1636 = vld [vmem:[%s211] ss:$4 sm:$0x7]
    %v1637 = vld [vmem:[%s213] ss:$4 sm:$0x7]
    %v1638 = vstv %s1635
    %v1639 = vmul.f32 %v1638, %v1636
    %v1640 = vmul.f32 %v1638, %v1637
    %1643 = vrot.lane.b32.xlu0 %v1639, 127
    %v1644 = vpop.permute.xlu0 %1643
    %1645 = vrot.lane.b32.xlu0 %v1640, 127
    %v1646 = vpop.permute.xlu0 %1645
    %v1647 = vrot.slane %v1644, 1
    %v1648 = vrot.slane %v1646, 1
    %v1649 = vsel %vm70, %v1644, %v1647
    %v1650 = vsel %vm70, %v1646, %v1648
    %v1653 = vadd.f32 %v1633, %v1649
    %v1654 = vadd.f32 %v1634, %v1650
    %s1655 = sld [smem:[#allocation3 + $0x5c]]
    %v1656 = vstv %s1655
    %v1657 = vmul.f32 %v1656, %v1636
    %v1658 = vmul.f32 %v1656, %v1637
    %1661 = vrot.lane.b32.xlu0 %v1657, 126
    %v1662 = vpop.permute.xlu0 %1661
    %1663 = vrot.lane.b32.xlu0 %v1658, 126
    %v1664 = vpop.permute.xlu0 %1663
    %v1665 = vrot.slane %v1662, 1
    %v1666 = vrot.slane %v1664, 1
    %v1667 = vsel %vm89, %v1662, %v1665
    %v1668 = vsel %vm89, %v1664, %v1666
    %v1671 = vadd.f32 %v1653, %v1667
    %v1672 = vadd.f32 %v1654, %v1668
    %s1673 = sld [smem:[#allocation3 + $0x5d]]
    %v1674 = vstv %s1673
    %v1675 = vmul.f32 %v1674, %v1636
    %v1676 = vmul.f32 %v1674, %v1637
    %1679 = vrot.lane.b32.xlu0 %v1675, 112
    %v1680 = vpop.permute.xlu0 %1679
    %1681 = vrot.lane.b32.xlu0 %v1676, 112
    %v1682 = vpop.permute.xlu0 %1681
    %v1683 = vrot.slane %v1680, 1
    %v1684 = vrot.slane %v1682, 1
    %v1685 = vsel %vm108, %v1680, %v1683
    %v1686 = vsel %vm108, %v1682, %v1684
    %v1689 = vadd.f32 %v1671, %v1685
    %v1690 = vadd.f32 %v1672, %v1686
    %s1691 = sld [smem:[#allocation3 + $0x5e]]
    %v1692 = vstv %s1691
    %v1693 = vmul.f32 %v1692, %v1636
    %v1694 = vmul.f32 %v1692, %v1637
    %1697 = vrot.lane.b32.xlu0 %v1693, 111
    %v1698 = vpop.permute.xlu0 %1697
    %1699 = vrot.lane.b32.xlu0 %v1694, 111
    %v1700 = vpop.permute.xlu0 %1699
    %v1701 = vrot.slane %v1698, 1
    %v1702 = vrot.slane %v1700, 1
    %v1703 = vsel %vm127, %v1698, %v1701
    %v1704 = vsel %vm127, %v1700, %v1702
    %v1707 = vadd.f32 %v1689, %v1703
    %v1708 = vadd.f32 %v1690, %v1704
    %s1709 = sld [smem:[#allocation3 + $0x5f]]
    %v1710 = vstv %s1709
    %v1711 = vmul.f32 %v1710, %v1636
    %v1712 = vmul.f32 %v1710, %v1637
    %1715 = vrot.lane.b32.xlu0 %v1711, 110
    %v1716 = vpop.permute.xlu0 %1715
    %1717 = vrot.lane.b32.xlu0 %v1712, 110
    %v1718 = vpop.permute.xlu0 %1717
    %v1719 = vrot.slane %v1716, 1
    %v1720 = vrot.slane %v1718, 1
    %v1721 = vsel %vm146, %v1716, %v1719
    %v1722 = vsel %vm146, %v1718, %v1720
    %v1725 = vadd.f32 %v1707, %v1721
    %v1726 = vadd.f32 %v1708, %v1722
    %s1727 = sld [smem:[#allocation3 + $0x60]]
    %v1728 = vstv %s1727
    %v1729 = vmul.f32 %v1728, %v1636
    %v1730 = vmul.f32 %v1728, %v1637
    %1733 = vrot.lane.b32.xlu0 %v1729, 96
    %v1734 = vpop.permute.xlu0 %1733
    %1735 = vrot.lane.b32.xlu0 %v1730, 96
    %v1736 = vpop.permute.xlu0 %1735
    %v1737 = vrot.slane %v1734, 1
    %v1738 = vrot.slane %v1736, 1
    %v1739 = vsel %vm165, %v1734, %v1737
    %v1740 = vsel %vm165, %v1736, %v1738
    %v1743 = vadd.f32 %v1725, %v1739
    %v1744 = vadd.f32 %v1726, %v1740
    %s1745 = sld [smem:[#allocation3 + $0x61]]
    %v1746 = vstv %s1745
    %v1747 = vmul.f32 %v1746, %v1636
    %v1748 = vmul.f32 %v1746, %v1637
    %1751 = vrot.lane.b32.xlu0 %v1747, 95
    %v1752 = vpop.permute.xlu0 %1751
    %1753 = vrot.lane.b32.xlu0 %v1748, 95
    %v1754 = vpop.permute.xlu0 %1753
    %v1755 = vrot.slane %v1752, 1
    %v1756 = vrot.slane %v1754, 1
    %v1757 = vsel %vm184, %v1752, %v1755
    %v1758 = vsel %vm184, %v1754, %v1756
    %v1761 = vadd.f32 %v1743, %v1757
    %v1762 = vadd.f32 %v1744, %v1758
    %s1763 = sld [smem:[#allocation3 + $0x62]]
    %v1764 = vstv %s1763
    %v1765 = vmul.f32 %v1764, %v1636
    %v1766 = vmul.f32 %v1764, %v1637
    %1769 = vrot.lane.b32.xlu0 %v1765, 94
    %v1770 = vpop.permute.xlu0 %1769
    %1771 = vrot.lane.b32.xlu0 %v1766, 94
    %v1772 = vpop.permute.xlu0 %1771
    %v1773 = vrot.slane %v1770, 1
    %v1774 = vrot.slane %v1772, 1
    %v1775 = vsel %vm203, %v1770, %v1773
    %v1776 = vsel %vm203, %v1772, %v1774
    %v1779 = vadd.f32 %v1761, %v1775
    %v1780 = vadd.f32 %v1762, %v1776
    %s1781 = sld [smem:[#allocation3 + $0x63]]
    %v1782 = vld [vmem:[%s367] ss:$4 sm:$0x3]
    %v1783 = vld [vmem:[%s369] ss:$4 sm:$0x3]
    %v1784 = vstv %s1781
    %v1785 = vmul.f32 %v1784, %v1782
    %v1786 = vmul.f32 %v1784, %v1783
    %v1787 = vadd.f32 %v1779, %v1785
    %v1788 = vadd.f32 %v1780, %v1786
    %s1789 = sld [smem:[#allocation3 + $0x64]]
    %v1790 = vld [vmem:[%s367] ss:$4 sm:$0x7]
    %v1791 = vld [vmem:[%s369] ss:$4 sm:$0x7]
    %v1792 = vstv %s1789
    %v1793 = vmul.f32 %v1792, %v1790
    %v1794 = vmul.f32 %v1792, %v1791
    %1797 = vrot.lane.b32.xlu0 %v1793, 127
    %v1798 = vpop.permute.xlu0 %1797
    %1799 = vrot.lane.b32.xlu0 %v1794, 127
    %v1800 = vpop.permute.xlu0 %1799
    %v1801 = vrot.slane %v1798, 1
    %v1802 = vrot.slane %v1800, 1
    %v1803 = vsel %vm70, %v1798, %v1801
    %v1804 = vsel %vm70, %v1800, %v1802
    %v1807 = vadd.f32 %v1787, %v1803
    %v1808 = vadd.f32 %v1788, %v1804
    %s1809 = sld [smem:[#allocation3 + $0x65]]
    %v1810 = vstv %s1809
    %v1811 = vmul.f32 %v1810, %v1790
    %v1812 = vmul.f32 %v1810, %v1791
    %1815 = vrot.lane.b32.xlu0 %v1811, 126
    %v1816 = vpop.permute.xlu0 %1815
    %1817 = vrot.lane.b32.xlu0 %v1812, 126
    %v1818 = vpop.permute.xlu0 %1817
    %v1819 = vrot.slane %v1816, 1
    %v1820 = vrot.slane %v1818, 1
    %v1821 = vsel %vm89, %v1816, %v1819
    %v1822 = vsel %vm89, %v1818, %v1820
    %v1825 = vadd.f32 %v1807, %v1821
    %v1826 = vadd.f32 %v1808, %v1822
    %s1827 = sld [smem:[#allocation3 + $0x66]]
    %v1828 = vstv %s1827
    %v1829 = vmul.f32 %v1828, %v1790
    %v1830 = vmul.f32 %v1828, %v1791
    %1833 = vrot.lane.b32.xlu0 %v1829, 112
    %v1834 = vpop.permute.xlu0 %1833
    %1835 = vrot.lane.b32.xlu0 %v1830, 112
    %v1836 = vpop.permute.xlu0 %1835
    %v1837 = vrot.slane %v1834, 1
    %v1838 = vrot.slane %v1836, 1
    %v1839 = vsel %vm108, %v1834, %v1837
    %v1840 = vsel %vm108, %v1836, %v1838
    %v1843 = vadd.f32 %v1825, %v1839
    %v1844 = vadd.f32 %v1826, %v1840
    %s1845 = sld [smem:[#allocation3 + $0x67]]
    %v1846 = vstv %s1845
    %v1847 = vmul.f32 %v1846, %v1790
    %v1848 = vmul.f32 %v1846, %v1791
    %1851 = vrot.lane.b32.xlu0 %v1847, 111
    %v1852 = vpop.permute.xlu0 %1851
    %1853 = vrot.lane.b32.xlu0 %v1848, 111
    %v1854 = vpop.permute.xlu0 %1853
    %v1855 = vrot.slane %v1852, 1
    %v1856 = vrot.slane %v1854, 1
    %v1857 = vsel %vm127, %v1852, %v1855
    %v1858 = vsel %vm127, %v1854, %v1856
    %v1861 = vadd.f32 %v1843, %v1857
    %v1862 = vadd.f32 %v1844, %v1858
    %s1863 = sld [smem:[#allocation3 + $0x68]]
    %v1864 = vstv %s1863
    %v1865 = vmul.f32 %v1864, %v1790
    %v1866 = vmul.f32 %v1864, %v1791
    %1869 = vrot.lane.b32.xlu0 %v1865, 110
    %v1870 = vpop.permute.xlu0 %1869
    %1871 = vrot.lane.b32.xlu0 %v1866, 110
    %v1872 = vpop.permute.xlu0 %1871
    %v1873 = vrot.slane %v1870, 1
    %v1874 = vrot.slane %v1872, 1
    %v1875 = vsel %vm146, %v1870, %v1873
    %v1876 = vsel %vm146, %v1872, %v1874
    %v1879 = vadd.f32 %v1861, %v1875
    %v1880 = vadd.f32 %v1862, %v1876
    %s1881 = sld [smem:[#allocation3 + $0x69]]
    %v1882 = vstv %s1881
    %v1883 = vmul.f32 %v1882, %v1790
    %v1884 = vmul.f32 %v1882, %v1791
    %1887 = vrot.lane.b32.xlu0 %v1883, 96
    %v1888 = vpop.permute.xlu0 %1887
    %1889 = vrot.lane.b32.xlu0 %v1884, 96
    %v1890 = vpop.permute.xlu0 %1889
    %v1891 = vrot.slane %v1888, 1
    %v1892 = vrot.slane %v1890, 1
    %v1893 = vsel %vm165, %v1888, %v1891
    %v1894 = vsel %vm165, %v1890, %v1892
    %v1897 = vadd.f32 %v1879, %v1893
    %v1898 = vadd.f32 %v1880, %v1894
    %s1899 = sld [smem:[#allocation3 + $0x6a]]
    %v1900 = vstv %s1899
    %v1901 = vmul.f32 %v1900, %v1790
    %v1902 = vmul.f32 %v1900, %v1791
    %1905 = vrot.lane.b32.xlu0 %v1901, 95
    %v1906 = vpop.permute.xlu0 %1905
    %1907 = vrot.lane.b32.xlu0 %v1902, 95
    %v1908 = vpop.permute.xlu0 %1907
    %v1909 = vrot.slane %v1906, 1
    %v1910 = vrot.slane %v1908, 1
    %v1911 = vsel %vm184, %v1906, %v1909
    %v1912 = vsel %vm184, %v1908, %v1910
    %v1915 = vadd.f32 %v1897, %v1911
    %v1916 = vadd.f32 %v1898, %v1912
    %s1917 = sld [smem:[#allocation3 + $0x6b]]
    %v1918 = vstv %s1917
    %v1919 = vmul.f32 %v1918, %v1790
    %v1920 = vmul.f32 %v1918, %v1791
    %1923 = vrot.lane.b32.xlu0 %v1919, 94
    %v1924 = vpop.permute.xlu0 %1923
    %1925 = vrot.lane.b32.xlu0 %v1920, 94
    %v1926 = vpop.permute.xlu0 %1925
    %v1927 = vrot.slane %v1924, 1
    %v1928 = vrot.slane %v1926, 1
    %v1929 = vsel %vm203, %v1924, %v1927
    %v1930 = vsel %vm203, %v1926, %v1928
    %v1933 = vadd.f32 %v1915, %v1929
    %v1934 = vadd.f32 %v1916, %v1930
    %s1935 = scalar_lea.vmem %s3, 3
    %1936 = vst.msk [vmem:[%s1935] ss:$8 sm:$0x3] %vm525, %v1933
    %1937 = vst.msk [vmem:[%s1935] ss:$8 sm:$0x0] %vm525, %v1933
    %s1938 = scalar_lea.vmem %s3, 19
    %1939 = vst.msk [vmem:[%s1938] ss:$8 sm:$0x3] %vm525, %v1934
    %1940 = vst.msk [vmem:[%s1938] ss:$8 sm:$0x0] %vm525, %v1934
    %s1941 = sld [smem:[#allocation5 + $0x4]]
    %v1942 = vstv %s1941
    %s1943 = sld [smem:[#allocation3 + $0x6c]]
    %v1944 = vld [vmem:[#allocation2] ss:$4 sm:$0x3]
    %v1945 = vld [vmem:[%s49] ss:$4 sm:$0x3]
    %v1946 = vstv %s1943
    %v1947 = vmul.f32 %v1946, %v1944
    %v1948 = vmul.f32 %v1946, %v1945
    %v1949 = vadd.f32 %v1942, %v1947
    %v1950 = vadd.f32 %v1942, %v1948
    %s1951 = sld [smem:[#allocation3 + $0x6d]]
    %v1952 = vld [vmem:[#allocation2] ss:$4 sm:$0x7]
    %v1953 = vld [vmem:[%s49] ss:$4 sm:$0x7]
    %v1954 = vstv %s1951
    %v1955 = vmul.f32 %v1954, %v1952
    %v1956 = vmul.f32 %v1954, %v1953
    %1959 = vrot.lane.b32.xlu0 %v1955, 127
    %v1960 = vpop.permute.xlu0 %1959
    %1961 = vrot.lane.b32.xlu0 %v1956, 127
    %v1962 = vpop.permute.xlu0 %1961
    %v1963 = vrot.slane %v1960, 1
    %v1964 = vrot.slane %v1962, 1
    %v1965 = vsel %vm70, %v1960, %v1963
    %v1966 = vsel %vm70, %v1962, %v1964
    %v1969 = vadd.f32 %v1949, %v1965
    %v1970 = vadd.f32 %v1950, %v1966
    %s1971 = sld [smem:[#allocation3 + $0x6e]]
    %v1972 = vstv %s1971
    %v1973 = vmul.f32 %v1972, %v1952
    %v1974 = vmul.f32 %v1972, %v1953
    %1977 = vrot.lane.b32.xlu0 %v1973, 126
    %v1978 = vpop.permute.xlu0 %1977
    %1979 = vrot.lane.b32.xlu0 %v1974, 126
    %v1980 = vpop.permute.xlu0 %1979
    %v1981 = vrot.slane %v1978, 1
    %v1982 = vrot.slane %v1980, 1
    %v1983 = vsel %vm89, %v1978, %v1981
    %v1984 = vsel %vm89, %v1980, %v1982
    %v1987 = vadd.f32 %v1969, %v1983
    %v1988 = vadd.f32 %v1970, %v1984
    %s1989 = sld [smem:[#allocation3 + $0x6f]]
    %v1990 = vstv %s1989
    %v1991 = vmul.f32 %v1990, %v1952
    %v1992 = vmul.f32 %v1990, %v1953
    %1995 = vrot.lane.b32.xlu0 %v1991, 112
    %v1996 = vpop.permute.xlu0 %1995
    %1997 = vrot.lane.b32.xlu0 %v1992, 112
    %v1998 = vpop.permute.xlu0 %1997
    %v1999 = vrot.slane %v1996, 1
    %v2000 = vrot.slane %v1998, 1
    %v2001 = vsel %vm108, %v1996, %v1999
    %v2002 = vsel %vm108, %v1998, %v2000
    %v2005 = vadd.f32 %v1987, %v2001
    %v2006 = vadd.f32 %v1988, %v2002
    %s2007 = sld [smem:[#allocation3 + $0x70]]
    %v2008 = vstv %s2007
    %v2009 = vmul.f32 %v2008, %v1952
    %v2010 = vmul.f32 %v2008, %v1953
    %2013 = vrot.lane.b32.xlu0 %v2009, 111
    %v2014 = vpop.permute.xlu0 %2013
    %2015 = vrot.lane.b32.xlu0 %v2010, 111
    %v2016 = vpop.permute.xlu0 %2015
    %v2017 = vrot.slane %v2014, 1
    %v2018 = vrot.slane %v2016, 1
    %v2019 = vsel %vm127, %v2014, %v2017
    %v2020 = vsel %vm127, %v2016, %v2018
    %v2023 = vadd.f32 %v2005, %v2019
    %v2024 = vadd.f32 %v2006, %v2020
    %s2025 = sld [smem:[#allocation3 + $0x71]]
    %v2026 = vstv %s2025
    %v2027 = vmul.f32 %v2026, %v1952
    %v2028 = vmul.f32 %v2026, %v1953
    %2031 = vrot.lane.b32.xlu0 %v2027, 110
    %v2032 = vpop.permute.xlu0 %2031
    %2033 = vrot.lane.b32.xlu0 %v2028, 110
    %v2034 = vpop.permute.xlu0 %2033
    %v2035 = vrot.slane %v2032, 1
    %v2036 = vrot.slane %v2034, 1
    %v2037 = vsel %vm146, %v2032, %v2035
    %v2038 = vsel %vm146, %v2034, %v2036
    %v2041 = vadd.f32 %v2023, %v2037
    %v2042 = vadd.f32 %v2024, %v2038
    %s2043 = sld [smem:[#allocation3 + $0x72]]
    %v2044 = vstv %s2043
    %v2045 = vmul.f32 %v2044, %v1952
    %v2046 = vmul.f32 %v2044, %v1953
    %2049 = vrot.lane.b32.xlu0 %v2045, 96
    %v2050 = vpop.permute.xlu0 %2049
    %2051 = vrot.lane.b32.xlu0 %v2046, 96
    %v2052 = vpop.permute.xlu0 %2051
    %v2053 = vrot.slane %v2050, 1
    %v2054 = vrot.slane %v2052, 1
    %v2055 = vsel %vm165, %v2050, %v2053
    %v2056 = vsel %vm165, %v2052, %v2054
    %v2059 = vadd.f32 %v2041, %v2055
    %v2060 = vadd.f32 %v2042, %v2056
    %s2061 = sld [smem:[#allocation3 + $0x73]]
    %v2062 = vstv %s2061
    %v2063 = vmul.f32 %v2062, %v1952
    %v2064 = vmul.f32 %v2062, %v1953
    %2067 = vrot.lane.b32.xlu0 %v2063, 95
    %v2068 = vpop.permute.xlu0 %2067
    %2069 = vrot.lane.b32.xlu0 %v2064, 95
    %v2070 = vpop.permute.xlu0 %2069
    %v2071 = vrot.slane %v2068, 1
    %v2072 = vrot.slane %v2070, 1
    %v2073 = vsel %vm184, %v2068, %v2071
    %v2074 = vsel %vm184, %v2070, %v2072
    %v2077 = vadd.f32 %v2059, %v2073
    %v2078 = vadd.f32 %v2060, %v2074
    %s2079 = sld [smem:[#allocation3 + $0x74]]
    %v2080 = vstv %s2079
    %v2081 = vmul.f32 %v2080, %v1952
    %v2082 = vmul.f32 %v2080, %v1953
    %2085 = vrot.lane.b32.xlu0 %v2081, 94
    %v2086 = vpop.permute.xlu0 %2085
    %2087 = vrot.lane.b32.xlu0 %v2082, 94
    %v2088 = vpop.permute.xlu0 %2087
    %v2089 = vrot.slane %v2086, 1
    %v2090 = vrot.slane %v2088, 1
    %v2091 = vsel %vm203, %v2086, %v2089
    %v2092 = vsel %vm203, %v2088, %v2090
    %v2095 = vadd.f32 %v2077, %v2091
    %v2096 = vadd.f32 %v2078, %v2092
    %s2097 = sld [smem:[#allocation3 + $0x75]]
    %v2098 = vld [vmem:[%s211] ss:$4 sm:$0x3]
    %v2099 = vld [vmem:[%s213] ss:$4 sm:$0x3]
    %v2100 = vstv %s2097
    %v2101 = vmul.f32 %v2100, %v2098
    %v2102 = vmul.f32 %v2100, %v2099
    %v2103 = vadd.f32 %v2095, %v2101
    %v2104 = vadd.f32 %v2096, %v2102
    %s2105 = sld [smem:[#allocation3 + $0x76]]
    %v2106 = vld [vmem:[%s211] ss:$4 sm:$0x7]
    %v2107 = vld [vmem:[%s213] ss:$4 sm:$0x7]
    %v2108 = vstv %s2105
    %v2109 = vmul.f32 %v2108, %v2106
    %v2110 = vmul.f32 %v2108, %v2107
    %2113 = vrot.lane.b32.xlu0 %v2109, 127
    %v2114 = vpop.permute.xlu0 %2113
    %2115 = vrot.lane.b32.xlu0 %v2110, 127
    %v2116 = vpop.permute.xlu0 %2115
    %v2117 = vrot.slane %v2114, 1
    %v2118 = vrot.slane %v2116, 1
    %v2119 = vsel %vm70, %v2114, %v2117
    %v2120 = vsel %vm70, %v2116, %v2118
    %v2123 = vadd.f32 %v2103, %v2119
    %v2124 = vadd.f32 %v2104, %v2120
    %s2125 = sld [smem:[#allocation3 + $0x77]]
    %v2126 = vstv %s2125
    %v2127 = vmul.f32 %v2126, %v2106
    %v2128 = vmul.f32 %v2126, %v2107
    %2131 = vrot.lane.b32.xlu0 %v2127, 126
    %v2132 = vpop.permute.xlu0 %2131
    %2133 = vrot.lane.b32.xlu0 %v2128, 126
    %v2134 = vpop.permute.xlu0 %2133
    %v2135 = vrot.slane %v2132, 1
    %v2136 = vrot.slane %v2134, 1
    %v2137 = vsel %vm89, %v2132, %v2135
    %v2138 = vsel %vm89, %v2134, %v2136
    %v2141 = vadd.f32 %v2123, %v2137
    %v2142 = vadd.f32 %v2124, %v2138
    %s2143 = sld [smem:[#allocation3 + $0x78]]
    %v2144 = vstv %s2143
    %v2145 = vmul.f32 %v2144, %v2106
    %v2146 = vmul.f32 %v2144, %v2107
    %2149 = vrot.lane.b32.xlu0 %v2145, 112
    %v2150 = vpop.permute.xlu0 %2149
    %2151 = vrot.lane.b32.xlu0 %v2146, 112
    %v2152 = vpop.permute.xlu0 %2151
    %v2153 = vrot.slane %v2150, 1
    %v2154 = vrot.slane %v2152, 1
    %v2155 = vsel %vm108, %v2150, %v2153
    %v2156 = vsel %vm108, %v2152, %v2154
    %v2159 = vadd.f32 %v2141, %v2155
    %v2160 = vadd.f32 %v2142, %v2156
    %s2161 = sld [smem:[#allocation3 + $0x79]]
    %v2162 = vstv %s2161
    %v2163 = vmul.f32 %v2162, %v2106
    %v2164 = vmul.f32 %v2162, %v2107
    %2167 = vrot.lane.b32.xlu0 %v2163, 111
    %v2168 = vpop.permute.xlu0 %2167
    %2169 = vrot.lane.b32.xlu0 %v2164, 111
    %v2170 = vpop.permute.xlu0 %2169
    %v2171 = vrot.slane %v2168, 1
    %v2172 = vrot.slane %v2170, 1
    %v2173 = vsel %vm127, %v2168, %v2171
    %v2174 = vsel %vm127, %v2170, %v2172
    %v2177 = vadd.f32 %v2159, %v2173
    %v2178 = vadd.f32 %v2160, %v2174
    %s2179 = sld [smem:[#allocation3 + $0x7a]]
    %v2180 = vstv %s2179
    %v2181 = vmul.f32 %v2180, %v2106
    %v2182 = vmul.f32 %v2180, %v2107
    %2185 = vrot.lane.b32.xlu0 %v2181, 110
    %v2186 = vpop.permute.xlu0 %2185
    %2187 = vrot.lane.b32.xlu0 %v2182, 110
    %v2188 = vpop.permute.xlu0 %2187
    %v2189 = vrot.slane %v2186, 1
    %v2190 = vrot.slane %v2188, 1
    %v2191 = vsel %vm146, %v2186, %v2189
    %v2192 = vsel %vm146, %v2188, %v2190
    %v2195 = vadd.f32 %v2177, %v2191
    %v2196 = vadd.f32 %v2178, %v2192
    %s2197 = sld [smem:[#allocation3 + $0x7b]]
    %v2198 = vstv %s2197
    %v2199 = vmul.f32 %v2198, %v2106
    %v2200 = vmul.f32 %v2198, %v2107
    %2203 = vrot.lane.b32.xlu0 %v2199, 96
    %v2204 = vpop.permute.xlu0 %2203
    %2205 = vrot.lane.b32.xlu0 %v2200, 96
    %v2206 = vpop.permute.xlu0 %2205
    %v2207 = vrot.slane %v2204, 1
    %v2208 = vrot.slane %v2206, 1
    %v2209 = vsel %vm165, %v2204, %v2207
    %v2210 = vsel %vm165, %v2206, %v2208
    %v2213 = vadd.f32 %v2195, %v2209
    %v2214 = vadd.f32 %v2196, %v2210
    %s2215 = sld [smem:[#allocation3 + $0x7c]]
    %v2216 = vstv %s2215
    %v2217 = vmul.f32 %v2216, %v2106
    %v2218 = vmul.f32 %v2216, %v2107
    %2221 = vrot.lane.b32.xlu0 %v2217, 95
    %v2222 = vpop.permute.xlu0 %2221
    %2223 = vrot.lane.b32.xlu0 %v2218, 95
    %v2224 = vpop.permute.xlu0 %2223
    %v2225 = vrot.slane %v2222, 1
    %v2226 = vrot.slane %v2224, 1
    %v2227 = vsel %vm184, %v2222, %v2225
    %v2228 = vsel %vm184, %v2224, %v2226
    %v2231 = vadd.f32 %v2213, %v2227
    %v2232 = vadd.f32 %v2214, %v2228
    %s2233 = sld [smem:[#allocation3 + $0x7d]]
    %v2234 = vstv %s2233
    %v2235 = vmul.f32 %v2234, %v2106
    %v2236 = vmul.f32 %v2234, %v2107
    %2239 = vrot.lane.b32.xlu0 %v2235, 94
    %v2240 = vpop.permute.xlu0 %2239
    %2241 = vrot.lane.b32.xlu0 %v2236, 94
    %v2242 = vpop.permute.xlu0 %2241
    %v2243 = vrot.slane %v2240, 1
    %v2244 = vrot.slane %v2242, 1
    %v2245 = vsel %vm203, %v2240, %v2243
    %v2246 = vsel %vm203, %v2242, %v2244
    %v2249 = vadd.f32 %v2231, %v2245
    %v2250 = vadd.f32 %v2232, %v2246
    %s2251 = sld [smem:[#allocation3 + $0x7e]]
    %v2252 = vld [vmem:[%s367] ss:$4 sm:$0x3]
    %v2253 = vld [vmem:[%s369] ss:$4 sm:$0x3]
    %v2254 = vstv %s2251
    %v2255 = vmul.f32 %v2254, %v2252
    %v2256 = vmul.f32 %v2254, %v2253
    %v2257 = vadd.f32 %v2249, %v2255
    %v2258 = vadd.f32 %v2250, %v2256
    %s2259 = sld [smem:[#allocation3 + $0x7f]]
    %v2260 = vld [vmem:[%s367] ss:$4 sm:$0x7]
    %v2261 = vld [vmem:[%s369] ss:$4 sm:$0x7]
    %v2262 = vstv %s2259
    %v2263 = vmul.f32 %v2262, %v2260
    %v2264 = vmul.f32 %v2262, %v2261
    %2267 = vrot.lane.b32.xlu0 %v2263, 127
    %v2268 = vpop.permute.xlu0 %2267
    %2269 = vrot.lane.b32.xlu0 %v2264, 127
    %v2270 = vpop.permute.xlu0 %2269
    %v2271 = vrot.slane %v2268, 1
    %v2272 = vrot.slane %v2270, 1
    %v2273 = vsel %vm70, %v2268, %v2271
    %v2274 = vsel %vm70, %v2270, %v2272
    %v2277 = vadd.f32 %v2257, %v2273
    %v2278 = vadd.f32 %v2258, %v2274
    %s2279 = sld [smem:[#allocation3 + $0x80]]
    %v2280 = vstv %s2279
    %v2281 = vmul.f32 %v2280, %v2260
    %v2282 = vmul.f32 %v2280, %v2261
    %2285 = vrot.lane.b32.xlu0 %v2281, 126
    %v2286 = vpop.permute.xlu0 %2285
    %2287 = vrot.lane.b32.xlu0 %v2282, 126
    %v2288 = vpop.permute.xlu0 %2287
    %v2289 = vrot.slane %v2286, 1
    %v2290 = vrot.slane %v2288, 1
    %v2291 = vsel %vm89, %v2286, %v2289
    %v2292 = vsel %vm89, %v2288, %v2290
    %v2295 = vadd.f32 %v2277, %v2291
    %v2296 = vadd.f32 %v2278, %v2292
    %s2297 = sld [smem:[#allocation3 + $0x81]]
    %v2298 = vstv %s2297
    %v2299 = vmul.f32 %v2298, %v2260
    %v2300 = vmul.f32 %v2298, %v2261
    %2303 = vrot.lane.b32.xlu0 %v2299, 112
    %v2304 = vpop.permute.xlu0 %2303
    %2305 = vrot.lane.b32.xlu0 %v2300, 112
    %v2306 = vpop.permute.xlu0 %2305
    %v2307 = vrot.slane %v2304, 1
    %v2308 = vrot.slane %v2306, 1
    %v2309 = vsel %vm108, %v2304, %v2307
    %v2310 = vsel %vm108, %v2306, %v2308
    %v2313 = vadd.f32 %v2295, %v2309
    %v2314 = vadd.f32 %v2296, %v2310
    %s2315 = sld [smem:[#allocation3 + $0x82]]
    %v2316 = vstv %s2315
    %v2317 = vmul.f32 %v2316, %v2260
    %v2318 = vmul.f32 %v2316, %v2261
    %2321 = vrot.lane.b32.xlu0 %v2317, 111
    %v2322 = vpop.permute.xlu0 %2321
    %2323 = vrot.lane.b32.xlu0 %v2318, 111
    %v2324 = vpop.permute.xlu0 %2323
    %v2325 = vrot.slane %v2322, 1
    %v2326 = vrot.slane %v2324, 1
    %v2327 = vsel %vm127, %v2322, %v2325
    %v2328 = vsel %vm127, %v2324, %v2326
    %v2331 = vadd.f32 %v2313, %v2327
    %v2332 = vadd.f32 %v2314, %v2328
    %s2333 = sld [smem:[#allocation3 + $0x83]]
    %v2334 = vstv %s2333
    %v2335 = vmul.f32 %v2334, %v2260
    %v2336 = vmul.f32 %v2334, %v2261
    %2339 = vrot.lane.b32.xlu0 %v2335, 110
    %v2340 = vpop.permute.xlu0 %2339
    %2341 = vrot.lane.b32.xlu0 %v2336, 110
    %v2342 = vpop.permute.xlu0 %2341
    %v2343 = vrot.slane %v2340, 1
    %v2344 = vrot.slane %v2342, 1
    %v2345 = vsel %vm146, %v2340, %v2343
    %v2346 = vsel %vm146, %v2342, %v2344
    %v2349 = vadd.f32 %v2331, %v2345
    %v2350 = vadd.f32 %v2332, %v2346
    %s2351 = sld [smem:[#allocation3 + $0x84]]
    %v2352 = vstv %s2351
    %v2353 = vmul.f32 %v2352, %v2260
    %v2354 = vmul.f32 %v2352, %v2261
    %2357 = vrot.lane.b32.xlu0 %v2353, 96
    %v2358 = vpop.permute.xlu0 %2357
    %2359 = vrot.lane.b32.xlu0 %v2354, 96
    %v2360 = vpop.permute.xlu0 %2359
    %v2361 = vrot.slane %v2358, 1
    %v2362 = vrot.slane %v2360, 1
    %v2363 = vsel %vm165, %v2358, %v2361
    %v2364 = vsel %vm165, %v2360, %v2362
    %v2367 = vadd.f32 %v2349, %v2363
    %v2368 = vadd.f32 %v2350, %v2364
    %s2369 = sld [smem:[#allocation3 + $0x85]]
    %v2370 = vstv %s2369
    %v2371 = vmul.f32 %v2370, %v2260
    %v2372 = vmul.f32 %v2370, %v2261
    %2375 = vrot.lane.b32.xlu0 %v2371, 95
    %v2376 = vpop.permute.xlu0 %2375
    %2377 = vrot.lane.b32.xlu0 %v2372, 95
    %v2378 = vpop.permute.xlu0 %2377
    %v2379 = vrot.slane %v2376, 1
    %v2380 = vrot.slane %v2378, 1
    %v2381 = vsel %vm184, %v2376, %v2379
    %v2382 = vsel %vm184, %v2378, %v2380
    %v2385 = vadd.f32 %v2367, %v2381
    %v2386 = vadd.f32 %v2368, %v2382
    %s2387 = sld [smem:[#allocation3 + $0x86]]
    %v2388 = vstv %s2387
    %v2389 = vmul.f32 %v2388, %v2260
    %v2390 = vmul.f32 %v2388, %v2261
    %2393 = vrot.lane.b32.xlu0 %v2389, 94
    %v2394 = vpop.permute.xlu0 %2393
    %2395 = vrot.lane.b32.xlu0 %v2390, 94
    %v2396 = vpop.permute.xlu0 %2395
    %v2397 = vrot.slane %v2394, 1
    %v2398 = vrot.slane %v2396, 1
    %v2399 = vsel %vm203, %v2394, %v2397
    %v2400 = vsel %vm203, %v2396, %v2398
    %v2403 = vadd.f32 %v2385, %v2399
    %v2404 = vadd.f32 %v2386, %v2400
    %s2405 = scalar_lea.vmem %s3, 4
    %2406 = vst.msk [vmem:[%s2405] ss:$8 sm:$0x3] %vm525, %v2403
    %2407 = vst.msk [vmem:[%s2405] ss:$8 sm:$0x0] %vm525, %v2403
    %s2408 = scalar_lea.vmem %s3, 20
    %2409 = vst.msk [vmem:[%s2408] ss:$8 sm:$0x3] %vm525, %v2404
    %2410 = vst.msk [vmem:[%s2408] ss:$8 sm:$0x0] %vm525, %v2404
    // Predicated region
    $region22: #{_conv2d_pallas.1} parent=1 // pred_check
      _
    $region23: #{_conv2d_pallas.1} parent=1 // pred_check_branch
      %2412 = sbr.rel (0) target = $region25
    $region24: #{_conv2d_pallas.1} parent=1 // pred_region
      _
    $region25: #{_conv2d_pallas.1} parent=1 // pred_fallthru
      _
    // Predicated region
    $region26: #{_conv2d_pallas.1} parent=1 // pred_check
      _
    $region27: #{_conv2d_pallas.1} parent=1 // pred_check_branch
      %2414 = sbr.rel (0) target = $region29
    $region28: #{_conv2d_pallas.1} parent=1 // pred_region
      _
    $region29: #{_conv2d_pallas.1} parent=1 // pred_fallthru
      _
    %2415 = vsyncpa [#allocation4], 1
    %2416 = vsyncpa [#allocation6], 1

</llo_original>
